<compile_context>
chip_gen: v6e
topology: v6e:2x2x1
jax: 0.10.0
libtpu: 0.0.40
codegen_flags: <defaults>
</compile_context>

<pallas_src>
import functools

import jax
import jax.numpy as jnp
from jax.experimental import pallas as pl
from jax.experimental.pallas import tpu as pltpu

_TM = 256   # row tile: >=2 parallel grid steps for the 512-row layers (v7x megacore)


# ----------------------------------------------------------------------------
# Pallas kernels
# ----------------------------------------------------------------------------
def _gemm_bias_act_kernel(x_ref, w_ref, b_ref, o_ref, *, act):
    """o = act(x @ w + b); BN scale is pre-folded into w, accumulate/epilogue in f32."""
    y = jnp.dot(x_ref[...], w_ref[...], preferred_element_type=jnp.float32)
    y = y + b_ref[...]
    if act == "leaky":                        # LeakyReLU(0.2)
        y = jnp.where(y > 0, y, 0.2 * y)
    elif act == "relu":
        y = jnp.maximum(y, 0.0)
    # act == "none": identity
    o_ref[...] = y.astype(o_ref.dtype)


def gemm_bias_act(x, w, bias, act, out_dtype=jnp.bfloat16):
    """x: (M, K) bf16, w: (K, N) bf16, bias: (1, N) f32 -> (M, N) out_dtype."""
    M, K = x.shape
    N = w.shape[1]
    tm = M if M <= _TM else _TM
    grid_m = pl.cdiv(M, tm)
    Mp = grid_m * tm
    if Mp != M:                               # zero-padded tail instead of an assert
        x = jnp.pad(x, ((0, Mp - M), (0, 0)))
    out = pl.pallas_call(
        functools.partial(_gemm_bias_act_kernel, act=act),
        out_shape=jax.ShapeDtypeStruct((Mp, N), out_dtype),
        grid=(grid_m,),
        in_specs=[
            pl.BlockSpec((tm, K), lambda i: (i, 0)),
            pl.BlockSpec((K, N), lambda i: (0, 0)),
            pl.BlockSpec((1, N), lambda i: (0, 0)),
        ],
        out_specs=pl.BlockSpec((tm, N), lambda i: (i, 0)),
        compiler_params=pltpu.CompilerParams(dimension_semantics=("parallel",)),
    )(x, w, bias)
    return out[:M] if Mp != M else out


def _enc_head_kernel(c_ref, w5_ref, b5_ref, wmu_ref, bmu_ref, wvar_ref, bvar_ref,
                     eps_ref, mu_ref, lv_ref, z_ref):
    """Fused: encoder conv-5 GEMM + LeakyReLU -> fc_mu / fc_var -> reparameterize."""
    h = jnp.dot(c_ref[...], w5_ref[...], preferred_element_type=jnp.float32)
    h = h + b5_ref[...]
    h = jnp.where(h > 0, h, 0.2 * h)
    mu = jnp.dot(h, wmu_ref[...], preferred_element_type=jnp.float32) + bmu_ref[...]
    lv = jnp.dot(h, wvar_ref[...], preferred_element_type=jnp.float32) + bvar_ref[...]
    mu_ref[...] = mu
    lv_ref[...] = lv
    z_ref[...] = mu + eps_ref[...] * jnp.exp(0.5 * lv)


def enc_head(cols, w5, b5, wmu, bmu, wvar, bvar, eps):
    """cols: (B, 16*Cin) bf16 -> mu, logvar, z, each (B, z_dim) f32, in one call."""
    M = cols.shape[0]
    Z = wmu.shape[1]

    def _full(a):
        return pl.BlockSpec(a.shape, lambda i: (0,) * a.ndim)

    out_sds = jax.ShapeDtypeStruct((M, Z), jnp.float32)
    return pl.pallas_call(
        _enc_head_kernel,
        out_shape=(out_sds, out_sds, out_sds),
        grid=(1,),
        in_specs=[_full(a) for a in (cols, w5, b5, wmu, bmu, wvar, bvar, eps)],
        out_specs=[pl.BlockSpec((M, Z), lambda i: (0, 0))] * 3,
    )(cols, w5, b5, wmu, bmu, wvar, bvar, eps)


def _dec_tail_kernel(c_ref, w1_ref, b1_ref, w2_ref, o_ref):
    """Fused: decoder conv-5 phase-GEMM + BN bias + ReLU -> block-diag 1x1 conv -> tanh."""
    y = jnp.dot(c_ref[...], w1_ref[...], preferred_element_type=jnp.float32)
    y = jnp.maximum(y + b1_ref[...], 0.0)
    o = jnp.dot(y, w2_ref[...], preferred_element_type=jnp.float32)
    o_ref[...] = jnp.tanh(o)


def dec_tail(cols, w1, b1, w2):
    """cols: (M, 9*Cin) bf16, w1: (9*Cin, 4*C5) bf16, w2: (4*C5, 4*n_ch) f32."""
    M, K = cols.shape
    N1 = w1.shape[1]
    N2 = w2.shape[1]
    tm = M if M <= _TM else _TM
    grid_m = pl.cdiv(M, tm)
    Mp = grid_m * tm
    if Mp != M:
        cols = jnp.pad(cols, ((0, Mp - M), (0, 0)))
    out = pl.pallas_call(
        _dec_tail_kernel,
        out_shape=jax.ShapeDtypeStruct((Mp, N2), jnp.float32),
        grid=(grid_m,),
        in_specs=[
            pl.BlockSpec((tm, K), lambda i: (i, 0)),
            pl.BlockSpec((K, N1), lambda i: (0, 0)),
            pl.BlockSpec((1, N1), lambda i: (0, 0)),
            pl.BlockSpec((N1, N2), lambda i: (0, 0)),
        ],
        out_specs=pl.BlockSpec((tm, N2), lambda i: (i, 0)),
        compiler_params=pltpu.CompilerParams(dimension_semantics=("parallel",)),
    )(cols, w1, b1, w2)
    return out[:M] if Mp != M else out


# ----------------------------------------------------------------------------
# JAX glue: im2col / sub-pixel (4-phase) transpose-conv reformulation
# ----------------------------------------------------------------------------
def _im2col(x_nhwc, k, stride, pad):
    """x: (B,H,W,C) -> (B*Ho*Wo, k*k*C) with (kh, kw, c_in) column ordering."""
    B, H, W, C = x_nhwc.shape
    xp = jnp.pad(x_nhwc, ((0, 0), (pad, pad), (pad, pad), (0, 0)))
    Ho = (H + 2 * pad - k) // stride + 1
    Wo = (W + 2 * pad - k) // stride + 1
    patches = []
    for kh in range(k):
        for kw in range(k):
            patches.append(
                xp[:, kh:kh + (Ho - 1) * stride + 1:stride,
                      kw:kw + (Wo - 1) * stride + 1:stride, :])
    cols = jnp.stack(patches, axis=3)                  # (B, Ho, Wo, k*k, C)
    return cols.reshape(B * Ho * Wo, k * k * C), Ho, Wo


def _conv_block(x_nhwc, w_oihw, scale, bias, act):
    """Conv2d(k=4, s=2, p=1, bias=False) + BN (scale folded) + activation -> bf16 NHWC."""
    B = x_nhwc.shape[0]
    cout, cin = w_oihw.shape[0], w_oihw.shape[1]
    cols, Ho, Wo = _im2col(x_nhwc, 4, 2, 1)
    w_mat = jnp.transpose(w_oihw, (2, 3, 1, 0)).reshape(16 * cin, cout)
    w_mat = (w_mat * scale[None, :]).astype(jnp.bfloat16)
    y = gemm_bias_act(cols.astype(jnp.bfloat16), w_mat, bias[None, :], act)
    return y.reshape(B, Ho, Wo, cout)


# ConvTranspose2d(k=4, s=2, p=1) as a per-output-phase 2x2 conv on the un-dilated input.
# Even output rows (phase 0) use input offsets {-1, 0} with kernel rows {3, 1};
# odd rows (phase 1) use offsets {0, +1} with kernel rows {2, 0} (same along width).
_PHASE_TAPS = {0: ((0, 3), (1, 1)), 1: ((1, 2), (2, 0))}   # (offset_index, kernel_index)


def _deconv_eq_weight(w_iohw):
    """(Cin, Cout, 4, 4) ConvTranspose weight -> (9*Cin, 4*Cout) equivalent k=3/s=1
    weight producing the 4 sub-pixel phases stacked on the output-channel axis."""
    cin, cout = w_iohw.shape[0], w_iohw.shape[1]
    w = jnp.transpose(w_iohw, (2, 3, 0, 1))             # (kh, kw, Cin, Cout)
    w_eq = jnp.zeros((3, 3, cin, 4, cout), w.dtype)
    for ph_h in (0, 1):
        for ph_w in (0, 1):
            ph = 2 * ph_h + ph_w
            for dh, kh in _PHASE_TAPS[ph_h]:
                for dw, kw in _PHASE_TAPS[ph_w]:
                    w_eq = w_eq.at[dh, dw, :, ph, :].set(w[kh, kw])
    return w_eq.reshape(9 * cin, 4 * cout)


def _depth_to_space2(y2d, B, Hi, Wi, cout):
    """(B*Hi*Wi, 4*cout) phase-stacked GEMM output -> (B, 2Hi, 2Wi, cout)."""
    y = y2d.reshape(B, Hi, Wi, 2, 2, cout)
    y = jnp.transpose(y, (0, 1, 3, 2, 4, 5))
    return y.reshape(B, 2 * Hi, 2 * Wi, cout)


def _upsample_block(x_nhwc, w_iohw, scale, bias, act):
    """ConvTranspose2d(k=4, s=2, p=1, bias=False) + BN (folded) + activation -> bf16."""
    B, Hi, Wi, cin = x_nhwc.shape
    cout = w_iohw.shape[1]
    cols, _, _ = _im2col(x_nhwc, 3, 1, 1)               # (B*Hi*Wi, 9*cin)
    w_eq = _deconv_eq_weight(w_iohw)                    # (9*cin, 4*cout)
    w_eq = (w_eq * jnp.tile(scale, 4)[None, :]).astype(jnp.bfloat16)
    bias4 = jnp.tile(bias, 4)[None, :]
    y = gemm_bias_act(cols.astype(jnp.bfloat16), w_eq, bias4, act)
    return _depth_to_space2(y, B, Hi, Wi, cout)


# ----------------------------------------------------------------------------
# Parameters (deterministic synthetic init, shapes per the PyTorch module)
# ----------------------------------------------------------------------------
def _bn_scale_bias(c, eps=1e-5):
    gamma = jnp.ones((c,), jnp.float32)
    beta = jnp.zeros((c,), jnp.float32)
    running_mean = jnp.zeros((c,), jnp.float32)
    running_var = jnp.ones((c,), jnp.float32)
    s = gamma / jnp.sqrt(running_var + eps)
    return s, beta - running_mean * s


def init_params(key, n_channels=4, h_dim=32, z_dim=8):
    ks = iter(jax.random.split(key, 32))
    params = {}

    enc_ch = [n_channels, h_dim // 16, h_dim // 8, h_dim // 4, h_dim // 2, h_dim]
    enc = []
    for i in range(5):
        cin, cout = enc_ch[i], enc_ch[i + 1]
        w = jax.random.normal(next(ks), (cout, cin, 4, 4), jnp.float32) / jnp.sqrt(16.0 * cin)
        if i == 0:                       # first block: norm=False
            s, b = jnp.ones((cout,), jnp.float32), jnp.zeros((cout,), jnp.float32)
        else:
            s, b = _bn_scale_bias(cout)
        enc.append((w, s, b))
    params["enc"] = enc

    params["fc_mu_w"] = jax.random.normal(next(ks), (h_dim, z_dim), jnp.float32) / jnp.sqrt(float(h_dim))
    params["fc_mu_b"] = 0.01 * jax.random.normal(next(ks), (z_dim,), jnp.float32)
    params["fc_var_w"] = jax.random.normal(next(ks), (h_dim, z_dim), jnp.float32) / jnp.sqrt(float(h_dim))
    params["fc_var_b"] = 0.01 * jax.random.normal(next(ks), (z_dim,), jnp.float32)

    dec_ch = [z_dim, h_dim, h_dim // 2, h_dim // 4, h_dim // 8, h_dim // 16]
    dec = []
    for i in range(5):
        cin, cout = dec_ch[i], dec_ch[i + 1]
        w = jax.random.normal(next(ks), (cin, cout, 4, 4), jnp.float32) / jnp.sqrt(16.0 * cin)
        s, b = _bn_scale_bias(cout)
        dec.append((w, s, b))
    params["dec"] = dec

    params["final_w"] = jax.random.normal(
        next(ks), (n_channels, h_dim // 16, 1, 1), jnp.float32) / jnp.sqrt(float(h_dim // 16))
    return params


# ----------------------------------------------------------------------------
# Full forward
# ----------------------------------------------------------------------------
def vae_forward(x_nchw, params, noise):
    x = jnp.transpose(x_nchw, (0, 2, 3, 1)).astype(jnp.float32)   # NCHW -> NHWC

    # ---- encoder blocks 1-4: Conv(k4,s2,p1) + [BN] + LeakyReLU(0.2) ----
    h = x
    for (w, s, b) in params["enc"][:4]:
        h = _conv_block(h, w, s, b, act="leaky")

    # ---- encoder block 5 + fc_mu / fc_var + reparameterize: one fused kernel ----
    B = h.shape[0]
    w5, s5, b5 = params["enc"][4]
    cin5 = w5.shape[1]
    cols5, _, _ = _im2col(h, 4, 2, 1)                              # (B, 16*cin5)
    w5_mat = jnp.transpose(w5, (2, 3, 1, 0)).reshape(16 * cin5, w5.shape[0])
    w5_mat = (w5_mat * s5[None, :]).astype(jnp.bfloat16)
    mu2d, lv2d, z2d = enc_head(
        cols5.astype(jnp.bfloat16), w5_mat, b5[None, :],
        params["fc_mu_w"], params["fc_mu_b"][None, :],
        params["fc_var_w"], params["fc_var_b"][None, :],
        noise.reshape(B, -1).astype(jnp.float32))

    z_dim = mu2d.shape[1]
    d = z2d.reshape(B, 1, 1, z_dim)                                # 'b h w c'

    # ---- decoder blocks 1-4: ConvTranspose(k4,s2,p1) + BN + ReLU ----
    for (w, s, b) in params["dec"][:4]:
        d = _upsample_block(d, w, s, b, act="relu")

    # ---- decoder block 5 fused with the final 1x1 conv + tanh ----
    w5d, s5d, b5d = params["dec"][4]
    B2, Hi, Wi, _ = d.shape
    cols, _, _ = _im2col(d, 3, 1, 1)
    w1 = (_deconv_eq_weight(w5d) * jnp.tile(s5d, 4)[None, :]).astype(jnp.bfloat16)
    b1 = jnp.tile(b5d, 4)[None, :]
    w_f = params["final_w"][:, :, 0, 0].T                          # (C5, n_channels)
    w2 = jnp.kron(jnp.eye(4, dtype=jnp.float32), w_f)              # block-diag over phases
    y = dec_tail(cols.astype(jnp.bfloat16), w1, b1, w2)            # (B*Hi*Wi, 4*n_ch) f32
    out = _depth_to_space2(y, B2, Hi, Wi, w_f.shape[1])            # (B, 2Hi, 2Wi, n_ch)

    recon = jnp.transpose(out, (0, 3, 1, 2))                       # NHWC -> NCHW
    mu = mu2d.reshape(B, 1, 1, z_dim)
    logvar = lv2d.reshape(B, 1, 1, z_dim)
    return recon, mu, logvar


# ----------------------------------------------------------------------------
if __name__ == "__main__":
    N_CHANNELS, H_DIM, Z_DIM = 4, 32, 8
    B, S = 2, 32                          # 5 stride-2 downsamples: 32 -> 1

    key = jax.random.PRNGKey(0)
    kx, kn, kp = jax.random.split(key, 3)
    x = jax.random.normal(kx, (B, N_CHANNELS, S, S), jnp.float32)
    noise = jax.random.normal(kn, (B, 1, 1, Z_DIM), jnp.float32)
    params = init_params(kp, N_CHANNELS, H_DIM, Z_DIM)

    fwd = jax.jit(vae_forward)
    recon, mu, logvar = fwd(x, params, noise)
    jax.block_until_ready((recon, mu, logvar))

    assert recon.shape == (B, N_CHANNELS, S, S), recon.shape
    assert mu.shape == (B, 1, 1, Z_DIM), mu.shape
    assert logvar.shape == (B, 1, 1, Z_DIM), logvar.shape
    assert bool(jnp.all(jnp.isfinite(recon))) and bool(jnp.all(jnp.abs(recon) <= 1.0))
    print("KERNEL_OK")
</pallas_src>

<mosaic_0001>
module attributes {stable_mosaic.version = 11 : i64} {
  func.func @_gemm_bias_act_kernel(%arg0: i32, %arg1: memref<256x64xbf16, #tpu.memory_space<vmem>>, %arg2: memref<64x2xbf16, #tpu.memory_space<vmem>>, %arg3: memref<1x2xf32, #tpu.memory_space<vmem>>, %arg4: memref<256x2xbf16, #tpu.memory_space<vmem>>) attributes {dimension_semantics = [#tpu.dimension_semantics<parallel>], iteration_bounds = array<i64: 2>, scalar_prefetch = 0 : i64, scratch_operands = 0 : i64, tpu.core_type = #tpu.core_type<tc>, window_params = [{transform_indices = @transform_0, window_bounds = array<i64: 256, 64>}, {pipeline_mode = #tpu.pipeline_mode<synchronous>, transform_indices = @transform_1, window_bounds = array<i64: 64, 2>}, {pipeline_mode = #tpu.pipeline_mode<synchronous>, transform_indices = @transform_2, window_bounds = array<i64: 1, 2>}, {transform_indices = @transform_3, window_bounds = array<i64: 256, 2>}]} {
    %c0 = arith.constant 0 : index
    %c0_0 = arith.constant 0 : index
    %0 = vector.load %arg1[%c0, %c0_0] : memref<256x64xbf16, #tpu.memory_space<vmem>>, vector<256x64xbf16>
    %c0_1 = arith.constant 0 : index
    %c0_2 = arith.constant 0 : index
    %1 = vector.load %arg2[%c0_1, %c0_2] : memref<64x2xbf16, #tpu.memory_space<vmem>>, vector<64x2xbf16>
    %cst = arith.constant dense<0.000000e+00> : vector<256x2xf32>
    %2 = tpu.matmul %0, %1, %cst {dimension_numbers = #tpu.dot_dimension_numbers<[1], [0], [0], [1], [0, 0, 1, 1], [], []>} : vector<256x64xbf16>, vector<64x2xbf16>, vector<256x2xf32> -> vector<256x2xf32>
    %c0_3 = arith.constant 0 : index
    %c0_4 = arith.constant 0 : index
    %3 = vector.load %arg3[%c0_3, %c0_4] : memref<1x2xf32, #tpu.memory_space<vmem>>, vector<1x2xf32>
    %4 = vector.broadcast %3 : vector<1x2xf32> to vector<256x2xf32>
    %5 = arith.addf %2, %4 : vector<256x2xf32>
    %cst_5 = arith.constant 0.000000e+00 : f32
    %6 = vector.broadcast %cst_5 : f32 to vector<256x2xf32>
    %7 = arith.cmpf ogt, %5, %6 : vector<256x2xf32>
    %cst_6 = arith.constant 2.000000e-01 : f32
    %8 = vector.broadcast %cst_6 : f32 to vector<256x2xf32>
    %9 = arith.mulf %8, %5 : vector<256x2xf32>
    %10 = arith.select %7, %5, %9 : vector<256x2xi1>, vector<256x2xf32>
    %11 = arith.truncf %10 : vector<256x2xf32> to vector<256x2xbf16>
    %c0_7 = arith.constant 0 : index
    %c0_8 = arith.constant 0 : index
    %12 = vector.load %arg4[%c0_7, %c0_8] : memref<256x2xbf16, #tpu.memory_space<vmem>>, vector<256x2xbf16>
    tpu.vector_store %arg4[%c0_7, %c0_8], %11 {strides = array<i32>} : memref<256x2xbf16, #tpu.memory_space<vmem>>, vector<256x2xbf16>,
    return
  }
  func.func @transform_0(%arg0: i32) -> (i32, i32) {
    %c0_i32 = arith.constant 0 : i32
    %c0_i32_0 = arith.constant 0 : i32
    return %arg0, %c0_i32 : i32, i32
  }
  func.func @transform_1(%arg0: i32) -> (i32, i32) {
    %c0_i32 = arith.constant 0 : i32
    %c0_i32_0 = arith.constant 0 : i32
    %c0_i32_1 = arith.constant 0 : i32
    return %c0_i32, %c0_i32_0 : i32, i32
  }
  func.func @transform_2(%arg0: i32) -> (i32, i32) {
    %c0_i32 = arith.constant 0 : i32
    %c0_i32_0 = arith.constant 0 : i32
    %c0_i32_1 = arith.constant 0 : i32
    return %c0_i32, %c0_i32_0 : i32, i32
  }
  func.func @transform_3(%arg0: i32) -> (i32, i32) {
    %c0_i32 = arith.constant 0 : i32
    %c0_i32_0 = arith.constant 0 : i32
    return %arg0, %c0_i32 : i32, i32
  }
}

module attributes {stable_mosaic.version = 11 : i64} {
  func.func @_gemm_bias_act_kernel(%arg0: i32, %arg1: memref<128x32xbf16, #tpu.memory_space<vmem>>, %arg2: memref<32x4xbf16, #tpu.memory_space<vmem>>, %arg3: memref<1x4xf32, #tpu.memory_space<vmem>>, %arg4: memref<128x4xbf16, #tpu.memory_space<vmem>>) attributes {dimension_semantics = [#tpu.dimension_semantics<parallel>], iteration_bounds = array<i64: 1>, scalar_prefetch = 0 : i64, scratch_operands = 0 : i64, tpu.core_type = #tpu.core_type<tc>, window_params = [{transform_indices = @transform_0, window_bounds = array<i64: 128, 32>}, {pipeline_mode = #tpu.pipeline_mode<synchronous>, transform_indices = @transform_1, window_bounds = array<i64: 32, 4>}, {pipeline_mode = #tpu.pipeline_mode<synchronous>, transform_indices = @transform_2, window_bounds = array<i64: 1, 4>}, {transform_indices = @transform_3, window_bounds = array<i64: 128, 4>}]} {
    %c0 = arith.constant 0 : index
    %c0_0 = arith.constant 0 : index
    %0 = vector.load %arg1[%c0, %c0_0] : memref<128x32xbf16, #tpu.memory_space<vmem>>, vector<128x32xbf16>
    %c0_1 = arith.constant 0 : index
    %c0_2 = arith.constant 0 : index
    %1 = vector.load %arg2[%c0_1, %c0_2] : memref<32x4xbf16, #tpu.memory_space<vmem>>, vector<32x4xbf16>
    %cst = arith.constant dense<0.000000e+00> : vector<128x4xf32>
    %2 = tpu.matmul %0, %1, %cst {dimension_numbers = #tpu.dot_dimension_numbers<[1], [0], [0], [1], [0, 0, 1, 1], [], []>} : vector<128x32xbf16>, vector<32x4xbf16>, vector<128x4xf32> -> vector<128x4xf32>
    %c0_3 = arith.constant 0 : index
    %c0_4 = arith.constant 0 : index
    %3 = vector.load %arg3[%c0_3, %c0_4] : memref<1x4xf32, #tpu.memory_space<vmem>>, vector<1x4xf32>
    %4 = vector.broadcast %3 : vector<1x4xf32> to vector<128x4xf32>
    %5 = arith.addf %2, %4 : vector<128x4xf32>
    %cst_5 = arith.constant 0.000000e+00 : f32
    %6 = vector.broadcast %cst_5 : f32 to vector<128x4xf32>
    %7 = arith.cmpf ogt, %5, %6 : vector<128x4xf32>
    %cst_6 = arith.constant 2.000000e-01 : f32
    %8 = vector.broadcast %cst_6 : f32 to vector<128x4xf32>
    %9 = arith.mulf %8, %5 : vector<128x4xf32>
    %10 = arith.select %7, %5, %9 : vector<128x4xi1>, vector<128x4xf32>
    %11 = arith.truncf %10 : vector<128x4xf32> to vector<128x4xbf16>
    %c0_7 = arith.constant 0 : index
    %c0_8 = arith.constant 0 : index
    %12 = vector.load %arg4[%c0_7, %c0_8] : memref<128x4xbf16, #tpu.memory_space<vmem>>, vector<128x4xbf16>
    tpu.vector_store %arg4[%c0_7, %c0_8], %11 {strides = array<i32>} : memref<128x4xbf16, #tpu.memory_space<vmem>>, vector<128x4xbf16>,
    return
  }
  func.func @transform_0(%arg0: i32) -> (i32, i32) {
    %c0_i32 = arith.constant 0 : i32
    %c0_i32_0 = arith.constant 0 : i32
    return %arg0, %c0_i32 : i32, i32
  }
  func.func @transform_1(%arg0: i32) -> (i32, i32) {
    %c0_i32 = arith.constant 0 : i32
    %c0_i32_0 = arith.constant 0 : i32
    %c0_i32_1 = arith.constant 0 : i32
    return %c0_i32, %c0_i32_0 : i32, i32
  }
  func.func @transform_2(%arg0: i32) -> (i32, i32) {
    %c0_i32 = arith.constant 0 : i32
    %c0_i32_0 = arith.constant 0 : i32
    %c0_i32_1 = arith.constant 0 : i32
    return %c0_i32, %c0_i32_0 : i32, i32
  }
  func.func @transform_3(%arg0: i32) -> (i32, i32) {
    %c0_i32 = arith.constant 0 : i32
    %c0_i32_0 = arith.constant 0 : i32
    return %arg0, %c0_i32 : i32, i32
  }
}

module attributes {stable_mosaic.version = 11 : i64} {
  func.func @_gemm_bias_act_kernel(%arg0: i32, %arg1: memref<32x64xbf16, #tpu.memory_space<vmem>>, %arg2: memref<64x8xbf16, #tpu.memory_space<vmem>>, %arg3: memref<1x8xf32, #tpu.memory_space<vmem>>, %arg4: memref<32x8xbf16, #tpu.memory_space<vmem>>) attributes {dimension_semantics = [#tpu.dimension_semantics<parallel>], iteration_bounds = array<i64: 1>, scalar_prefetch = 0 : i64, scratch_operands = 0 : i64, tpu.core_type = #tpu.core_type<tc>, window_params = [{transform_indices = @transform_0, window_bounds = array<i64: 32, 64>}, {pipeline_mode = #tpu.pipeline_mode<synchronous>, transform_indices = @transform_1, window_bounds = array<i64: 64, 8>}, {pipeline_mode = #tpu.pipeline_mode<synchronous>, transform_indices = @transform_2, window_bounds = array<i64: 1, 8>}, {transform_indices = @transform_3, window_bounds = array<i64: 32, 8>}]} {
    %c0 = arith.constant 0 : index
    %c0_0 = arith.constant 0 : index
    %0 = vector.load %arg1[%c0, %c0_0] : memref<32x64xbf16, #tpu.memory_space<vmem>>, vector<32x64xbf16>
    %c0_1 = arith.constant 0 : index
    %c0_2 = arith.constant 0 : index
    %1 = vector.load %arg2[%c0_1, %c0_2] : memref<64x8xbf16, #tpu.memory_space<vmem>>, vector<64x8xbf16>
    %cst = arith.constant dense<0.000000e+00> : vector<32x8xf32>
    %2 = tpu.matmul %0, %1, %cst {dimension_numbers = #tpu.dot_dimension_numbers<[1], [0], [0], [1], [0, 0, 1, 1], [], []>} : vector<32x64xbf16>, vector<64x8xbf16>, vector<32x8xf32> -> vector<32x8xf32>
    %c0_3 = arith.constant 0 : index
    %c0_4 = arith.constant 0 : index
    %3 = vector.load %arg3[%c0_3, %c0_4] : memref<1x8xf32, #tpu.memory_space<vmem>>, vector<1x8xf32>
    %4 = vector.broadcast %3 : vector<1x8xf32> to vector<32x8xf32>
    %5 = arith.addf %2, %4 : vector<32x8xf32>
    %cst_5 = arith.constant 0.000000e+00 : f32
    %6 = vector.broadcast %cst_5 : f32 to vector<32x8xf32>
    %7 = arith.cmpf ogt, %5, %6 : vector<32x8xf32>
    %cst_6 = arith.constant 2.000000e-01 : f32
    %8 = vector.broadcast %cst_6 : f32 to vector<32x8xf32>
    %9 = arith.mulf %8, %5 : vector<32x8xf32>
    %10 = arith.select %7, %5, %9 : vector<32x8xi1>, vector<32x8xf32>
    %11 = arith.truncf %10 : vector<32x8xf32> to vector<32x8xbf16>
    %c0_7 = arith.constant 0 : index
    %c0_8 = arith.constant 0 : index
    %12 = vector.load %arg4[%c0_7, %c0_8] : memref<32x8xbf16, #tpu.memory_space<vmem>>, vector<32x8xbf16>
    tpu.vector_store %arg4[%c0_7, %c0_8], %11 {strides = array<i32>} : memref<32x8xbf16, #tpu.memory_space<vmem>>, vector<32x8xbf16>,
    return
  }
  func.func @transform_0(%arg0: i32) -> (i32, i32) {
    %c0_i32 = arith.constant 0 : i32
    %c0_i32_0 = arith.constant 0 : i32
    return %arg0, %c0_i32 : i32, i32
  }
  func.func @transform_1(%arg0: i32) -> (i32, i32) {
    %c0_i32 = arith.constant 0 : i32
    %c0_i32_0 = arith.constant 0 : i32
    %c0_i32_1 = arith.constant 0 : i32
    return %c0_i32, %c0_i32_0 : i32, i32
  }
  func.func @transform_2(%arg0: i32) -> (i32, i32) {
    %c0_i32 = arith.constant 0 : i32
    %c0_i32_0 = arith.constant 0 : i32
    %c0_i32_1 = arith.constant 0 : i32
    return %c0_i32, %c0_i32_0 : i32, i32
  }
  func.func @transform_3(%arg0: i32) -> (i32, i32) {
    %c0_i32 = arith.constant 0 : i32
    %c0_i32_0 = arith.constant 0 : i32
    return %arg0, %c0_i32 : i32, i32
  }
}

module attributes {stable_mosaic.version = 11 : i64} {
  func.func @_gemm_bias_act_kernel(%arg0: i32, %arg1: memref<8x128xbf16, #tpu.memory_space<vmem>>, %arg2: memref<128x16xbf16, #tpu.memory_space<vmem>>, %arg3: memref<1x16xf32, #tpu.memory_space<vmem>>, %arg4: memref<8x16xbf16, #tpu.memory_space<vmem>>) attributes {dimension_semantics = [#tpu.dimension_semantics<parallel>], iteration_bounds = array<i64: 1>, scalar_prefetch = 0 : i64, scratch_operands = 0 : i64, tpu.core_type = #tpu.core_type<tc>, window_params = [{transform_indices = @transform_0, window_bounds = array<i64: 8, 128>}, {pipeline_mode = #tpu.pipeline_mode<synchronous>, transform_indices = @transform_1, window_bounds = array<i64: 128, 16>}, {pipeline_mode = #tpu.pipeline_mode<synchronous>, transform_indices = @transform_2, window_bounds = array<i64: 1, 16>}, {transform_indices = @transform_3, window_bounds = array<i64: 8, 16>}]} {
    %c0 = arith.constant 0 : index
    %c0_0 = arith.constant 0 : index
    %0 = vector.load %arg1[%c0, %c0_0] : memref<8x128xbf16, #tpu.memory_space<vmem>>, vector<8x128xbf16>
    %c0_1 = arith.constant 0 : index
    %c0_2 = arith.constant 0 : index
    %1 = vector.load %arg2[%c0_1, %c0_2] : memref<128x16xbf16, #tpu.memory_space<vmem>>, vector<128x16xbf16>
    %cst = arith.constant dense<0.000000e+00> : vector<8x16xf32>
    %2 = tpu.matmul %0, %1, %cst {dimension_numbers = #tpu.dot_dimension_numbers<[1], [0], [0], [1], [0, 0, 1, 1], [], []>} : vector<8x128xbf16>, vector<128x16xbf16>, vector<8x16xf32> -> vector<8x16xf32>
    %c0_3 = arith.constant 0 : index
    %c0_4 = arith.constant 0 : index
    %3 = vector.load %arg3[%c0_3, %c0_4] : memref<1x16xf32, #tpu.memory_space<vmem>>, vector<1x16xf32>
    %4 = vector.broadcast %3 : vector<1x16xf32> to vector<8x16xf32>
    %5 = arith.addf %2, %4 : vector<8x16xf32>
    %cst_5 = arith.constant 0.000000e+00 : f32
    %6 = vector.broadcast %cst_5 : f32 to vector<8x16xf32>
    %7 = arith.cmpf ogt, %5, %6 : vector<8x16xf32>
    %cst_6 = arith.constant 2.000000e-01 : f32
    %8 = vector.broadcast %cst_6 : f32 to vector<8x16xf32>
    %9 = arith.mulf %8, %5 : vector<8x16xf32>
    %10 = arith.select %7, %5, %9 : vector<8x16xi1>, vector<8x16xf32>
    %11 = arith.truncf %10 : vector<8x16xf32> to vector<8x16xbf16>
    %c0_7 = arith.constant 0 : index
    %c0_8 = arith.constant 0 : index
    %12 = vector.load %arg4[%c0_7, %c0_8] : memref<8x16xbf16, #tpu.memory_space<vmem>>, vector<8x16xbf16>
    tpu.vector_store %arg4[%c0_7, %c0_8], %11 {strides = array<i32>} : memref<8x16xbf16, #tpu.memory_space<vmem>>, vector<8x16xbf16>,
    return
  }
  func.func @transform_0(%arg0: i32) -> (i32, i32) {
    %c0_i32 = arith.constant 0 : i32
    %c0_i32_0 = arith.constant 0 : i32
    return %arg0, %c0_i32 : i32, i32
  }
  func.func @transform_1(%arg0: i32) -> (i32, i32) {
    %c0_i32 = arith.constant 0 : i32
    %c0_i32_0 = arith.constant 0 : i32
    %c0_i32_1 = arith.constant 0 : i32
    return %c0_i32, %c0_i32_0 : i32, i32
  }
  func.func @transform_2(%arg0: i32) -> (i32, i32) {
    %c0_i32 = arith.constant 0 : i32
    %c0_i32_0 = arith.constant 0 : i32
    %c0_i32_1 = arith.constant 0 : i32
    return %c0_i32, %c0_i32_0 : i32, i32
  }
  func.func @transform_3(%arg0: i32) -> (i32, i32) {
    %c0_i32 = arith.constant 0 : i32
    %c0_i32_0 = arith.constant 0 : i32
    return %arg0, %c0_i32 : i32, i32
  }
}

module attributes {stable_mosaic.version = 11 : i64} {
  func.func @_enc_head_kernel(%arg0: i32, %arg1: memref<2x256xbf16, #tpu.memory_space<vmem>>, %arg2: memref<256x32xbf16, #tpu.memory_space<vmem>>, %arg3: memref<1x32xf32, #tpu.memory_space<vmem>>, %arg4: memref<32x8xf32, #tpu.memory_space<vmem>>, %arg5: memref<1x8xf32, #tpu.memory_space<vmem>>, %arg6: memref<32x8xf32, #tpu.memory_space<vmem>>, %arg7: memref<1x8xf32, #tpu.memory_space<vmem>>, %arg8: memref<2x8xf32, #tpu.memory_space<vmem>>, %arg9: memref<2x8xf32, #tpu.memory_space<vmem>>, %arg10: memref<2x8xf32, #tpu.memory_space<vmem>>, %arg11: memref<2x8xf32, #tpu.memory_space<vmem>>) attributes {dimension_semantics = [#tpu.dimension_semantics<arbitrary>], iteration_bounds = array<i64: 1>, scalar_prefetch = 0 : i64, scratch_operands = 0 : i64, tpu.core_type = #tpu.core_type<tc>, window_params = [{pipeline_mode = #tpu.pipeline_mode<synchronous>, transform_indices = @transform_0, window_bounds = array<i64: 2, 256>}, {pipeline_mode = #tpu.pipeline_mode<synchronous>, transform_indices = @transform_1, window_bounds = array<i64: 256, 32>}, {pipeline_mode = #tpu.pipeline_mode<synchronous>, transform_indices = @transform_2, window_bounds = array<i64: 1, 32>}, {pipeline_mode = #tpu.pipeline_mode<synchronous>, transform_indices = @transform_3, window_bounds = array<i64: 32, 8>}, {pipeline_mode = #tpu.pipeline_mode<synchronous>, transform_indices = @transform_4, window_bounds = array<i64: 1, 8>}, {pipeline_mode = #tpu.pipeline_mode<synchronous>, transform_indices = @transform_5, window_bounds = array<i64: 32, 8>}, {pipeline_mode = #tpu.pipeline_mode<synchronous>, transform_indices = @transform_6, window_bounds = array<i64: 1, 8>}, {pipeline_mode = #tpu.pipeline_mode<synchronous>, transform_indices = @transform_7, window_bounds = array<i64: 2, 8>}, {pipeline_mode = #tpu.pipeline_mode<synchronous>, transform_indices = @transform_8, window_bounds = array<i64: 2, 8>}, {pipeline_mode = #tpu.pipeline_mode<synchronous>, transform_indices = @transform_9, window_bounds = array<i64: 2, 8>}, {pipeline_mode = #tpu.pipeline_mode<synchronous>, transform_indices = @transform_10, window_bounds = array<i64: 2, 8>}]} {
    %c0 = arith.constant 0 : index
    %c0_0 = arith.constant 0 : index
    %0 = vector.load %arg1[%c0, %c0_0] : memref<2x256xbf16, #tpu.memory_space<vmem>>, vector<2x256xbf16>
    %c0_1 = arith.constant 0 : index
    %c0_2 = arith.constant 0 : index
    %1 = vector.load %arg2[%c0_1, %c0_2] : memref<256x32xbf16, #tpu.memory_space<vmem>>, vector<256x32xbf16>
    %cst = arith.constant dense<0.000000e+00> : vector<2x32xf32>
    %2 = tpu.matmul %0, %1, %cst {dimension_numbers = #tpu.dot_dimension_numbers<[1], [0], [0], [1], [0, 0, 1, 1], [], []>} : vector<2x256xbf16>, vector<256x32xbf16>, vector<2x32xf32> -> vector<2x32xf32>
    %c0_3 = arith.constant 0 : index
    %c0_4 = arith.constant 0 : index
    %3 = vector.load %arg3[%c0_3, %c0_4] : memref<1x32xf32, #tpu.memory_space<vmem>>, vector<1x32xf32>
    %4 = vector.broadcast %3 : vector<1x32xf32> to vector<2x32xf32>
    %5 = arith.addf %2, %4 : vector<2x32xf32>
    %cst_5 = arith.constant 0.000000e+00 : f32
    %6 = vector.broadcast %cst_5 : f32 to vector<2x32xf32>
    %7 = arith.cmpf ogt, %5, %6 : vector<2x32xf32>
    %cst_6 = arith.constant 2.000000e-01 : f32
    %8 = vector.broadcast %cst_6 : f32 to vector<2x32xf32>
    %9 = arith.mulf %8, %5 : vector<2x32xf32>
    %10 = arith.select %7, %5, %9 : vector<2x32xi1>, vector<2x32xf32>
    %c0_7 = arith.constant 0 : index
    %c0_8 = arith.constant 0 : index
    %11 = vector.load %arg4[%c0_7, %c0_8] : memref<32x8xf32, #tpu.memory_space<vmem>>, vector<32x8xf32>
    %cst_9 = arith.constant dense<0.000000e+00> : vector<2x8xf32>
    %12 = tpu.matmul %10, %11, %cst_9 {dimension_numbers = #tpu.dot_dimension_numbers<[1], [0], [0], [1], [0, 0, 1, 1], [], []>} : vector<2x32xf32>, vector<32x8xf32>, vector<2x8xf32> -> vector<2x8xf32>
    %c0_10 = arith.constant 0 : index
    %c0_11 = arith.constant 0 : index
    %13 = vector.load %arg5[%c0_10, %c0_11] : memref<1x8xf32, #tpu.memory_space<vmem>>, vector<1x8xf32>
    %14 = vector.broadcast %13 : vector<1x8xf32> to vector<2x8xf32>
    %15 = arith.addf %12, %14 : vector<2x8xf32>
    %c0_12 = arith.constant 0 : index
    %c0_13 = arith.constant 0 : index
    %16 = vector.load %arg6[%c0_12, %c0_13] : memref<32x8xf32, #tpu.memory_space<vmem>>, vector<32x8xf32>
    %cst_14 = arith.constant dense<0.000000e+00> : vector<2x8xf32>
    %17 = tpu.matmul %10, %16, %cst_14 {dimension_numbers = #tpu.dot_dimension_numbers<[1], [0], [0], [1], [0, 0, 1, 1], [], []>} : vector<2x32xf32>, vector<32x8xf32>, vector<2x8xf32> -> vector<2x8xf32>
    %c0_15 = arith.constant 0 : index
    %c0_16 = arith.constant 0 : index
    %18 = vector.load %arg7[%c0_15, %c0_16] : memref<1x8xf32, #tpu.memory_space<vmem>>, vector<1x8xf32>
    %19 = vector.broadcast %18 : vector<1x8xf32> to vector<2x8xf32>
    %20 = arith.addf %17, %19 : vector<2x8xf32>
    %c0_17 = arith.constant 0 : index
    %c0_18 = arith.constant 0 : index
    %21 = vector.load %arg9[%c0_17, %c0_18] : memref<2x8xf32, #tpu.memory_space<vmem>>, vector<2x8xf32>
    tpu.vector_store %arg9[%c0_17, %c0_18], %15 {strides = array<i32>} : memref<2x8xf32, #tpu.memory_space<vmem>>, vector<2x8xf32>,
    %c0_19 = arith.constant 0 : index
    %c0_20 = arith.constant 0 : index
    %22 = vector.load %arg10[%c0_19, %c0_20] : memref<2x8xf32, #tpu.memory_space<vmem>>, vector<2x8xf32>
    tpu.vector_store %arg10[%c0_19, %c0_20], %20 {strides = array<i32>} : memref<2x8xf32, #tpu.memory_space<vmem>>, vector<2x8xf32>,
    %c0_21 = arith.constant 0 : index
    %c0_22 = arith.constant 0 : index
    %23 = vector.load %arg8[%c0_21, %c0_22] : memref<2x8xf32, #tpu.memory_space<vmem>>, vector<2x8xf32>
    %cst_23 = arith.constant 5.000000e-01 : f32
    %24 = vector.broadcast %cst_23 : f32 to vector<2x8xf32>
    %25 = arith.mulf %24, %20 : vector<2x8xf32>
    %26 = math.exp %25 : vector<2x8xf32>
    %27 = arith.mulf %23, %26 : vector<2x8xf32>
    %28 = arith.addf %15, %27 : vector<2x8xf32>
    %c0_24 = arith.constant 0 : index
    %c0_25 = arith.constant 0 : index
    %29 = vector.load %arg11[%c0_24, %c0_25] : memref<2x8xf32, #tpu.memory_space<vmem>>, vector<2x8xf32>
    tpu.vector_store %arg11[%c0_24, %c0_25], %28 {strides = array<i32>} : memref<2x8xf32, #tpu.memory_space<vmem>>, vector<2x8xf32>,
    return
  }
  func.func @transform_0(%arg0: i32) -> (i32, i32) {
    %c0_i32 = arith.constant 0 : i32
    %c0_i32_0 = arith.constant 0 : i32
    %c0_i32_1 = arith.constant 0 : i32
    return %c0_i32, %c0_i32_0 : i32, i32
  }
  func.func @transform_1(%arg0: i32) -> (i32, i32) {
    %c0_i32 = arith.constant 0 : i32
    %c0_i32_0 = arith.constant 0 : i32
    %c0_i32_1 = arith.constant 0 : i32
    return %c0_i32, %c0_i32_0 : i32, i32
  }
  func.func @transform_2(%arg0: i32) -> (i32, i32) {
    %c0_i32 = arith.constant 0 : i32
    %c0_i32_0 = arith.constant 0 : i32
    %c0_i32_1 = arith.constant 0 : i32
    return %c0_i32, %c0_i32_0 : i32, i32
  }
  func.func @transform_3(%arg0: i32) -> (i32, i32) {
    %c0_i32 = arith.constant 0 : i32
    %c0_i32_0 = arith.constant 0 : i32
    %c0_i32_1 = arith.constant 0 : i32
    return %c0_i32, %c0_i32_0 : i32, i32
  }
  func.func @transform_4(%arg0: i32) -> (i32, i32) {
    %c0_i32 = arith.constant 0 : i32
    %c0_i32_0 = arith.constant 0 : i32
    %c0_i32_1 = arith.constant 0 : i32
    return %c0_i32, %c0_i32_0 : i32, i32
  }
  func.func @transform_5(%arg0: i32) -> (i32, i32) {
    %c0_i32 = arith.constant 0 : i32
    %c0_i32_0 = arith.constant 0 : i32
    %c0_i32_1 = arith.constant 0 : i32
    return %c0_i32, %c0_i32_0 : i32, i32
  }
  func.func @transform_6(%arg0: i32) -> (i32, i32) {
    %c0_i32 = arith.constant 0 : i32
    %c0_i32_0 = arith.constant 0 : i32
    %c0_i32_1 = arith.constant 0 : i32
    return %c0_i32, %c0_i32_0 : i32, i32
  }
  func.func @transform_7(%arg0: i32) -> (i32, i32) {
    %c0_i32 = arith.constant 0 : i32
    %c0_i32_0 = arith.constant 0 : i32
    %c0_i32_1 = arith.constant 0 : i32
    return %c0_i32, %c0_i32_0 : i32, i32
  }
  func.func @transform_8(%arg0: i32) -> (i32, i32) {
    %c0_i32 = arith.constant 0 : i32
    %c0_i32_0 = arith.constant 0 : i32
    %c0_i32_1 = arith.constant 0 : i32
    return %c0_i32, %c0_i32_0 : i32, i32
  }
  func.func @transform_9(%arg0: i32) -> (i32, i32) {
    %c0_i32 = arith.constant 0 : i32
    %c0_i32_0 = arith.constant 0 : i32
    %c0_i32_1 = arith.constant 0 : i32
    return %c0_i32, %c0_i32_0 : i32, i32
  }
  func.func @transform_10(%arg0: i32) -> (i32, i32) {
    %c0_i32 = arith.constant 0 : i32
    %c0_i32_0 = arith.constant 0 : i32
    %c0_i32_1 = arith.constant 0 : i32
    return %c0_i32, %c0_i32_0 : i32, i32
  }
}

module attributes {stable_mosaic.version = 11 : i64} {
  func.func @_gemm_bias_act_kernel(%arg0: i32, %arg1: memref<2x72xbf16, #tpu.memory_space<vmem>>, %arg2: memref<72x128xbf16, #tpu.memory_space<vmem>>, %arg3: memref<1x128xf32, #tpu.memory_space<vmem>>, %arg4: memref<2x128xbf16, #tpu.memory_space<vmem>>) attributes {dimension_semantics = [#tpu.dimension_semantics<parallel>], iteration_bounds = array<i64: 1>, scalar_prefetch = 0 : i64, scratch_operands = 0 : i64, tpu.core_type = #tpu.core_type<tc>, window_params = [{transform_indices = @transform_0, window_bounds = array<i64: 2, 72>}, {pipeline_mode = #tpu.pipeline_mode<synchronous>, transform_indices = @transform_1, window_bounds = array<i64: 72, 128>}, {pipeline_mode = #tpu.pipeline_mode<synchronous>, transform_indices = @transform_2, window_bounds = array<i64: 1, 128>}, {transform_indices = @transform_3, window_bounds = array<i64: 2, 128>}]} {
    %c0 = arith.constant 0 : index
    %c0_0 = arith.constant 0 : index
    %0 = vector.load %arg1[%c0, %c0_0] : memref<2x72xbf16, #tpu.memory_space<vmem>>, vector<2x72xbf16>
    %c0_1 = arith.constant 0 : index
    %c0_2 = arith.constant 0 : index
    %1 = vector.load %arg2[%c0_1, %c0_2] : memref<72x128xbf16, #tpu.memory_space<vmem>>, vector<72x128xbf16>
    %cst = arith.constant dense<0.000000e+00> : vector<2x128xf32>
    %2 = tpu.matmul %0, %1, %cst {dimension_numbers = #tpu.dot_dimension_numbers<[1], [0], [0], [1], [0, 0, 1, 1], [], []>} : vector<2x72xbf16>, vector<72x128xbf16>, vector<2x128xf32> -> vector<2x128xf32>
    %c0_3 = arith.constant 0 : index
    %c0_4 = arith.constant 0 : index
    %3 = vector.load %arg3[%c0_3, %c0_4] : memref<1x128xf32, #tpu.memory_space<vmem>>, vector<1x128xf32>
    %4 = vector.broadcast %3 : vector<1x128xf32> to vector<2x128xf32>
    %5 = arith.addf %2, %4 : vector<2x128xf32>
    %cst_5 = arith.constant 0.000000e+00 : f32
    %6 = vector.broadcast %cst_5 : f32 to vector<2x128xf32>
    %7 = arith.maximumf %5, %6 : vector<2x128xf32>
    %8 = arith.truncf %7 : vector<2x128xf32> to vector<2x128xbf16>
    %c0_6 = arith.constant 0 : index
    %c0_7 = arith.constant 0 : index
    %9 = vector.load %arg4[%c0_6, %c0_7] : memref<2x128xbf16, #tpu.memory_space<vmem>>, vector<2x128xbf16>
    tpu.vector_store %arg4[%c0_6, %c0_7], %8 {strides = array<i32>} : memref<2x128xbf16, #tpu.memory_space<vmem>>, vector<2x128xbf16>,
    return
  }
  func.func @transform_0(%arg0: i32) -> (i32, i32) {
    %c0_i32 = arith.constant 0 : i32
    %c0_i32_0 = arith.constant 0 : i32
    return %arg0, %c0_i32 : i32, i32
  }
  func.func @transform_1(%arg0: i32) -> (i32, i32) {
    %c0_i32 = arith.constant 0 : i32
    %c0_i32_0 = arith.constant 0 : i32
    %c0_i32_1 = arith.constant 0 : i32
    return %c0_i32, %c0_i32_0 : i32, i32
  }
  func.func @transform_2(%arg0: i32) -> (i32, i32) {
    %c0_i32 = arith.constant 0 : i32
    %c0_i32_0 = arith.constant 0 : i32
    %c0_i32_1 = arith.constant 0 : i32
    return %c0_i32, %c0_i32_0 : i32, i32
  }
  func.func @transform_3(%arg0: i32) -> (i32, i32) {
    %c0_i32 = arith.constant 0 : i32
    %c0_i32_0 = arith.constant 0 : i32
    return %arg0, %c0_i32 : i32, i32
  }
}

module attributes {stable_mosaic.version = 11 : i64} {
  func.func @_gemm_bias_act_kernel(%arg0: i32, %arg1: memref<8x288xbf16, #tpu.memory_space<vmem>>, %arg2: memref<288x64xbf16, #tpu.memory_space<vmem>>, %arg3: memref<1x64xf32, #tpu.memory_space<vmem>>, %arg4: memref<8x64xbf16, #tpu.memory_space<vmem>>) attributes {dimension_semantics = [#tpu.dimension_semantics<parallel>], iteration_bounds = array<i64: 1>, scalar_prefetch = 0 : i64, scratch_operands = 0 : i64, tpu.core_type = #tpu.core_type<tc>, window_params = [{transform_indices = @transform_0, window_bounds = array<i64: 8, 288>}, {pipeline_mode = #tpu.pipeline_mode<synchronous>, transform_indices = @transform_1, window_bounds = array<i64: 288, 64>}, {pipeline_mode = #tpu.pipeline_mode<synchronous>, transform_indices = @transform_2, window_bounds = array<i64: 1, 64>}, {transform_indices = @transform_3, window_bounds = array<i64: 8, 64>}]} {
    %c0 = arith.constant 0 : index
    %c0_0 = arith.constant 0 : index
    %0 = vector.load %arg1[%c0, %c0_0] : memref<8x288xbf16, #tpu.memory_space<vmem>>, vector<8x288xbf16>
    %c0_1 = arith.constant 0 : index
    %c0_2 = arith.constant 0 : index
    %1 = vector.load %arg2[%c0_1, %c0_2] : memref<288x64xbf16, #tpu.memory_space<vmem>>, vector<288x64xbf16>
    %cst = arith.constant dense<0.000000e+00> : vector<8x64xf32>
    %2 = tpu.matmul %0, %1, %cst {dimension_numbers = #tpu.dot_dimension_numbers<[1], [0], [0], [1], [0, 0, 1, 1], [], []>} : vector<8x288xbf16>, vector<288x64xbf16>, vector<8x64xf32> -> vector<8x64xf32>
    %c0_3 = arith.constant 0 : index
    %c0_4 = arith.constant 0 : index
    %3 = vector.load %arg3[%c0_3, %c0_4] : memref<1x64xf32, #tpu.memory_space<vmem>>, vector<1x64xf32>
    %4 = vector.broadcast %3 : vector<1x64xf32> to vector<8x64xf32>
    %5 = arith.addf %2, %4 : vector<8x64xf32>
    %cst_5 = arith.constant 0.000000e+00 : f32
    %6 = vector.broadcast %cst_5 : f32 to vector<8x64xf32>
    %7 = arith.maximumf %5, %6 : vector<8x64xf32>
    %8 = arith.truncf %7 : vector<8x64xf32> to vector<8x64xbf16>
    %c0_6 = arith.constant 0 : index
    %c0_7 = arith.constant 0 : index
    %9 = vector.load %arg4[%c0_6, %c0_7] : memref<8x64xbf16, #tpu.memory_space<vmem>>, vector<8x64xbf16>
    tpu.vector_store %arg4[%c0_6, %c0_7], %8 {strides = array<i32>} : memref<8x64xbf16, #tpu.memory_space<vmem>>, vector<8x64xbf16>,
    return
  }
  func.func @transform_0(%arg0: i32) -> (i32, i32) {
    %c0_i32 = arith.constant 0 : i32
    %c0_i32_0 = arith.constant 0 : i32
    return %arg0, %c0_i32 : i32, i32
  }
  func.func @transform_1(%arg0: i32) -> (i32, i32) {
    %c0_i32 = arith.constant 0 : i32
    %c0_i32_0 = arith.constant 0 : i32
    %c0_i32_1 = arith.constant 0 : i32
    return %c0_i32, %c0_i32_0 : i32, i32
  }
  func.func @transform_2(%arg0: i32) -> (i32, i32) {
    %c0_i32 = arith.constant 0 : i32
    %c0_i32_0 = arith.constant 0 : i32
    %c0_i32_1 = arith.constant 0 : i32
    return %c0_i32, %c0_i32_0 : i32, i32
  }
  func.func @transform_3(%arg0: i32) -> (i32, i32) {
    %c0_i32 = arith.constant 0 : i32
    %c0_i32_0 = arith.constant 0 : i32
    return %arg0, %c0_i32 : i32, i32
  }
}

module attributes {stable_mosaic.version = 11 : i64} {
  func.func @_gemm_bias_act_kernel(%arg0: i32, %arg1: memref<32x144xbf16, #tpu.memory_space<vmem>>, %arg2: memref<144x32xbf16, #tpu.memory_space<vmem>>, %arg3: memref<1x32xf32, #tpu.memory_space<vmem>>, %arg4: memref<32x32xbf16, #tpu.memory_space<vmem>>) attributes {dimension_semantics = [#tpu.dimension_semantics<parallel>], iteration_bounds = array<i64: 1>, scalar_prefetch = 0 : i64, scratch_operands = 0 : i64, tpu.core_type = #tpu.core_type<tc>, window_params = [{transform_indices = @transform_0, window_bounds = array<i64: 32, 144>}, {pipeline_mode = #tpu.pipeline_mode<synchronous>, transform_indices = @transform_1, window_bounds = array<i64: 144, 32>}, {pipeline_mode = #tpu.pipeline_mode<synchronous>, transform_indices = @transform_2, window_bounds = array<i64: 1, 32>}, {transform_indices = @transform_3, window_bounds = array<i64: 32, 32>}]} {
    %c0 = arith.constant 0 : index
    %c0_0 = arith.constant 0 : index
    %0 = vector.load %arg1[%c0, %c0_0] : memref<32x144xbf16, #tpu.memory_space<vmem>>, vector<32x144xbf16>
    %c0_1 = arith.constant 0 : index
    %c0_2 = arith.constant 0 : index
    %1 = vector.load %arg2[%c0_1, %c0_2] : memref<144x32xbf16, #tpu.memory_space<vmem>>, vector<144x32xbf16>
    %cst = arith.constant dense<0.000000e+00> : vector<32x32xf32>
    %2 = tpu.matmul %0, %1, %cst {dimension_numbers = #tpu.dot_dimension_numbers<[1], [0], [0], [1], [0, 0, 1, 1], [], []>} : vector<32x144xbf16>, vector<144x32xbf16>, vector<32x32xf32> -> vector<32x32xf32>
    %c0_3 = arith.constant 0 : index
    %c0_4 = arith.constant 0 : index
    %3 = vector.load %arg3[%c0_3, %c0_4] : memref<1x32xf32, #tpu.memory_space<vmem>>, vector<1x32xf32>
    %4 = vector.broadcast %3 : vector<1x32xf32> to vector<32x32xf32>
    %5 = arith.addf %2, %4 : vector<32x32xf32>
    %cst_5 = arith.constant 0.000000e+00 : f32
    %6 = vector.broadcast %cst_5 : f32 to vector<32x32xf32>
    %7 = arith.maximumf %5, %6 : vector<32x32xf32>
    %8 = arith.truncf %7 : vector<32x32xf32> to vector<32x32xbf16>
    %c0_6 = arith.constant 0 : index
    %c0_7 = arith.constant 0 : index
    %9 = vector.load %arg4[%c0_6, %c0_7] : memref<32x32xbf16, #tpu.memory_space<vmem>>, vector<32x32xbf16>
    tpu.vector_store %arg4[%c0_6, %c0_7], %8 {strides = array<i32>} : memref<32x32xbf16, #tpu.memory_space<vmem>>, vector<32x32xbf16>,
    return
  }
  func.func @transform_0(%arg0: i32) -> (i32, i32) {
    %c0_i32 = arith.constant 0 : i32
    %c0_i32_0 = arith.constant 0 : i32
    return %arg0, %c0_i32 : i32, i32
  }
  func.func @transform_1(%arg0: i32) -> (i32, i32) {
    %c0_i32 = arith.constant 0 : i32
    %c0_i32_0 = arith.constant 0 : i32
    %c0_i32_1 = arith.constant 0 : i32
    return %c0_i32, %c0_i32_0 : i32, i32
  }
  func.func @transform_2(%arg0: i32) -> (i32, i32) {
    %c0_i32 = arith.constant 0 : i32
    %c0_i32_0 = arith.constant 0 : i32
    %c0_i32_1 = arith.constant 0 : i32
    return %c0_i32, %c0_i32_0 : i32, i32
  }
  func.func @transform_3(%arg0: i32) -> (i32, i32) {
    %c0_i32 = arith.constant 0 : i32
    %c0_i32_0 = arith.constant 0 : i32
    return %arg0, %c0_i32 : i32, i32
  }
}

module attributes {stable_mosaic.version = 11 : i64} {
  func.func @_gemm_bias_act_kernel(%arg0: i32, %arg1: memref<128x72xbf16, #tpu.memory_space<vmem>>, %arg2: memref<72x16xbf16, #tpu.memory_space<vmem>>, %arg3: memref<1x16xf32, #tpu.memory_space<vmem>>, %arg4: memref<128x16xbf16, #tpu.memory_space<vmem>>) attributes {dimension_semantics = [#tpu.dimension_semantics<parallel>], iteration_bounds = array<i64: 1>, scalar_prefetch = 0 : i64, scratch_operands = 0 : i64, tpu.core_type = #tpu.core_type<tc>, window_params = [{transform_indices = @transform_0, window_bounds = array<i64: 128, 72>}, {pipeline_mode = #tpu.pipeline_mode<synchronous>, transform_indices = @transform_1, window_bounds = array<i64: 72, 16>}, {pipeline_mode = #tpu.pipeline_mode<synchronous>, transform_indices = @transform_2, window_bounds = array<i64: 1, 16>}, {transform_indices = @transform_3, window_bounds = array<i64: 128, 16>}]} {
    %c0 = arith.constant 0 : index
    %c0_0 = arith.constant 0 : index
    %0 = vector.load %arg1[%c0, %c0_0] : memref<128x72xbf16, #tpu.memory_space<vmem>>, vector<128x72xbf16>
    %c0_1 = arith.constant 0 : index
    %c0_2 = arith.constant 0 : index
    %1 = vector.load %arg2[%c0_1, %c0_2] : memref<72x16xbf16, #tpu.memory_space<vmem>>, vector<72x16xbf16>
    %cst = arith.constant dense<0.000000e+00> : vector<128x16xf32>
    %2 = tpu.matmul %0, %1, %cst {dimension_numbers = #tpu.dot_dimension_numbers<[1], [0], [0], [1], [0, 0, 1, 1], [], []>} : vector<128x72xbf16>, vector<72x16xbf16>, vector<128x16xf32> -> vector<128x16xf32>
    %c0_3 = arith.constant 0 : index
    %c0_4 = arith.constant 0 : index
    %3 = vector.load %arg3[%c0_3, %c0_4] : memref<1x16xf32, #tpu.memory_space<vmem>>, vector<1x16xf32>
    %4 = vector.broadcast %3 : vector<1x16xf32> to vector<128x16xf32>
    %5 = arith.addf %2, %4 : vector<128x16xf32>
    %cst_5 = arith.constant 0.000000e+00 : f32
    %6 = vector.broadcast %cst_5 : f32 to vector<128x16xf32>
    %7 = arith.maximumf %5, %6 : vector<128x16xf32>
    %8 = arith.truncf %7 : vector<128x16xf32> to vector<128x16xbf16>
    %c0_6 = arith.constant 0 : index
    %c0_7 = arith.constant 0 : index
    %9 = vector.load %arg4[%c0_6, %c0_7] : memref<128x16xbf16, #tpu.memory_space<vmem>>, vector<128x16xbf16>
    tpu.vector_store %arg4[%c0_6, %c0_7], %8 {strides = array<i32>} : memref<128x16xbf16, #tpu.memory_space<vmem>>, vector<128x16xbf16>,
    return
  }
  func.func @transform_0(%arg0: i32) -> (i32, i32) {
    %c0_i32 = arith.constant 0 : i32
    %c0_i32_0 = arith.constant 0 : i32
    return %arg0, %c0_i32 : i32, i32
  }
  func.func @transform_1(%arg0: i32) -> (i32, i32) {
    %c0_i32 = arith.constant 0 : i32
    %c0_i32_0 = arith.constant 0 : i32
    %c0_i32_1 = arith.constant 0 : i32
    return %c0_i32, %c0_i32_0 : i32, i32
  }
  func.func @transform_2(%arg0: i32) -> (i32, i32) {
    %c0_i32 = arith.constant 0 : i32
    %c0_i32_0 = arith.constant 0 : i32
    %c0_i32_1 = arith.constant 0 : i32
    return %c0_i32, %c0_i32_0 : i32, i32
  }
  func.func @transform_3(%arg0: i32) -> (i32, i32) {
    %c0_i32 = arith.constant 0 : i32
    %c0_i32_0 = arith.constant 0 : i32
    return %arg0, %c0_i32 : i32, i32
  }
}

module attributes {stable_mosaic.version = 11 : i64} {
  func.func @_dec_tail_kernel(%arg0: i32, %arg1: memref<256x36xbf16, #tpu.memory_space<vmem>>, %arg2: memref<36x8xbf16, #tpu.memory_space<vmem>>, %arg3: memref<1x8xf32, #tpu.memory_space<vmem>>, %arg4: memref<8x16xf32, #tpu.memory_space<vmem>>, %arg5: memref<256x16xf32, #tpu.memory_space<vmem>>) attributes {dimension_semantics = [#tpu.dimension_semantics<parallel>], iteration_bounds = array<i64: 2>, scalar_prefetch = 0 : i64, scratch_operands = 0 : i64, tpu.core_type = #tpu.core_type<tc>, window_params = [{transform_indices = @transform_0, window_bounds = array<i64: 256, 36>}, {pipeline_mode = #tpu.pipeline_mode<synchronous>, transform_indices = @transform_1, window_bounds = array<i64: 36, 8>}, {pipeline_mode = #tpu.pipeline_mode<synchronous>, transform_indices = @transform_2, window_bounds = array<i64: 1, 8>}, {pipeline_mode = #tpu.pipeline_mode<synchronous>, transform_indices = @transform_3, window_bounds = array<i64: 8, 16>}, {transform_indices = @transform_4, window_bounds = array<i64: 256, 16>}]} {
    %c0 = arith.constant 0 : index
    %c0_0 = arith.constant 0 : index
    %0 = vector.load %arg1[%c0, %c0_0] : memref<256x36xbf16, #tpu.memory_space<vmem>>, vector<256x36xbf16>
    %c0_1 = arith.constant 0 : index
    %c0_2 = arith.constant 0 : index
    %1 = vector.load %arg2[%c0_1, %c0_2] : memref<36x8xbf16, #tpu.memory_space<vmem>>, vector<36x8xbf16>
    %cst = arith.constant dense<0.000000e+00> : vector<256x8xf32>
    %2 = tpu.matmul %0, %1, %cst {dimension_numbers = #tpu.dot_dimension_numbers<[1], [0], [0], [1], [0, 0, 1, 1], [], []>} : vector<256x36xbf16>, vector<36x8xbf16>, vector<256x8xf32> -> vector<256x8xf32>
    %c0_3 = arith.constant 0 : index
    %c0_4 = arith.constant 0 : index
    %3 = vector.load %arg3[%c0_3, %c0_4] : memref<1x8xf32, #tpu.memory_space<vmem>>, vector<1x8xf32>
    %4 = vector.broadcast %3 : vector<1x8xf32> to vector<256x8xf32>
    %5 = arith.addf %2, %4 : vector<256x8xf32>
    %cst_5 = arith.constant 0.000000e+00 : f32
    %6 = vector.broadcast %cst_5 : f32 to vector<256x8xf32>
    %7 = arith.maximumf %5, %6 : vector<256x8xf32>
    %c0_6 = arith.constant 0 : index
    %c0_7 = arith.constant 0 : index
    %8 = vector.load %arg4[%c0_6, %c0_7] : memref<8x16xf32, #tpu.memory_space<vmem>>, vector<8x16xf32>
    %cst_8 = arith.constant dense<0.000000e+00> : vector<256x16xf32>
    %9 = tpu.matmul %7, %8, %cst_8 {dimension_numbers = #tpu.dot_dimension_numbers<[1], [0], [0], [1], [0, 0, 1, 1], [], []>} : vector<256x8xf32>, vector<8x16xf32>, vector<256x16xf32> -> vector<256x16xf32>
    %10 = math.tanh %9 : vector<256x16xf32>
    %c0_9 = arith.constant 0 : index
    %c0_10 = arith.constant 0 : index
    %11 = vector.load %arg5[%c0_9, %c0_10] : memref<256x16xf32, #tpu.memory_space<vmem>>, vector<256x16xf32>
    tpu.vector_store %arg5[%c0_9, %c0_10], %10 {strides = array<i32>} : memref<256x16xf32, #tpu.memory_space<vmem>>, vector<256x16xf32>,
    return
  }
  func.func @transform_0(%arg0: i32) -> (i32, i32) {
    %c0_i32 = arith.constant 0 : i32
    %c0_i32_0 = arith.constant 0 : i32
    return %arg0, %c0_i32 : i32, i32
  }
  func.func @transform_1(%arg0: i32) -> (i32, i32) {
    %c0_i32 = arith.constant 0 : i32
    %c0_i32_0 = arith.constant 0 : i32
    %c0_i32_1 = arith.constant 0 : i32
    return %c0_i32, %c0_i32_0 : i32, i32
  }
  func.func @transform_2(%arg0: i32) -> (i32, i32) {
    %c0_i32 = arith.constant 0 : i32
    %c0_i32_0 = arith.constant 0 : i32
    %c0_i32_1 = arith.constant 0 : i32
    return %c0_i32, %c0_i32_0 : i32, i32
  }
  func.func @transform_3(%arg0: i32) -> (i32, i32) {
    %c0_i32 = arith.constant 0 : i32
    %c0_i32_0 = arith.constant 0 : i32
    %c0_i32_1 = arith.constant 0 : i32
    return %c0_i32, %c0_i32_0 : i32, i32
  }
  func.func @transform_4(%arg0: i32) -> (i32, i32) {
    %c0_i32 = arith.constant 0 : i32
    %c0_i32_0 = arith.constant 0 : i32
    return %arg0, %c0_i32 : i32, i32
  }
}

</mosaic_0001>

<llo_original>
// kernel: vae_forward.10
$region0: #{vae_forward.10}
  #allocation0 [shape = 'u32[]', space=smem, size = 0x4, offset = 0x4, fixed_abs, tag = 'smem constant byte address 0x4 - core index']
  #allocation1 [shape = 'u32[144,128]{1,0:T(1,128)}', space=vmem, size = 0x12000, scoped, tag = 'internal scratch']
  %s0 = inlined_call_operand.vmem [shape: bf16[512,64], index: 0, kind: input, shape index: {}]
  %s1 = inlined_call_operand.vmem [shape: bf16[64,2], index: 1, kind: input, shape index: {}]
  %s2 = inlined_call_operand.vmem [shape: f32[1,2], index: 2, kind: input, shape index: {}]
  %s3 = inlined_call_operand.vmem [shape: bf16[512,2], index: 3, kind: output, shape index: {}]
  %s4 = sld [smem:[#allocation0]]
  $region45: #{vae_forward.10} parent=0
    _
  %s6 = ssub.s32 1, %s4
  %s7 = scalar_select 0, %s6, %s4
  loop: start=0, step=1, limit=4
  $region2: #{vae_forward.10} parent=0 // loop_pre_header
    _
  $region3: #{vae_forward.10} parent=0 // loop_header
    %s9 = sphi 0, %s13
    %p10 = scmp.ge.s32.totalorder %s9, 4
    %s19 = sphi 0, %s21
    %s22 = sphi 0, %s19
    %s23 = sphi 0, %s22
    %s39 = sphi 0, %s23
    %s43 = sphi 0, %s43
    %s45 = sphi 0, %s43
    %s46 = sphi 0, %s45
    %s60 = sphi 0, %s46
    %s64 = sphi 0, %s64
    %s66 = sphi 0, %s64
    %s67 = sphi 0, %s66
    %s81 = sphi 0, %s67
    %s87 = sphi 0, %s89
    %s90 = sphi 0, %s87
    %s91 = sphi 0, %s90
    %s107 = sphi 0, %s91
  $region4: #{vae_forward.10} parent=0 // loop_header_branch
    %12 = sbr.rel (%p10) target = $region8
  $region5: #{vae_forward.10} parent=0 // loop_body
    %s14 = ssub.s32 %s9, 1
    %s15 = ssub.s32 %s9, 2
    %s16 = sadd.s32 %s9, 1
    %s17 = ssub.s32 %s9, %s16
    %p18 = scmp.eq.s32.totalorder %s17, 0
    %s20 = sadd.s32 %s19, 1
    %s21 = scalar_select %p18, %s19, %s20
    %p24 = pneg %p18
    %p25 = scmp.eq.s32.totalorder %s9, 1
    %p26 = por %p24, %p25
    %p27 = scmp.ne.s32.totalorder %s19, %s22
    %p28 = scmp.eq.s32.totalorder %s9, 0
    %p29 = por %p27, %p28
    %p30 = scmp.ne.s32.totalorder %s19, %s22
    %p31 = scmp.eq.s32.totalorder %s14, 1
    %p32 = por %p30, %p31
    %p33 = scmp.ne.s32.totalorder %s22, %s23
    %p34 = scmp.eq.s32.totalorder %s14, 0
    %p35 = por %p33, %p34
    %p36 = scmp.ne.s32.totalorder %s22, %s23
    %p37 = scmp.eq.s32.totalorder %s15, 1
    %p38 = por %p36, %p37
    %p40 = scmp.ne.s32.totalorder %s23, %s39
    %p41 = scmp.eq.s32.totalorder %s15, 0
    %p42 = por %p40, %p41
    %s44 = sadd.s32 %s43, 1
    %p47 = scmp.eq.s32.totalorder %s9, 1
    %p48 = scmp.ne.s32.totalorder %s43, %s45
    %p49 = scmp.eq.s32.totalorder %s9, 0
    %p50 = por %p48, %p49
    %p51 = scmp.ne.s32.totalorder %s43, %s45
    %p52 = scmp.eq.s32.totalorder %s14, 1
    %p53 = por %p51, %p52
    %p54 = scmp.ne.s32.totalorder %s45, %s46
    %p55 = scmp.eq.s32.totalorder %s14, 0
    %p56 = por %p54, %p55
    %p57 = scmp.ne.s32.totalorder %s45, %s46
    %p58 = scmp.eq.s32.totalorder %s15, 1
    %p59 = por %p57, %p58
    %p61 = scmp.ne.s32.totalorder %s46, %s60
    %p62 = scmp.eq.s32.totalorder %s15, 0
    %p63 = por %p61, %p62
    %s65 = sadd.s32 %s64, 1
    %p68 = scmp.eq.s32.totalorder %s9, 1
    %p69 = scmp.ne.s32.totalorder %s64, %s66
    %p70 = scmp.eq.s32.totalorder %s9, 0
    %p71 = por %p69, %p70
    %p72 = scmp.ne.s32.totalorder %s64, %s66
    %p73 = scmp.eq.s32.totalorder %s14, 1
    %p74 = por %p72, %p73
    %p75 = scmp.ne.s32.totalorder %s66, %s67
    %p76 = scmp.eq.s32.totalorder %s14, 0
    %p77 = por %p75, %p76
    %p78 = scmp.ne.s32.totalorder %s66, %s67
    %p79 = scmp.eq.s32.totalorder %s15, 1
    %p80 = por %p78, %p79
    %p82 = scmp.ne.s32.totalorder %s67, %s81
    %p83 = scmp.eq.s32.totalorder %s15, 0
    %p84 = por %p82, %p83
    %s85 = ssub.s32 %s9, %s16
    %p86 = scmp.eq.s32.totalorder %s85, 0
    %s88 = sadd.s32 %s87, 1
    %s89 = scalar_select %p86, %s87, %s88
    %p92 = pneg %p86
    %p93 = scmp.eq.s32.totalorder %s9, 1
    %p94 = por %p92, %p93
    %p95 = scmp.ne.s32.totalorder %s87, %s90
    %p96 = scmp.eq.s32.totalorder %s9, 0
    %p97 = por %p95, %p96
    %p98 = scmp.ne.s32.totalorder %s87, %s90
    %p99 = scmp.eq.s32.totalorder %s14, 1
    %p100 = por %p98, %p99
    %p101 = scmp.ne.s32.totalorder %s90, %s91
    %p102 = scmp.eq.s32.totalorder %s14, 0
    %p103 = por %p101, %p102
    %p104 = scmp.ne.s32.totalorder %s90, %s91
    %p105 = scmp.eq.s32.totalorder %s15, 1
    %p106 = por %p104, %p105
    %p108 = scmp.ne.s32.totalorder %s91, %s107
    %p109 = scmp.eq.s32.totalorder %s15, 0
    %p110 = por %p108, %p109
    %p111 = scmp.le.s32.totalorder 1, %s9
    %p112 = scmp.lt.s32.totalorder %s9, 3
    %p113 = pnand %p111, %p112
    %p114 = pneg %p113
    // Predicated region
    $region9: #{vae_forward.10} parent=5 // pred_check
      _
    $region10: #{vae_forward.10} parent=5 // pred_check_branch
      %116 = sbr.rel (%p113) target = $region12
    $region11: #{vae_forward.10} parent=5 // pred_region
      %s117 = ssub.s32 %s9, 1
      // Predicated region
      $region13: #{vae_forward.10} parent=11 // pred_check
        %p118 = pneg %p56
      $region14: #{vae_forward.10} parent=11 // pred_check_branch
        %120 = sbr.rel (%p118) target = $region16
      $region15: #{vae_forward.10} parent=11 // pred_region
        _
      $region16: #{vae_forward.10} parent=11 // pred_fallthru
        _
      // Predicated region
      $region17: #{vae_forward.10} parent=11 // pred_check
        %p121 = pneg %p77
      $region18: #{vae_forward.10} parent=11 // pred_check_branch
        %123 = sbr.rel (%p121) target = $region20
      $region19: #{vae_forward.10} parent=11 // pred_region
        _
      $region20: #{vae_forward.10} parent=11 // pred_fallthru
        _
    $region12: #{vae_forward.10} parent=5 // pred_fallthru
      _
    %p124 = scmp.lt.s32.totalorder %s9, 2
    // Predicated region
    $region21: #{vae_forward.10} parent=5 // pred_check
      %p125 = pneg %p124
    $region22: #{vae_forward.10} parent=5 // pred_check_branch
      %127 = sbr.rel (%p125) target = $region24
    $region23: #{vae_forward.10} parent=5 // pred_region
      // Predicated region
      $region25: #{vae_forward.10} parent=23 // pred_check
        %p128 = pneg %p29
      $region26: #{vae_forward.10} parent=23 // pred_check_branch
        %130 = sbr.rel (%p128) target = $region28
      $region27: #{vae_forward.10} parent=23 // pred_region
        %s131 = smul.u32 32, %s9
        %p132 = scmp.lt.s32.totalorder %s131, 63
        %s133 = scalar_select %p132, %s131, 63
        %s134 = smul.addr %s133, 4
        %s135 = scalar_lea.vmem %s0, %s134
        %s136 = smul.u32 32, %s9
      $region28: #{vae_forward.10} parent=23 // pred_fallthru
        _
    $region24: #{vae_forward.10} parent=5 // pred_fallthru
      _
    %p137 = scmp.le.s32.totalorder 1, %s9
    %p138 = scmp.lt.s32.totalorder %s9, 3
    %p139 = pnand %p137, %p138
    %p140 = pneg %p139
    // Predicated region
    $region29: #{vae_forward.10} parent=5 // pred_check
      _
    $region30: #{vae_forward.10} parent=5 // pred_check_branch
      %142 = sbr.rel (%p139) target = $region32
    $region31: #{vae_forward.10} parent=5 // pred_region
      %s143 = ssub.s32 %s9, 1
      %s144 = smul.u32 32, %s14
      %p145 = scmp.lt.s32.totalorder %s144, 63
      %s146 = scalar_select %p145, %s144, 63
      %s147 = smul.addr %s146, 4
      %s148 = scalar_lea.vmem %s0, %s147
      %p149 = pneg %p35
      %p150 = pneg %p32
      %p151 = pneg %p56
      %p152 = pneg %p53
      %p153 = pneg %p77
      %p154 = pneg %p74
      %p155 = pneg %p103
      %p156 = pneg %p100
      %s157 = smul.u32 32, %s14
      %p158 = scmp.lt.s32.totalorder %s157, 63
      %s159 = scalar_select %p158, %s157, 63
      %s160 = smul.addr %s159, 4
      %s161 = scalar_lea.vmem %s3, %s160
      %s162 = smul.u32 32, %s14
      %p163 = scmp.lt.s32.totalorder %s162, 63
      %s164 = scalar_select %p163, %s162, 63
      %s165 = smul.addr %s164, 4
      %s166 = scalar_lea.vmem %s0, %s165
      %s167 = smul.u32 32, %s14
      %s168 = smul.u32 32, %s14
      %p169 = scmp.lt.s32.totalorder %s168, 63
      %s170 = scalar_select %p169, %s168, 63
      %s171 = smul.addr %s170, 4
      %s172 = scalar_lea.vmem %s3, %s171
      %s173 = smul.u32 32, %s14
      %v175 = vld [vmem:[%s166] sm:$0xf]
      %v176 = vld [vmem:[%s166 + $0x4] sm:$0xf]
      %v177 = vld [vmem:[%s166 + $0x8] sm:$0xf]
      %v178 = vld [vmem:[%s166 + $0xc] sm:$0xf]
      %v179 = vld [vmem:[%s166 + $0x10] sm:$0xf]
      %v180 = vld [vmem:[%s166 + $0x14] sm:$0xf]
      %v181 = vld [vmem:[%s166 + $0x18] sm:$0xf]
      %v182 = vld [vmem:[%s166 + $0x1c] sm:$0xf]
      %v183 = vld [vmem:[%s166 + $0x20] sm:$0xf]
      %v184 = vld [vmem:[%s166 + $0x24] sm:$0xf]
      %v185 = vld [vmem:[%s166 + $0x28] sm:$0xf]
      %v186 = vld [vmem:[%s166 + $0x2c] sm:$0xf]
      %v187 = vld [vmem:[%s166 + $0x30] sm:$0xf]
      %v188 = vld [vmem:[%s166 + $0x34] sm:$0xf]
      %v189 = vld [vmem:[%s166 + $0x38] sm:$0xf]
      %v190 = vld [vmem:[%s166 + $0x3c] sm:$0xf]
      %v191 = vld [vmem:[%s166 + $0x40] sm:$0xf]
      %v192 = vld [vmem:[%s166 + $0x44] sm:$0xf]
      %v193 = vld [vmem:[%s166 + $0x48] sm:$0xf]
      %v194 = vld [vmem:[%s166 + $0x4c] sm:$0xf]
      %v195 = vld [vmem:[%s166 + $0x50] sm:$0xf]
      %v196 = vld [vmem:[%s166 + $0x54] sm:$0xf]
      %v197 = vld [vmem:[%s166 + $0x58] sm:$0xf]
      %v198 = vld [vmem:[%s166 + $0x5c] sm:$0xf]
      %v199 = vld [vmem:[%s166 + $0x60] sm:$0xf]
      %v200 = vld [vmem:[%s166 + $0x64] sm:$0xf]
      %v201 = vld [vmem:[%s166 + $0x68] sm:$0xf]
      %v202 = vld [vmem:[%s166 + $0x6c] sm:$0xf]
      %v203 = vld [vmem:[%s166 + $0x70] sm:$0xf]
      %v204 = vld [vmem:[%s166 + $0x74] sm:$0xf]
      %v205 = vld [vmem:[%s166 + $0x78] sm:$0xf]
      %v206 = vld [vmem:[%s166 + $0x7c] sm:$0xf]
      %v207 = vld [vmem:[%s1] sm:$0xf]
      %v208 = vld [vmem:[%s1 + $0x4] sm:$0xf]
      %v209 = vld [vmem:[%s1 + $0x8] sm:$0xf]
      %v210 = vld [vmem:[%s1 + $0xc] sm:$0xf]
      %v211 = vld [vmem:[%s1 + $0x10] sm:$0xf]
      %v212 = vld [vmem:[%s1 + $0x14] sm:$0xf]
      %v213 = vld [vmem:[%s1 + $0x18] sm:$0xf]
      %v214 = vld [vmem:[%s1 + $0x1c] sm:$0xf]
      %v215 = vld [vmem:[%s2] sm:$0x1]
      %v217 = vlaneseq
      %v218 = vshrl.u32 %v217, 7
      %v219 = vsub.s32 0, %v218
      %v220 = vrot.slane %v215, %v219
      %v254 = vunpack.c.l.b16 %v175
      %v255 = vunpack.c.l.b16 %v176
      %v256 = vunpack.c.l.b16 %v177
      %v257 = vunpack.c.l.b16 %v178
      %v258 = vunpack.c.l.b16 %v179
      %v259 = vunpack.c.l.b16 %v180
      %v260 = vunpack.c.l.b16 %v181
      %v261 = vunpack.c.l.b16 %v182
      %v262 = vunpack.c.l.b16 %v183
      %v263 = vunpack.c.l.b16 %v184
      %v264 = vunpack.c.l.b16 %v185
      %v265 = vunpack.c.l.b16 %v186
      %v266 = vunpack.c.l.b16 %v187
      %v267 = vunpack.c.l.b16 %v188
      %v268 = vunpack.c.l.b16 %v189
      %v269 = vunpack.c.l.b16 %v190
      %v270 = vunpack.c.l.b16 %v191
      %v271 = vunpack.c.l.b16 %v192
      %v272 = vunpack.c.l.b16 %v193
      %v273 = vunpack.c.l.b16 %v194
      %v274 = vunpack.c.l.b16 %v195
      %v275 = vunpack.c.l.b16 %v196
      %v276 = vunpack.c.l.b16 %v197
      %v277 = vunpack.c.l.b16 %v198
      %v278 = vunpack.c.l.b16 %v199
      %v279 = vunpack.c.l.b16 %v200
      %v280 = vunpack.c.l.b16 %v201
      %v281 = vunpack.c.l.b16 %v202
      %v282 = vunpack.c.l.b16 %v203
      %v283 = vunpack.c.l.b16 %v204
      %v284 = vunpack.c.l.b16 %v205
      %v285 = vunpack.c.l.b16 %v206
      %v286 = vpack.c.b16 %v255, %v254
      %v287 = vpack.c.b16 %v257, %v256
      %v288 = vpack.c.b16 %v259, %v258
      %v289 = vpack.c.b16 %v261, %v260
      %v290 = vpack.c.b16 %v263, %v262
      %v291 = vpack.c.b16 %v265, %v264
      %v292 = vpack.c.b16 %v267, %v266
      %v293 = vpack.c.b16 %v269, %v268
      %v294 = vpack.c.b16 %v271, %v270
      %v295 = vpack.c.b16 %v273, %v272
      %v296 = vpack.c.b16 %v275, %v274
      %v297 = vpack.c.b16 %v277, %v276
      %v298 = vpack.c.b16 %v279, %v278
      %v299 = vpack.c.b16 %v281, %v280
      %v300 = vpack.c.b16 %v283, %v282
      %v301 = vpack.c.b16 %v285, %v284
      %v310 = vunpack.c.l.b16 %v207
      %v311 = vunpack.c.l.b16 %v208
      %v312 = vunpack.c.l.b16 %v209
      %v313 = vunpack.c.l.b16 %v210
      %v314 = vunpack.c.l.b16 %v211
      %v315 = vunpack.c.l.b16 %v212
      %v316 = vunpack.c.l.b16 %v213
      %v317 = vunpack.c.l.b16 %v214
      %v318 = vpack.c.b16 %v311, %v310
      %v319 = vpack.c.b16 %v313, %v312
      %v320 = vpack.c.b16 %v315, %v314
      %v321 = vpack.c.b16 %v317, %v316
      %vm326 = vcmask 523264
      %v328 = vsel %vm326, %v286, 0
      %v331 = vsel %vm326, %v287, 0
      %v334 = vsel %vm326, %v288, 0
      %v337 = vsel %vm326, %v289, 0
      %v340 = vsel %vm326, %v290, 0
      %v343 = vsel %vm326, %v291, 0
      %v346 = vsel %vm326, %v292, 0
      %v349 = vsel %vm326, %v293, 0
      %v352 = vsel %vm326, %v294, 0
      %v355 = vsel %vm326, %v295, 0
      %v358 = vsel %vm326, %v296, 0
      %v361 = vsel %vm326, %v297, 0
      %v364 = vsel %vm326, %v298, 0
      %v367 = vsel %vm326, %v299, 0
      %v370 = vsel %vm326, %v300, 0
      %v373 = vsel %vm326, %v301, 0
      %375 = vmatprep.subr.bf16.mxu0 0
      %376 = vmatpush1.bf16.msra.mxu0 0
      %377 = vmatprep.subr.bf16.mxu0 0
      %378 = vmatpush1.bf16.msra.mxu0 0
      %379 = vmatprep.subr.bf16.mxu0 0
      %380 = vmatpush1.bf16.msra.mxu0 0
      %381 = vmatprep.subr.bf16.mxu0 0
      %382 = vmatpush1.bf16.msra.mxu0 0
      %383 = vmatprep.subr.bf16.mxu0 0
      %384 = vmatpush1.bf16.msra.mxu0 %v321
      %385 = vmatprep.subr.bf16.mxu0 0
      %386 = vmatpush1.bf16.msra.mxu0 %v320
      %387 = vmatprep.subr.bf16.mxu0 0
      %388 = vmatpush1.bf16.msra.mxu0 %v319
      %389 = vmatprep.subr.bf16.mxu0 0
      %390 = vmatpush1.bf16.msra.mxu0 %v318
      %391 = vmatprep.subr.bf16.mxu0 0
      %392 = vmatpush2.bf16.msra.mxu0 0
      %393 = vmatprep.subr.bf16.mxu0 0
      %394 = vmatpush2.bf16.msra.mxu0 0
      %395 = vmatprep.subr.bf16.mxu0 0
      %396 = vmatpush2.bf16.msra.mxu0 0
      %397 = vmatprep.subr.bf16.mxu0 0
      %398 = vmatpush2.bf16.msra.mxu0 0
      %399 = vmatprep.subr.bf16.mxu0 0
      %400 = vmatpush2.bf16.msra.mxu0 0
      %401 = vmatprep.subr.bf16.mxu0 0
      %402 = vmatpush2.bf16.msra.mxu0 0
      %403 = vmatprep.subr.bf16.mxu0 0
      %404 = vmatpush2.bf16.msra.mxu0 0
      %405 = vmatprep.subr.bf16.mxu0 0
      %406 = vmatpush2.bf16.msra.mxu0 0
      %407 = vmatprep.mubr.bf16.mxu0 0
      %408 = vmatmul.mubr.bf16.gmra.mxu0 %v328
      %v409 = vpop.f32.mrf.mxu0
      %v410 = vadd.f32 %v220, %v409
      %v411 = vpop.f32.mrf.mxu0
      %v412 = vpop.f32.mrf.mxu0
      %v413 = vadd.f32 %v220, %v412
      %v414 = vpop.f32.mrf.mxu0
      %415 = vmatprep.mubr.bf16.mxu0 0
      %416 = vmatmul.mubr.bf16.gmra.mxu0 %v331
      %v417 = vpop.f32.mrf.mxu0
      %v418 = vadd.f32 %v220, %v417
      %v419 = vpop.f32.mrf.mxu0
      %v420 = vpop.f32.mrf.mxu0
      %v421 = vadd.f32 %v220, %v420
      %v422 = vpop.f32.mrf.mxu0
      %423 = vmatprep.mubr.bf16.mxu0 0
      %424 = vmatmul.mubr.bf16.gmra.mxu0 %v334
      %v425 = vpop.f32.mrf.mxu0
      %v426 = vadd.f32 %v220, %v425
      %v427 = vpop.f32.mrf.mxu0
      %v428 = vpop.f32.mrf.mxu0
      %v429 = vadd.f32 %v220, %v428
      %v430 = vpop.f32.mrf.mxu0
      %431 = vmatprep.mubr.bf16.mxu0 0
      %432 = vmatmul.mubr.bf16.gmra.mxu0 %v337
      %v433 = vpop.f32.mrf.mxu0
      %v434 = vadd.f32 %v220, %v433
      %v435 = vpop.f32.mrf.mxu0
      %v436 = vpop.f32.mrf.mxu0
      %v437 = vadd.f32 %v220, %v436
      %v438 = vpop.f32.mrf.mxu0
      %439 = vmatprep.mubr.bf16.mxu0 0
      %440 = vmatmul.mubr.bf16.gmra.mxu0 %v340
      %v441 = vpop.f32.mrf.mxu0
      %v442 = vadd.f32 %v220, %v441
      %v443 = vpop.f32.mrf.mxu0
      %v444 = vpop.f32.mrf.mxu0
      %v445 = vadd.f32 %v220, %v444
      %v446 = vpop.f32.mrf.mxu0
      %447 = vmatprep.mubr.bf16.mxu0 0
      %448 = vmatmul.mubr.bf16.gmra.mxu0 %v343
      %v449 = vpop.f32.mrf.mxu0
      %v450 = vadd.f32 %v220, %v449
      %v451 = vpop.f32.mrf.mxu0
      %v452 = vpop.f32.mrf.mxu0
      %v453 = vadd.f32 %v220, %v452
      %v454 = vpop.f32.mrf.mxu0
      %455 = vmatprep.mubr.bf16.mxu0 0
      %456 = vmatmul.mubr.bf16.gmra.mxu0 %v346
      %v457 = vpop.f32.mrf.mxu0
      %v458 = vadd.f32 %v220, %v457
      %v459 = vpop.f32.mrf.mxu0
      %v460 = vpop.f32.mrf.mxu0
      %v461 = vadd.f32 %v220, %v460
      %v462 = vpop.f32.mrf.mxu0
      %463 = vmatprep.mubr.bf16.mxu0 0
      %464 = vmatmul.mubr.bf16.gmra.mxu0 %v349
      %v465 = vpop.f32.mrf.mxu0
      %v466 = vadd.f32 %v220, %v465
      %v467 = vpop.f32.mrf.mxu0
      %v468 = vpop.f32.mrf.mxu0
      %v469 = vadd.f32 %v220, %v468
      %v470 = vpop.f32.mrf.mxu0
      %471 = vmatprep.mubr.bf16.mxu0 0
      %472 = vmatmul.mubr.bf16.gmra.mxu0 %v352
      %v473 = vpop.f32.mrf.mxu0
      %v474 = vadd.f32 %v220, %v473
      %v475 = vpop.f32.mrf.mxu0
      %v476 = vpop.f32.mrf.mxu0
      %v477 = vadd.f32 %v220, %v476
      %v478 = vpop.f32.mrf.mxu0
      %479 = vmatprep.mubr.bf16.mxu0 0
      %480 = vmatmul.mubr.bf16.gmra.mxu0 %v355
      %v481 = vpop.f32.mrf.mxu0
      %v482 = vadd.f32 %v220, %v481
      %v483 = vpop.f32.mrf.mxu0
      %v484 = vpop.f32.mrf.mxu0
      %v485 = vadd.f32 %v220, %v484
      %v486 = vpop.f32.mrf.mxu0
      %487 = vmatprep.mubr.bf16.mxu0 0
      %488 = vmatmul.mubr.bf16.gmra.mxu0 %v358
      %v489 = vpop.f32.mrf.mxu0
      %v490 = vadd.f32 %v220, %v489
      %v491 = vpop.f32.mrf.mxu0
      %v492 = vpop.f32.mrf.mxu0
      %v493 = vadd.f32 %v220, %v492
      %v494 = vpop.f32.mrf.mxu0
      %495 = vmatprep.mubr.bf16.mxu0 0
      %496 = vmatmul.mubr.bf16.gmra.mxu0 %v361
      %v497 = vpop.f32.mrf.mxu0
      %v498 = vadd.f32 %v220, %v497
      %v499 = vpop.f32.mrf.mxu0
      %v500 = vpop.f32.mrf.mxu0
      %v501 = vadd.f32 %v220, %v500
      %v502 = vpop.f32.mrf.mxu0
      %503 = vmatprep.mubr.bf16.mxu0 0
      %504 = vmatmul.mubr.bf16.gmra.mxu0 %v364
      %v505 = vpop.f32.mrf.mxu0
      %v506 = vadd.f32 %v220, %v505
      %v507 = vpop.f32.mrf.mxu0
      %v508 = vpop.f32.mrf.mxu0
      %v509 = vadd.f32 %v220, %v508
      %v510 = vpop.f32.mrf.mxu0
      %511 = vmatprep.mubr.bf16.mxu0 0
      %512 = vmatmul.mubr.bf16.gmra.mxu0 %v367
      %v513 = vpop.f32.mrf.mxu0
      %v514 = vadd.f32 %v220, %v513
      %v515 = vpop.f32.mrf.mxu0
      %v516 = vpop.f32.mrf.mxu0
      %v517 = vadd.f32 %v220, %v516
      %v518 = vpop.f32.mrf.mxu0
      %519 = vmatprep.mubr.bf16.mxu0 0
      %520 = vmatmul.mubr.bf16.gmra.mxu0 %v370
      %v521 = vpop.f32.mrf.mxu0
      %v522 = vadd.f32 %v220, %v521
      %v523 = vpop.f32.mrf.mxu0
      %v524 = vpop.f32.mrf.mxu0
      %v525 = vadd.f32 %v220, %v524
      %v526 = vpop.f32.mrf.mxu0
      %527 = vmatprep.mubr.bf16.mxu0 0
      %528 = vmatmul.mubr.bf16.gmra.mxu0 %v373
      %v529 = vpop.f32.mrf.mxu0
      %v530 = vadd.f32 %v220, %v529
      %v531 = vpop.f32.mrf.mxu0
      %v532 = vpop.f32.mrf.mxu0
      %v533 = vadd.f32 %v220, %v532
      %v534 = vpop.f32.mrf.mxu0
      %535 = vdwg.mxu0
      %vm536 = vcmp.gt.f32.partialorder %v410, 0.0
      %vm537 = vcmp.gt.f32.partialorder %v413, 0.0
      %vm538 = vcmp.gt.f32.partialorder %v418, 0.0
      %vm539 = vcmp.gt.f32.partialorder %v421, 0.0
      %vm540 = vcmp.gt.f32.partialorder %v426, 0.0
      %vm541 = vcmp.gt.f32.partialorder %v429, 0.0
      %vm542 = vcmp.gt.f32.partialorder %v434, 0.0
      %vm543 = vcmp.gt.f32.partialorder %v437, 0.0
      %vm544 = vcmp.gt.f32.partialorder %v442, 0.0
      %vm545 = vcmp.gt.f32.partialorder %v445, 0.0
      %vm546 = vcmp.gt.f32.partialorder %v450, 0.0
      %vm547 = vcmp.gt.f32.partialorder %v453, 0.0
      %vm548 = vcmp.gt.f32.partialorder %v458, 0.0
      %vm549 = vcmp.gt.f32.partialorder %v461, 0.0
      %vm550 = vcmp.gt.f32.partialorder %v466, 0.0
      %vm551 = vcmp.gt.f32.partialorder %v469, 0.0
      %vm552 = vcmp.gt.f32.partialorder %v474, 0.0
      %vm553 = vcmp.gt.f32.partialorder %v477, 0.0
      %vm554 = vcmp.gt.f32.partialorder %v482, 0.0
      %vm555 = vcmp.gt.f32.partialorder %v485, 0.0
      %vm556 = vcmp.gt.f32.partialorder %v490, 0.0
      %vm557 = vcmp.gt.f32.partialorder %v493, 0.0
      %vm558 = vcmp.gt.f32.partialorder %v498, 0.0
      %vm559 = vcmp.gt.f32.partialorder %v501, 0.0
      %vm560 = vcmp.gt.f32.partialorder %v506, 0.0
      %vm561 = vcmp.gt.f32.partialorder %v509, 0.0
      %vm562 = vcmp.gt.f32.partialorder %v514, 0.0
      %vm563 = vcmp.gt.f32.partialorder %v517, 0.0
      %vm564 = vcmp.gt.f32.partialorder %v522, 0.0
      %vm565 = vcmp.gt.f32.partialorder %v525, 0.0
      %vm566 = vcmp.gt.f32.partialorder %v530, 0.0
      %vm567 = vcmp.gt.f32.partialorder %v533, 0.0
      %v568 = vmul.f32 %v410, 0.2
      %v569 = vmul.f32 %v413, 0.2
      %v570 = vmul.f32 %v418, 0.2
      %v571 = vmul.f32 %v421, 0.2
      %v572 = vmul.f32 %v426, 0.2
      %v573 = vmul.f32 %v429, 0.2
      %v574 = vmul.f32 %v434, 0.2
      %v575 = vmul.f32 %v437, 0.2
      %v576 = vmul.f32 %v442, 0.2
      %v577 = vmul.f32 %v445, 0.2
      %v578 = vmul.f32 %v450, 0.2
      %v579 = vmul.f32 %v453, 0.2
      %v580 = vmul.f32 %v458, 0.2
      %v581 = vmul.f32 %v461, 0.2
      %v582 = vmul.f32 %v466, 0.2
      %v583 = vmul.f32 %v469, 0.2
      %v584 = vmul.f32 %v474, 0.2
      %v585 = vmul.f32 %v477, 0.2
      %v586 = vmul.f32 %v482, 0.2
      %v587 = vmul.f32 %v485, 0.2
      %v588 = vmul.f32 %v490, 0.2
      %v589 = vmul.f32 %v493, 0.2
      %v590 = vmul.f32 %v498, 0.2
      %v591 = vmul.f32 %v501, 0.2
      %v592 = vmul.f32 %v506, 0.2
      %v593 = vmul.f32 %v509, 0.2
      %v594 = vmul.f32 %v514, 0.2
      %v595 = vmul.f32 %v517, 0.2
      %v596 = vmul.f32 %v522, 0.2
      %v597 = vmul.f32 %v525, 0.2
      %v598 = vmul.f32 %v530, 0.2
      %v599 = vmul.f32 %v533, 0.2
      %v600 = vsel %vm536, %v410, %v568
      %v601 = vsel %vm537, %v413, %v569
      %v602 = vsel %vm538, %v418, %v570
      %v603 = vsel %vm539, %v421, %v571
      %v604 = vsel %vm540, %v426, %v572
      %v605 = vsel %vm541, %v429, %v573
      %v606 = vsel %vm542, %v434, %v574
      %v607 = vsel %vm543, %v437, %v575
      %v608 = vsel %vm544, %v442, %v576
      %v609 = vsel %vm545, %v445, %v577
      %v610 = vsel %vm546, %v450, %v578
      %v611 = vsel %vm547, %v453, %v579
      %v612 = vsel %vm548, %v458, %v580
      %v613 = vsel %vm549, %v461, %v581
      %v614 = vsel %vm550, %v466, %v582
      %v615 = vsel %vm551, %v469, %v583
      %v616 = vsel %vm552, %v474, %v584
      %v617 = vsel %vm553, %v477, %v585
      %v618 = vsel %vm554, %v482, %v586
      %v619 = vsel %vm555, %v485, %v587
      %v620 = vsel %vm556, %v490, %v588
      %v621 = vsel %vm557, %v493, %v589
      %v622 = vsel %vm558, %v498, %v590
      %v623 = vsel %vm559, %v501, %v591
      %v624 = vsel %vm560, %v506, %v592
      %v625 = vsel %vm561, %v509, %v593
      %v626 = vsel %vm562, %v514, %v594
      %v627 = vsel %vm563, %v517, %v595
      %v628 = vsel %vm564, %v522, %v596
      %v629 = vsel %vm565, %v525, %v597
      %v630 = vsel %vm566, %v530, %v598
      %v631 = vsel %vm567, %v533, %v599
      %v632 = vpack.c.bf16 %v601, %v600
      %v633 = vpack.c.bf16 %v603, %v602
      %v634 = vpack.c.bf16 %v605, %v604
      %v635 = vpack.c.bf16 %v607, %v606
      %v636 = vpack.c.bf16 %v609, %v608
      %v637 = vpack.c.bf16 %v611, %v610
      %v638 = vpack.c.bf16 %v613, %v612
      %v639 = vpack.c.bf16 %v615, %v614
      %v640 = vpack.c.bf16 %v617, %v616
      %v641 = vpack.c.bf16 %v619, %v618
      %v642 = vpack.c.bf16 %v621, %v620
      %v643 = vpack.c.bf16 %v623, %v622
      %v644 = vpack.c.bf16 %v625, %v624
      %v645 = vpack.c.bf16 %v627, %v626
      %v646 = vpack.c.bf16 %v629, %v628
      %v647 = vpack.c.bf16 %v631, %v630
      %v664 = vunpack.c.l.b16 %v632
      %v665 = vunpack.c.h.b16 %v632
      %v666 = vunpack.c.l.b16 %v633
      %v667 = vunpack.c.h.b16 %v633
      %v668 = vunpack.c.l.b16 %v634
      %v669 = vunpack.c.h.b16 %v634
      %v670 = vunpack.c.l.b16 %v635
      %v671 = vunpack.c.h.b16 %v635
      %v672 = vunpack.c.l.b16 %v636
      %v673 = vunpack.c.h.b16 %v636
      %v674 = vunpack.c.l.b16 %v637
      %v675 = vunpack.c.h.b16 %v637
      %v676 = vunpack.c.l.b16 %v638
      %v677 = vunpack.c.h.b16 %v638
      %v678 = vunpack.c.l.b16 %v639
      %v679 = vunpack.c.h.b16 %v639
      %v680 = vunpack.c.l.b16 %v640
      %v681 = vunpack.c.h.b16 %v640
      %v682 = vunpack.c.l.b16 %v641
      %v683 = vunpack.c.h.b16 %v641
      %v684 = vunpack.c.l.b16 %v642
      %v685 = vunpack.c.h.b16 %v642
      %v686 = vunpack.c.l.b16 %v643
      %v687 = vunpack.c.h.b16 %v643
      %v688 = vunpack.c.l.b16 %v644
      %v689 = vunpack.c.h.b16 %v644
      %v690 = vunpack.c.l.b16 %v645
      %v691 = vunpack.c.h.b16 %v645
      %v692 = vunpack.c.l.b16 %v646
      %v693 = vunpack.c.h.b16 %v646
      %v694 = vunpack.c.l.b16 %v647
      %v695 = vunpack.c.h.b16 %v647
      %v696 = vpack.c.b16 %v664, %v664
      %v697 = vpack.c.b16 %v665, %v665
      %v698 = vpack.c.b16 %v666, %v666
      %v699 = vpack.c.b16 %v667, %v667
      %v700 = vpack.c.b16 %v668, %v668
      %v701 = vpack.c.b16 %v669, %v669
      %v702 = vpack.c.b16 %v670, %v670
      %v703 = vpack.c.b16 %v671, %v671
      %v704 = vpack.c.b16 %v672, %v672
      %v705 = vpack.c.b16 %v673, %v673
      %v706 = vpack.c.b16 %v674, %v674
      %v707 = vpack.c.b16 %v675, %v675
      %v708 = vpack.c.b16 %v676, %v676
      %v709 = vpack.c.b16 %v677, %v677
      %v710 = vpack.c.b16 %v678, %v678
      %v711 = vpack.c.b16 %v679, %v679
      %v712 = vpack.c.b16 %v680, %v680
      %v713 = vpack.c.b16 %v681, %v681
      %v714 = vpack.c.b16 %v682, %v682
      %v715 = vpack.c.b16 %v683, %v683
      %v716 = vpack.c.b16 %v684, %v684
      %v717 = vpack.c.b16 %v685, %v685
      %v718 = vpack.c.b16 %v686, %v686
      %v719 = vpack.c.b16 %v687, %v687
      %v720 = vpack.c.b16 %v688, %v688
      %v721 = vpack.c.b16 %v689, %v689
      %v722 = vpack.c.b16 %v690, %v690
      %v723 = vpack.c.b16 %v691, %v691
      %v724 = vpack.c.b16 %v692, %v692
      %v725 = vpack.c.b16 %v693, %v693
      %v726 = vpack.c.b16 %v694, %v694
      %v727 = vpack.c.b16 %v695, %v695
      %vm760 = vcmask 11264
      %761 = vst.msk [vmem:[%s172] sm:$0xf] %vm760, %v696
      %762 = vst.msk [vmem:[%s172 + $0x4] sm:$0xf] %vm760, %v697
      %763 = vst.msk [vmem:[%s172 + $0x8] sm:$0xf] %vm760, %v698
      %764 = vst.msk [vmem:[%s172 + $0xc] sm:$0xf] %vm760, %v699
      %765 = vst.msk [vmem:[%s172 + $0x10] sm:$0xf] %vm760, %v700
      %766 = vst.msk [vmem:[%s172 + $0x14] sm:$0xf] %vm760, %v701
      %767 = vst.msk [vmem:[%s172 + $0x18] sm:$0xf] %vm760, %v702
      %768 = vst.msk [vmem:[%s172 + $0x1c] sm:$0xf] %vm760, %v703
      %769 = vst.msk [vmem:[%s172 + $0x20] sm:$0xf] %vm760, %v704
      %770 = vst.msk [vmem:[%s172 + $0x24] sm:$0xf] %vm760, %v705
      %771 = vst.msk [vmem:[%s172 + $0x28] sm:$0xf] %vm760, %v706
      %772 = vst.msk [vmem:[%s172 + $0x2c] sm:$0xf] %vm760, %v707
      %773 = vst.msk [vmem:[%s172 + $0x30] sm:$0xf] %vm760, %v708
      %774 = vst.msk [vmem:[%s172 + $0x34] sm:$0xf] %vm760, %v709
      %775 = vst.msk [vmem:[%s172 + $0x38] sm:$0xf] %vm760, %v710
      %776 = vst.msk [vmem:[%s172 + $0x3c] sm:$0xf] %vm760, %v711
      %777 = vst.msk [vmem:[%s172 + $0x40] sm:$0xf] %vm760, %v712
      %778 = vst.msk [vmem:[%s172 + $0x44] sm:$0xf] %vm760, %v713
      %779 = vst.msk [vmem:[%s172 + $0x48] sm:$0xf] %vm760, %v714
      %780 = vst.msk [vmem:[%s172 + $0x4c] sm:$0xf] %vm760, %v715
      %781 = vst.msk [vmem:[%s172 + $0x50] sm:$0xf] %vm760, %v716
      %782 = vst.msk [vmem:[%s172 + $0x54] sm:$0xf] %vm760, %v717
      %783 = vst.msk [vmem:[%s172 + $0x58] sm:$0xf] %vm760, %v718
      %784 = vst.msk [vmem:[%s172 + $0x5c] sm:$0xf] %vm760, %v719
      %785 = vst.msk [vmem:[%s172 + $0x60] sm:$0xf] %vm760, %v720
      %786 = vst.msk [vmem:[%s172 + $0x64] sm:$0xf] %vm760, %v721
      %787 = vst.msk [vmem:[%s172 + $0x68] sm:$0xf] %vm760, %v722
      %788 = vst.msk [vmem:[%s172 + $0x6c] sm:$0xf] %vm760, %v723
      %789 = vst.msk [vmem:[%s172 + $0x70] sm:$0xf] %vm760, %v724
      %790 = vst.msk [vmem:[%s172 + $0x74] sm:$0xf] %vm760, %v725
      %791 = vst.msk [vmem:[%s172 + $0x78] sm:$0xf] %vm760, %v726
      %792 = vst.msk [vmem:[%s172 + $0x7c] sm:$0xf] %vm760, %v727
      %s793 = smul.u32 32, %s14
      %p794 = scmp.lt.s32.totalorder %s793, 63
      %s795 = scalar_select %p794, %s793, 63
      %s796 = smul.addr %s795, 4
      %s797 = scalar_lea.vmem %s3, %s796
      // Predicated region
      $region33: #{vae_forward.10} parent=31 // pred_check
        %p798 = pneg %p100
      $region34: #{vae_forward.10} parent=31 // pred_check_branch
        %800 = sbr.rel (%p798) target = $region36
      $region35: #{vae_forward.10} parent=31 // pred_region
        %s801 = smul.u32 32, %s14
      $region36: #{vae_forward.10} parent=31 // pred_fallthru
        _
    $region32: #{vae_forward.10} parent=5 // pred_fallthru
      _
    %p802 = scmp.le.s32.totalorder 2, %s9
    // Predicated region
    $region37: #{vae_forward.10} parent=5 // pred_check
      %p803 = pneg %p802
    $region38: #{vae_forward.10} parent=5 // pred_check_branch
      %805 = sbr.rel (%p803) target = $region40
    $region39: #{vae_forward.10} parent=5 // pred_region
      %s806 = ssub.s32 %s9, 2
      // Predicated region
      $region41: #{vae_forward.10} parent=39 // pred_check
        %p807 = pneg %p106
      $region42: #{vae_forward.10} parent=39 // pred_check_branch
        %809 = sbr.rel (%p807) target = $region44
      $region43: #{vae_forward.10} parent=39 // pred_region
        %s810 = smul.u32 32, %s15
        %p811 = scmp.lt.s32.totalorder %s810, 63
        %s812 = scalar_select %p811, %s810, 63
        %s813 = smul.addr %s812, 4
        %s814 = scalar_lea.vmem %s3, %s813
      $region44: #{vae_forward.10} parent=39 // pred_fallthru
        _
    $region40: #{vae_forward.10} parent=5 // pred_fallthru
      _
  $region6: #{vae_forward.10} parent=0 // loop_footer
    %s13 = sadd.s32 1, %s9
  $region7: #{vae_forward.10} parent=0 // loop_footer_branch
    %8 = sbr.rel target = $region3
  $region8: #{vae_forward.10} parent=0 // loop_exit
    _

// kernel: vae_forward.11
$region0: #{vae_forward.11}
  #allocation0 [shape = 'u32[]', space=smem, size = 0x4, offset = 0x4, fixed_abs, tag = 'smem constant byte address 0x4 - core index']
  #allocation1 [shape = 'u32[144,128]{1,0:T(1,128)}', space=vmem, size = 0x12000, scoped, tag = 'internal scratch']
  %s0 = inlined_call_operand.vmem [shape: bf16[128,32], index: 0, kind: input, shape index: {}]
  %s1 = inlined_call_operand.vmem [shape: bf16[32,4], index: 1, kind: input, shape index: {}]
  %s2 = inlined_call_operand.vmem [shape: f32[1,4], index: 2, kind: input, shape index: {}]
  %s3 = inlined_call_operand.vmem [shape: bf16[128,4], index: 3, kind: output, shape index: {}]
  %s4 = sld [smem:[#allocation0]]
  $region22: #{vae_forward.11} parent=0
    _
  %s6 = ssub.s32 1, %s4
  %s7 = scalar_select 0, %s6, %s4
  // Predicated region
  $region2: #{vae_forward.11} parent=0 // pred_check
    _
  $region3: #{vae_forward.11} parent=0 // pred_check_branch
    %9 = sbr.rel (0) target = $region5
  $region4: #{vae_forward.11} parent=0 // pred_region
    _
  $region5: #{vae_forward.11} parent=0 // pred_fallthru
    _
  // Predicated region
  $region6: #{vae_forward.11} parent=0 // pred_check
    _
  $region7: #{vae_forward.11} parent=0 // pred_check_branch
    %11 = sbr.rel (0) target = $region9
  $region8: #{vae_forward.11} parent=0 // pred_region
    _
  $region9: #{vae_forward.11} parent=0 // pred_fallthru
    _
  // Predicated region
  $region10: #{vae_forward.11} parent=0 // pred_check
    _
  $region11: #{vae_forward.11} parent=0 // pred_check_branch
    %13 = sbr.rel (0) target = $region13
  $region12: #{vae_forward.11} parent=0 // pred_region
    _
  $region13: #{vae_forward.11} parent=0 // pred_fallthru
    _
  %v15 = vld [vmem:[%s0] sm:$0xf]
  %v16 = vld [vmem:[%s0 + $0x4] sm:$0xf]
  %v17 = vld [vmem:[%s0 + $0x8] sm:$0xf]
  %v18 = vld [vmem:[%s0 + $0xc] sm:$0xf]
  %v19 = vld [vmem:[%s0 + $0x10] sm:$0xf]
  %v20 = vld [vmem:[%s0 + $0x14] sm:$0xf]
  %v21 = vld [vmem:[%s0 + $0x18] sm:$0xf]
  %v22 = vld [vmem:[%s0 + $0x1c] sm:$0xf]
  %v23 = vld [vmem:[%s0 + $0x20] sm:$0xf]
  %v24 = vld [vmem:[%s0 + $0x24] sm:$0xf]
  %v25 = vld [vmem:[%s0 + $0x28] sm:$0xf]
  %v26 = vld [vmem:[%s0 + $0x2c] sm:$0xf]
  %v27 = vld [vmem:[%s0 + $0x30] sm:$0xf]
  %v28 = vld [vmem:[%s0 + $0x34] sm:$0xf]
  %v29 = vld [vmem:[%s0 + $0x38] sm:$0xf]
  %v30 = vld [vmem:[%s0 + $0x3c] sm:$0xf]
  %v31 = vld [vmem:[%s1] sm:$0xf]
  %v32 = vld [vmem:[%s1 + $0x4] sm:$0xf]
  %v33 = vld [vmem:[%s1 + $0x8] sm:$0xf]
  %v34 = vld [vmem:[%s1 + $0xc] sm:$0xf]
  %v35 = vld [vmem:[%s2] sm:$0x1]
  %v37 = vlaneseq
  %v38 = vshrl.u32 %v37, 7
  %v39 = vsub.s32 0, %v38
  %v40 = vrot.slane %v35, %v39
  %v58 = vunpack.c.l.b16 %v15
  %v59 = vunpack.c.l.b16 %v16
  %v60 = vunpack.c.l.b16 %v17
  %v61 = vunpack.c.l.b16 %v18
  %v62 = vunpack.c.l.b16 %v19
  %v63 = vunpack.c.l.b16 %v20
  %v64 = vunpack.c.l.b16 %v21
  %v65 = vunpack.c.l.b16 %v22
  %v66 = vunpack.c.l.b16 %v23
  %v67 = vunpack.c.l.b16 %v24
  %v68 = vunpack.c.l.b16 %v25
  %v69 = vunpack.c.l.b16 %v26
  %v70 = vunpack.c.l.b16 %v27
  %v71 = vunpack.c.l.b16 %v28
  %v72 = vunpack.c.l.b16 %v29
  %v73 = vunpack.c.l.b16 %v30
  %v74 = vpack.c.b16 %v59, %v58
  %v75 = vpack.c.b16 %v61, %v60
  %v76 = vpack.c.b16 %v63, %v62
  %v77 = vpack.c.b16 %v65, %v64
  %v78 = vpack.c.b16 %v67, %v66
  %v79 = vpack.c.b16 %v69, %v68
  %v80 = vpack.c.b16 %v71, %v70
  %v81 = vpack.c.b16 %v73, %v72
  %v86 = vunpack.c.l.b16 %v31
  %v87 = vunpack.c.l.b16 %v32
  %v88 = vunpack.c.l.b16 %v33
  %v89 = vunpack.c.l.b16 %v34
  %v90 = vpack.c.b16 %v87, %v86
  %v91 = vpack.c.b16 %v89, %v88
  %vm94 = vcmask 261120
  %v96 = vsel %vm94, %v74, 0
  %v99 = vsel %vm94, %v75, 0
  %v102 = vsel %vm94, %v76, 0
  %v105 = vsel %vm94, %v77, 0
  %v108 = vsel %vm94, %v78, 0
  %v111 = vsel %vm94, %v79, 0
  %v114 = vsel %vm94, %v80, 0
  %v117 = vsel %vm94, %v81, 0
  %119 = vmatprep.subr.bf16.mxu0 0
  %120 = vmatpush1.bf16.msra.mxu0 0
  %121 = vmatprep.subr.bf16.mxu0 0
  %122 = vmatpush1.bf16.msra.mxu0 0
  %123 = vmatprep.subr.bf16.mxu0 0
  %124 = vmatpush1.bf16.msra.mxu0 0
  %125 = vmatprep.subr.bf16.mxu0 0
  %126 = vmatpush1.bf16.msra.mxu0 0
  %127 = vmatprep.subr.bf16.mxu0 0
  %128 = vmatpush1.bf16.msra.mxu0 0
  %129 = vmatprep.subr.bf16.mxu0 0
  %130 = vmatpush1.bf16.msra.mxu0 0
  %131 = vmatprep.subr.bf16.mxu0 0
  %132 = vmatpush1.bf16.msra.mxu0 %v91
  %133 = vmatprep.subr.bf16.mxu0 0
  %134 = vmatpush1.bf16.msra.mxu0 %v90
  %135 = vmatprep.subr.bf16.mxu0 0
  %136 = vmatpush2.bf16.msra.mxu0 0
  %137 = vmatprep.subr.bf16.mxu0 0
  %138 = vmatpush2.bf16.msra.mxu0 0
  %139 = vmatprep.subr.bf16.mxu0 0
  %140 = vmatpush2.bf16.msra.mxu0 0
  %141 = vmatprep.subr.bf16.mxu0 0
  %142 = vmatpush2.bf16.msra.mxu0 0
  %143 = vmatprep.subr.bf16.mxu0 0
  %144 = vmatpush2.bf16.msra.mxu0 0
  %145 = vmatprep.subr.bf16.mxu0 0
  %146 = vmatpush2.bf16.msra.mxu0 0
  %147 = vmatprep.subr.bf16.mxu0 0
  %148 = vmatpush2.bf16.msra.mxu0 0
  %149 = vmatprep.subr.bf16.mxu0 0
  %150 = vmatpush2.bf16.msra.mxu0 0
  %151 = vmatprep.mubr.bf16.mxu0 0
  %152 = vmatmul.mubr.bf16.gmra.mxu0 %v96
  %v153 = vpop.f32.mrf.mxu0
  %v154 = vadd.f32 %v40, %v153
  %v155 = vpop.f32.mrf.mxu0
  %v156 = vpop.f32.mrf.mxu0
  %v157 = vadd.f32 %v40, %v156
  %v158 = vpop.f32.mrf.mxu0
  %159 = vmatprep.mubr.bf16.mxu0 0
  %160 = vmatmul.mubr.bf16.gmra.mxu0 %v99
  %v161 = vpop.f32.mrf.mxu0
  %v162 = vadd.f32 %v40, %v161
  %v163 = vpop.f32.mrf.mxu0
  %v164 = vpop.f32.mrf.mxu0
  %v165 = vadd.f32 %v40, %v164
  %v166 = vpop.f32.mrf.mxu0
  %167 = vmatprep.mubr.bf16.mxu0 0
  %168 = vmatmul.mubr.bf16.gmra.mxu0 %v102
  %v169 = vpop.f32.mrf.mxu0
  %v170 = vadd.f32 %v40, %v169
  %v171 = vpop.f32.mrf.mxu0
  %v172 = vpop.f32.mrf.mxu0
  %v173 = vadd.f32 %v40, %v172
  %v174 = vpop.f32.mrf.mxu0
  %175 = vmatprep.mubr.bf16.mxu0 0
  %176 = vmatmul.mubr.bf16.gmra.mxu0 %v105
  %v177 = vpop.f32.mrf.mxu0
  %v178 = vadd.f32 %v40, %v177
  %v179 = vpop.f32.mrf.mxu0
  %v180 = vpop.f32.mrf.mxu0
  %v181 = vadd.f32 %v40, %v180
  %v182 = vpop.f32.mrf.mxu0
  %183 = vmatprep.mubr.bf16.mxu0 0
  %184 = vmatmul.mubr.bf16.gmra.mxu0 %v108
  %v185 = vpop.f32.mrf.mxu0
  %v186 = vadd.f32 %v40, %v185
  %v187 = vpop.f32.mrf.mxu0
  %v188 = vpop.f32.mrf.mxu0
  %v189 = vadd.f32 %v40, %v188
  %v190 = vpop.f32.mrf.mxu0
  %191 = vmatprep.mubr.bf16.mxu0 0
  %192 = vmatmul.mubr.bf16.gmra.mxu0 %v111
  %v193 = vpop.f32.mrf.mxu0
  %v194 = vadd.f32 %v40, %v193
  %v195 = vpop.f32.mrf.mxu0
  %v196 = vpop.f32.mrf.mxu0
  %v197 = vadd.f32 %v40, %v196
  %v198 = vpop.f32.mrf.mxu0
  %199 = vmatprep.mubr.bf16.mxu0 0
  %200 = vmatmul.mubr.bf16.gmra.mxu0 %v114
  %v201 = vpop.f32.mrf.mxu0
  %v202 = vadd.f32 %v40, %v201
  %v203 = vpop.f32.mrf.mxu0
  %v204 = vpop.f32.mrf.mxu0
  %v205 = vadd.f32 %v40, %v204
  %v206 = vpop.f32.mrf.mxu0
  %207 = vmatprep.mubr.bf16.mxu0 0
  %208 = vmatmul.mubr.bf16.gmra.mxu0 %v117
  %v209 = vpop.f32.mrf.mxu0
  %v210 = vadd.f32 %v40, %v209
  %v211 = vpop.f32.mrf.mxu0
  %v212 = vpop.f32.mrf.mxu0
  %v213 = vadd.f32 %v40, %v212
  %v214 = vpop.f32.mrf.mxu0
  %215 = vdwg.mxu0
  %vm216 = vcmp.gt.f32.partialorder %v154, 0.0
  %vm217 = vcmp.gt.f32.partialorder %v157, 0.0
  %vm218 = vcmp.gt.f32.partialorder %v162, 0.0
  %vm219 = vcmp.gt.f32.partialorder %v165, 0.0
  %vm220 = vcmp.gt.f32.partialorder %v170, 0.0
  %vm221 = vcmp.gt.f32.partialorder %v173, 0.0
  %vm222 = vcmp.gt.f32.partialorder %v178, 0.0
  %vm223 = vcmp.gt.f32.partialorder %v181, 0.0
  %vm224 = vcmp.gt.f32.partialorder %v186, 0.0
  %vm225 = vcmp.gt.f32.partialorder %v189, 0.0
  %vm226 = vcmp.gt.f32.partialorder %v194, 0.0
  %vm227 = vcmp.gt.f32.partialorder %v197, 0.0
  %vm228 = vcmp.gt.f32.partialorder %v202, 0.0
  %vm229 = vcmp.gt.f32.partialorder %v205, 0.0
  %vm230 = vcmp.gt.f32.partialorder %v210, 0.0
  %vm231 = vcmp.gt.f32.partialorder %v213, 0.0
  %v232 = vmul.f32 %v154, 0.2
  %v233 = vmul.f32 %v157, 0.2
  %v234 = vmul.f32 %v162, 0.2
  %v235 = vmul.f32 %v165, 0.2
  %v236 = vmul.f32 %v170, 0.2
  %v237 = vmul.f32 %v173, 0.2
  %v238 = vmul.f32 %v178, 0.2
  %v239 = vmul.f32 %v181, 0.2
  %v240 = vmul.f32 %v186, 0.2
  %v241 = vmul.f32 %v189, 0.2
  %v242 = vmul.f32 %v194, 0.2
  %v243 = vmul.f32 %v197, 0.2
  %v244 = vmul.f32 %v202, 0.2
  %v245 = vmul.f32 %v205, 0.2
  %v246 = vmul.f32 %v210, 0.2
  %v247 = vmul.f32 %v213, 0.2
  %v248 = vsel %vm216, %v154, %v232
  %v249 = vsel %vm217, %v157, %v233
  %v250 = vsel %vm218, %v162, %v234
  %v251 = vsel %vm219, %v165, %v235
  %v252 = vsel %vm220, %v170, %v236
  %v253 = vsel %vm221, %v173, %v237
  %v254 = vsel %vm222, %v178, %v238
  %v255 = vsel %vm223, %v181, %v239
  %v256 = vsel %vm224, %v186, %v240
  %v257 = vsel %vm225, %v189, %v241
  %v258 = vsel %vm226, %v194, %v242
  %v259 = vsel %vm227, %v197, %v243
  %v260 = vsel %vm228, %v202, %v244
  %v261 = vsel %vm229, %v205, %v245
  %v262 = vsel %vm230, %v210, %v246
  %v263 = vsel %vm231, %v213, %v247
  %v264 = vpack.c.bf16 %v249, %v248
  %v265 = vpack.c.bf16 %v251, %v250
  %v266 = vpack.c.bf16 %v253, %v252
  %v267 = vpack.c.bf16 %v255, %v254
  %v268 = vpack.c.bf16 %v257, %v256
  %v269 = vpack.c.bf16 %v259, %v258
  %v270 = vpack.c.bf16 %v261, %v260
  %v271 = vpack.c.bf16 %v263, %v262
  %v280 = vunpack.c.l.b16 %v264
  %v281 = vunpack.c.h.b16 %v264
  %v282 = vunpack.c.l.b16 %v265
  %v283 = vunpack.c.h.b16 %v265
  %v284 = vunpack.c.l.b16 %v266
  %v285 = vunpack.c.h.b16 %v266
  %v286 = vunpack.c.l.b16 %v267
  %v287 = vunpack.c.h.b16 %v267
  %v288 = vunpack.c.l.b16 %v268
  %v289 = vunpack.c.h.b16 %v268
  %v290 = vunpack.c.l.b16 %v269
  %v291 = vunpack.c.h.b16 %v269
  %v292 = vunpack.c.l.b16 %v270
  %v293 = vunpack.c.h.b16 %v270
  %v294 = vunpack.c.l.b16 %v271
  %v295 = vunpack.c.h.b16 %v271
  %v296 = vpack.c.b16 %v280, %v280
  %v297 = vpack.c.b16 %v281, %v281
  %v298 = vpack.c.b16 %v282, %v282
  %v299 = vpack.c.b16 %v283, %v283
  %v300 = vpack.c.b16 %v284, %v284
  %v301 = vpack.c.b16 %v285, %v285
  %v302 = vpack.c.b16 %v286, %v286
  %v303 = vpack.c.b16 %v287, %v287
  %v304 = vpack.c.b16 %v288, %v288
  %v305 = vpack.c.b16 %v289, %v289
  %v306 = vpack.c.b16 %v290, %v290
  %v307 = vpack.c.b16 %v291, %v291
  %v308 = vpack.c.b16 %v292, %v292
  %v309 = vpack.c.b16 %v293, %v293
  %v310 = vpack.c.b16 %v294, %v294
  %v311 = vpack.c.b16 %v295, %v295
  %vm328 = vcmask 27648
  %329 = vst.msk [vmem:[%s3] sm:$0xf] %vm328, %v296
  %330 = vst.msk [vmem:[%s3 + $0x4] sm:$0xf] %vm328, %v297
  %331 = vst.msk [vmem:[%s3 + $0x8] sm:$0xf] %vm328, %v298
  %332 = vst.msk [vmem:[%s3 + $0xc] sm:$0xf] %vm328, %v299
  %333 = vst.msk [vmem:[%s3 + $0x10] sm:$0xf] %vm328, %v300
  %334 = vst.msk [vmem:[%s3 + $0x14] sm:$0xf] %vm328, %v301
  %335 = vst.msk [vmem:[%s3 + $0x18] sm:$0xf] %vm328, %v302
  %336 = vst.msk [vmem:[%s3 + $0x1c] sm:$0xf] %vm328, %v303
  %337 = vst.msk [vmem:[%s3 + $0x20] sm:$0xf] %vm328, %v304
  %338 = vst.msk [vmem:[%s3 + $0x24] sm:$0xf] %vm328, %v305
  %339 = vst.msk [vmem:[%s3 + $0x28] sm:$0xf] %vm328, %v306
  %340 = vst.msk [vmem:[%s3 + $0x2c] sm:$0xf] %vm328, %v307
  %341 = vst.msk [vmem:[%s3 + $0x30] sm:$0xf] %vm328, %v308
  %342 = vst.msk [vmem:[%s3 + $0x34] sm:$0xf] %vm328, %v309
  %343 = vst.msk [vmem:[%s3 + $0x38] sm:$0xf] %vm328, %v310
  %344 = vst.msk [vmem:[%s3 + $0x3c] sm:$0xf] %vm328, %v311
  // Predicated region
  $region14: #{vae_forward.11} parent=0 // pred_check
    _
  $region15: #{vae_forward.11} parent=0 // pred_check_branch
    %346 = sbr.rel (0) target = $region17
  $region16: #{vae_forward.11} parent=0 // pred_region
    _
  $region17: #{vae_forward.11} parent=0 // pred_fallthru
    _
  // Predicated region
  $region18: #{vae_forward.11} parent=0 // pred_check
    _
  $region19: #{vae_forward.11} parent=0 // pred_check_branch
    %348 = sbr.rel (0) target = $region21
  $region20: #{vae_forward.11} parent=0 // pred_region
    _
  $region21: #{vae_forward.11} parent=0 // pred_fallthru
    _

// kernel: vae_forward.12
$region0: #{vae_forward.12}
  #allocation0 [shape = 'u32[]', space=smem, size = 0x4, offset = 0x4, fixed_abs, tag = 'smem constant byte address 0x4 - core index']
  #allocation1 [shape = 'u32[144,128]{1,0:T(1,128)}', space=vmem, size = 0x12000, scoped, tag = 'internal scratch']
  %s0 = inlined_call_operand.vmem [shape: bf16[32,64], index: 0, kind: input, shape index: {}]
  %s1 = inlined_call_operand.vmem [shape: bf16[64,8], index: 1, kind: input, shape index: {}]
  %s2 = inlined_call_operand.vmem [shape: f32[1,8], index: 2, kind: input, shape index: {}]
  %s3 = inlined_call_operand.vmem [shape: bf16[32,8], index: 3, kind: output, shape index: {}]
  %s4 = sld [smem:[#allocation0]]
  $region22: #{vae_forward.12} parent=0
    _
  %s6 = ssub.s32 1, %s4
  %s7 = scalar_select 0, %s6, %s4
  // Predicated region
  $region2: #{vae_forward.12} parent=0 // pred_check
    _
  $region3: #{vae_forward.12} parent=0 // pred_check_branch
    %9 = sbr.rel (0) target = $region5
  $region4: #{vae_forward.12} parent=0 // pred_region
    _
  $region5: #{vae_forward.12} parent=0 // pred_fallthru
    _
  // Predicated region
  $region6: #{vae_forward.12} parent=0 // pred_check
    _
  $region7: #{vae_forward.12} parent=0 // pred_check_branch
    %11 = sbr.rel (0) target = $region9
  $region8: #{vae_forward.12} parent=0 // pred_region
    _
  $region9: #{vae_forward.12} parent=0 // pred_fallthru
    _
  // Predicated region
  $region10: #{vae_forward.12} parent=0 // pred_check
    _
  $region11: #{vae_forward.12} parent=0 // pred_check_branch
    %13 = sbr.rel (0) target = $region13
  $region12: #{vae_forward.12} parent=0 // pred_region
    _
  $region13: #{vae_forward.12} parent=0 // pred_fallthru
    _
  %v15 = vld [vmem:[%s0] sm:$0xf]
  %v16 = vld [vmem:[%s0 + $0x4] sm:$0xf]
  %v17 = vld [vmem:[%s0 + $0x8] sm:$0xf]
  %v18 = vld [vmem:[%s0 + $0xc] sm:$0xf]
  %v19 = vld [vmem:[%s1] sm:$0xf]
  %v20 = vld [vmem:[%s1 + $0x4] sm:$0xf]
  %v21 = vld [vmem:[%s1 + $0x8] sm:$0xf]
  %v22 = vld [vmem:[%s1 + $0xc] sm:$0xf]
  %v23 = vld [vmem:[%s1 + $0x10] sm:$0xf]
  %v24 = vld [vmem:[%s1 + $0x14] sm:$0xf]
  %v25 = vld [vmem:[%s1 + $0x18] sm:$0xf]
  %v26 = vld [vmem:[%s1 + $0x1c] sm:$0xf]
  %v27 = vld [vmem:[%s2] sm:$0x1]
  %v29 = vlaneseq
  %v30 = vshrl.u32 %v29, 7
  %v31 = vsub.s32 0, %v30
  %v32 = vrot.slane %v27, %v31
  %v38 = vunpack.c.l.b16 %v15
  %v39 = vunpack.c.l.b16 %v16
  %v40 = vunpack.c.l.b16 %v17
  %v41 = vunpack.c.l.b16 %v18
  %v42 = vpack.c.b16 %v39, %v38
  %v43 = vpack.c.b16 %v41, %v40
  %v52 = vunpack.c.l.b16 %v19
  %v53 = vunpack.c.l.b16 %v20
  %v54 = vunpack.c.l.b16 %v21
  %v55 = vunpack.c.l.b16 %v22
  %v56 = vunpack.c.l.b16 %v23
  %v57 = vunpack.c.l.b16 %v24
  %v58 = vunpack.c.l.b16 %v25
  %v59 = vunpack.c.l.b16 %v26
  %v60 = vpack.c.b16 %v53, %v52
  %v61 = vpack.c.b16 %v55, %v54
  %v62 = vpack.c.b16 %v57, %v56
  %v63 = vpack.c.b16 %v59, %v58
  %vm68 = vcmask 523264
  %v70 = vsel %vm68, %v42, 0
  %v73 = vsel %vm68, %v43, 0
  %75 = vmatprep.subr.bf16.mxu0 0
  %76 = vmatpush1.bf16.msra.mxu0 0
  %77 = vmatprep.subr.bf16.mxu0 0
  %78 = vmatpush1.bf16.msra.mxu0 0
  %79 = vmatprep.subr.bf16.mxu0 0
  %80 = vmatpush1.bf16.msra.mxu0 0
  %81 = vmatprep.subr.bf16.mxu0 0
  %82 = vmatpush1.bf16.msra.mxu0 0
  %83 = vmatprep.subr.bf16.mxu0 0
  %84 = vmatpush1.bf16.msra.mxu0 %v63
  %85 = vmatprep.subr.bf16.mxu0 0
  %86 = vmatpush1.bf16.msra.mxu0 %v62
  %87 = vmatprep.subr.bf16.mxu0 0
  %88 = vmatpush1.bf16.msra.mxu0 %v61
  %89 = vmatprep.subr.bf16.mxu0 0
  %90 = vmatpush1.bf16.msra.mxu0 %v60
  %91 = vmatprep.subr.bf16.mxu0 0
  %92 = vmatpush2.bf16.msra.mxu0 0
  %93 = vmatprep.subr.bf16.mxu0 0
  %94 = vmatpush2.bf16.msra.mxu0 0
  %95 = vmatprep.subr.bf16.mxu0 0
  %96 = vmatpush2.bf16.msra.mxu0 0
  %97 = vmatprep.subr.bf16.mxu0 0
  %98 = vmatpush2.bf16.msra.mxu0 0
  %99 = vmatprep.subr.bf16.mxu0 0
  %100 = vmatpush2.bf16.msra.mxu0 0
  %101 = vmatprep.subr.bf16.mxu0 0
  %102 = vmatpush2.bf16.msra.mxu0 0
  %103 = vmatprep.subr.bf16.mxu0 0
  %104 = vmatpush2.bf16.msra.mxu0 0
  %105 = vmatprep.subr.bf16.mxu0 0
  %106 = vmatpush2.bf16.msra.mxu0 0
  %107 = vmatprep.mubr.bf16.mxu0 0
  %108 = vmatmul.mubr.bf16.gmra.mxu0 %v70
  %v109 = vpop.f32.mrf.mxu0
  %v110 = vadd.f32 %v32, %v109
  %v111 = vpop.f32.mrf.mxu0
  %v112 = vpop.f32.mrf.mxu0
  %v113 = vadd.f32 %v32, %v112
  %v114 = vpop.f32.mrf.mxu0
  %115 = vmatprep.mubr.bf16.mxu0 0
  %116 = vmatmul.mubr.bf16.gmra.mxu0 %v73
  %v117 = vpop.f32.mrf.mxu0
  %v118 = vadd.f32 %v32, %v117
  %v119 = vpop.f32.mrf.mxu0
  %v120 = vpop.f32.mrf.mxu0
  %v121 = vadd.f32 %v32, %v120
  %v122 = vpop.f32.mrf.mxu0
  %123 = vdwg.mxu0
  %vm124 = vcmp.gt.f32.partialorder %v110, 0.0
  %vm125 = vcmp.gt.f32.partialorder %v113, 0.0
  %vm126 = vcmp.gt.f32.partialorder %v118, 0.0
  %vm127 = vcmp.gt.f32.partialorder %v121, 0.0
  %v128 = vmul.f32 %v110, 0.2
  %v129 = vmul.f32 %v113, 0.2
  %v130 = vmul.f32 %v118, 0.2
  %v131 = vmul.f32 %v121, 0.2
  %v132 = vsel %vm124, %v110, %v128
  %v133 = vsel %vm125, %v113, %v129
  %v134 = vsel %vm126, %v118, %v130
  %v135 = vsel %vm127, %v121, %v131
  %v136 = vpack.c.bf16 %v133, %v132
  %v137 = vpack.c.bf16 %v135, %v134
  %v140 = vunpack.c.l.b16 %v136
  %v141 = vunpack.c.h.b16 %v136
  %v142 = vunpack.c.l.b16 %v137
  %v143 = vunpack.c.h.b16 %v137
  %v144 = vpack.c.b16 %v140, %v140
  %v145 = vpack.c.b16 %v141, %v141
  %v146 = vpack.c.b16 %v142, %v142
  %v147 = vpack.c.b16 %v143, %v143
  %vm152 = vcmask 60416
  %153 = vst.msk [vmem:[%s3] sm:$0xf] %vm152, %v144
  %154 = vst.msk [vmem:[%s3 + $0x4] sm:$0xf] %vm152, %v145
  %155 = vst.msk [vmem:[%s3 + $0x8] sm:$0xf] %vm152, %v146
  %156 = vst.msk [vmem:[%s3 + $0xc] sm:$0xf] %vm152, %v147
  // Predicated region
  $region14: #{vae_forward.12} parent=0 // pred_check
    _
  $region15: #{vae_forward.12} parent=0 // pred_check_branch
    %158 = sbr.rel (0) target = $region17
  $region16: #{vae_forward.12} parent=0 // pred_region
    _
  $region17: #{vae_forward.12} parent=0 // pred_fallthru
    _
  // Predicated region
  $region18: #{vae_forward.12} parent=0 // pred_check
    _
  $region19: #{vae_forward.12} parent=0 // pred_check_branch
    %160 = sbr.rel (0) target = $region21
  $region20: #{vae_forward.12} parent=0 // pred_region
    _
  $region21: #{vae_forward.12} parent=0 // pred_fallthru
    _

// kernel: vae_forward.13
$region0: #{vae_forward.13}
  #allocation0 [shape = 'u32[]', space=smem, size = 0x4, offset = 0x4, fixed_abs, tag = 'smem constant byte address 0x4 - core index']
  #allocation1 [shape = 'u32[144,128]{1,0:T(1,128)}', space=vmem, size = 0x12000, scoped, tag = 'internal scratch']
  %s0 = inlined_call_operand.vmem [shape: bf16[8,128], index: 0, kind: input, shape index: {}]
  %s1 = inlined_call_operand.vmem [shape: bf16[128,16], index: 1, kind: input, shape index: {}]
  %s2 = inlined_call_operand.vmem [shape: f32[1,16], index: 2, kind: input, shape index: {}]
  %s3 = inlined_call_operand.vmem [shape: bf16[8,16], index: 3, kind: output, shape index: {}]
  %s4 = sld [smem:[#allocation0]]
  $region22: #{vae_forward.13} parent=0
    _
  %s6 = ssub.s32 1, %s4
  %s7 = scalar_select 0, %s6, %s4
  // Predicated region
  $region2: #{vae_forward.13} parent=0 // pred_check
    _
  $region3: #{vae_forward.13} parent=0 // pred_check_branch
    %9 = sbr.rel (0) target = $region5
  $region4: #{vae_forward.13} parent=0 // pred_region
    _
  $region5: #{vae_forward.13} parent=0 // pred_fallthru
    _
  // Predicated region
  $region6: #{vae_forward.13} parent=0 // pred_check
    _
  $region7: #{vae_forward.13} parent=0 // pred_check_branch
    %11 = sbr.rel (0) target = $region9
  $region8: #{vae_forward.13} parent=0 // pred_region
    _
  $region9: #{vae_forward.13} parent=0 // pred_fallthru
    _
  // Predicated region
  $region10: #{vae_forward.13} parent=0 // pred_check
    _
  $region11: #{vae_forward.13} parent=0 // pred_check_branch
    %13 = sbr.rel (0) target = $region13
  $region12: #{vae_forward.13} parent=0 // pred_region
    _
  $region13: #{vae_forward.13} parent=0 // pred_fallthru
    _
  %v15 = vld [vmem:[%s0] sm:$0xf]
  %v16 = vld [vmem:[%s1] sm:$0xf]
  %v17 = vld [vmem:[%s1 + $0x4] sm:$0xf]
  %v18 = vld [vmem:[%s1 + $0x8] sm:$0xf]
  %v19 = vld [vmem:[%s1 + $0xc] sm:$0xf]
  %v20 = vld [vmem:[%s1 + $0x10] sm:$0xf]
  %v21 = vld [vmem:[%s1 + $0x14] sm:$0xf]
  %v22 = vld [vmem:[%s1 + $0x18] sm:$0xf]
  %v23 = vld [vmem:[%s1 + $0x1c] sm:$0xf]
  %v24 = vld [vmem:[%s1 + $0x20] sm:$0xf]
  %v25 = vld [vmem:[%s1 + $0x24] sm:$0xf]
  %v26 = vld [vmem:[%s1 + $0x28] sm:$0xf]
  %v27 = vld [vmem:[%s1 + $0x2c] sm:$0xf]
  %v28 = vld [vmem:[%s1 + $0x30] sm:$0xf]
  %v29 = vld [vmem:[%s1 + $0x34] sm:$0xf]
  %v30 = vld [vmem:[%s1 + $0x38] sm:$0xf]
  %v31 = vld [vmem:[%s1 + $0x3c] sm:$0xf]
  %v32 = vld [vmem:[%s2] sm:$0x1]
  %v34 = vlaneseq
  %v35 = vshrl.u32 %v34, 7
  %v36 = vsub.s32 0, %v35
  %v37 = vrot.slane %v32, %v36
  %v55 = vunpack.c.l.b16 %v16
  %v56 = vunpack.c.l.b16 %v17
  %v57 = vunpack.c.l.b16 %v18
  %v58 = vunpack.c.l.b16 %v19
  %v59 = vunpack.c.l.b16 %v20
  %v60 = vunpack.c.l.b16 %v21
  %v61 = vunpack.c.l.b16 %v22
  %v62 = vunpack.c.l.b16 %v23
  %v63 = vunpack.c.l.b16 %v24
  %v64 = vunpack.c.l.b16 %v25
  %v65 = vunpack.c.l.b16 %v26
  %v66 = vunpack.c.l.b16 %v27
  %v67 = vunpack.c.l.b16 %v28
  %v68 = vunpack.c.l.b16 %v29
  %v69 = vunpack.c.l.b16 %v30
  %v70 = vunpack.c.l.b16 %v31
  %v71 = vpack.c.b16 %v56, %v55
  %v72 = vpack.c.b16 %v58, %v57
  %v73 = vpack.c.b16 %v60, %v59
  %v74 = vpack.c.b16 %v62, %v61
  %v75 = vpack.c.b16 %v64, %v63
  %v76 = vpack.c.b16 %v66, %v65
  %v77 = vpack.c.b16 %v68, %v67
  %v78 = vpack.c.b16 %v70, %v69
  %87 = vmatprep.subr.bf16.mxu0 0
  %88 = vmatpush1.bf16.msra.mxu0 %v78
  %89 = vmatprep.subr.bf16.mxu0 0
  %90 = vmatpush1.bf16.msra.mxu0 %v77
  %91 = vmatprep.subr.bf16.mxu0 0
  %92 = vmatpush1.bf16.msra.mxu0 %v76
  %93 = vmatprep.subr.bf16.mxu0 0
  %94 = vmatpush1.bf16.msra.mxu0 %v75
  %95 = vmatprep.subr.bf16.mxu0 0
  %96 = vmatpush1.bf16.msra.mxu0 %v74
  %97 = vmatprep.subr.bf16.mxu0 0
  %98 = vmatpush1.bf16.msra.mxu0 %v73
  %99 = vmatprep.subr.bf16.mxu0 0
  %100 = vmatpush1.bf16.msra.mxu0 %v72
  %101 = vmatprep.subr.bf16.mxu0 0
  %102 = vmatpush1.bf16.msra.mxu0 %v71
  %103 = vmatprep.subr.bf16.mxu0 0
  %104 = vmatpush2.bf16.msra.mxu0 0
  %105 = vmatprep.subr.bf16.mxu0 0
  %106 = vmatpush2.bf16.msra.mxu0 0
  %107 = vmatprep.subr.bf16.mxu0 0
  %108 = vmatpush2.bf16.msra.mxu0 0
  %109 = vmatprep.subr.bf16.mxu0 0
  %110 = vmatpush2.bf16.msra.mxu0 0
  %111 = vmatprep.subr.bf16.mxu0 0
  %112 = vmatpush2.bf16.msra.mxu0 0
  %113 = vmatprep.subr.bf16.mxu0 0
  %114 = vmatpush2.bf16.msra.mxu0 0
  %115 = vmatprep.subr.bf16.mxu0 0
  %116 = vmatpush2.bf16.msra.mxu0 0
  %117 = vmatprep.subr.bf16.mxu0 0
  %118 = vmatpush2.bf16.msra.mxu0 0
  %119 = vmatprep.mubr.bf16.mxu0 0
  %120 = vmatmul.mubr.bf16.gmra.mxu0 %v15
  %v121 = vpop.f32.mrf.mxu0
  %v122 = vadd.f32 %v37, %v121
  %v123 = vpop.f32.mrf.mxu0
  %v124 = vpop.f32.mrf.mxu0
  %v125 = vpop.f32.mrf.mxu0
  %126 = vdwg.mxu0
  %vm127 = vcmp.gt.f32.partialorder %v122, 0.0
  %v128 = vmul.f32 %v122, 0.2
  %v129 = vsel %vm127, %v122, %v128
  %v130 = vpack.c.bf16 %v129, %v129
  %vm131 = vcmask 125952
  %132 = vst.msk [vmem:[%s3] sm:$0xf] %vm131, %v130
  // Predicated region
  $region14: #{vae_forward.13} parent=0 // pred_check
    _
  $region15: #{vae_forward.13} parent=0 // pred_check_branch
    %134 = sbr.rel (0) target = $region17
  $region16: #{vae_forward.13} parent=0 // pred_region
    _
  $region17: #{vae_forward.13} parent=0 // pred_fallthru
    _
  // Predicated region
  $region18: #{vae_forward.13} parent=0 // pred_check
    _
  $region19: #{vae_forward.13} parent=0 // pred_check_branch
    %136 = sbr.rel (0) target = $region21
  $region20: #{vae_forward.13} parent=0 // pred_region
    _
  $region21: #{vae_forward.13} parent=0 // pred_fallthru
    _

// kernel: vae_forward.14
$region0: #{vae_forward.14}
  #allocation0 [shape = 'u32[]', space=smem, size = 0x4, offset = 0x4, fixed_abs, tag = 'smem constant byte address 0x4 - core index']
  #allocation1 [shape = 'u32[144,128]{1,0:T(1,128)}', space=vmem, size = 0x12000, scoped, tag = 'internal scratch']
  %s0 = inlined_call_operand.vmem [shape: bf16[2,256], index: 0, kind: input, shape index: {}]
  %s1 = inlined_call_operand.vmem [shape: bf16[256,32], index: 1, kind: input, shape index: {}]
  %s2 = inlined_call_operand.vmem [shape: f32[1,32], index: 2, kind: input, shape index: {}]
  %s3 = inlined_call_operand.vmem [shape: f32[32,8], index: 3, kind: input, shape index: {}]
  %s4 = inlined_call_operand.vmem [shape: f32[1,8], index: 4, kind: input, shape index: {}]
  %s5 = inlined_call_operand.vmem [shape: f32[32,8], index: 5, kind: input, shape index: {}]
  %s6 = inlined_call_operand.vmem [shape: f32[1,8], index: 6, kind: input, shape index: {}]
  %s7 = inlined_call_operand.vmem [shape: f32[2,8], index: 7, kind: input, shape index: {}]
  %s8 = inlined_call_operand.hbm [shape: f32[2,8], index: 8, kind: output, shape index: {0}]
  %s9 = inlined_call_operand.hbm [shape: f32[2,8], index: 9, kind: output, shape index: {1}]
  %s10 = inlined_call_operand.vmem [shape: f32[2,8], index: 10, kind: output, shape index: {2}]
  %11 = xla_tuple %s8, %s9, %s10
  %s12 = sld [smem:[#allocation0]]
  $region58: #{vae_forward.14} parent=0
    _
  %s14 = ssub.s32 1, %s12
  %s15 = scalar_select 0, %s14, %s12
  $region1: #{vae_forward.14} parent=0
    #allocation2 [shape = 'u8[1024]{0}', space=vmem, size = 0x400, scoped, tag = 'output window, operand 0, single buffered']
    #allocation3 [shape = 's32[1]{0}', space=sflag, size = 0x4, scoped, tag = 'scoped memory for vae_forward.14']
    #allocation4 [shape = 'u8[1024]{0}', space=vmem, size = 0x400, scoped, tag = 'output window, operand 1, single buffered']
    #allocation5 [shape = 's32[1]{0}', space=sflag, size = 0x4, scoped, tag = 'scoped memory for vae_forward.14']
    %16 = vsyncpa [#allocation3], 0
    %17 = vsyncpa [#allocation5], 0
    // Predicated region
    $region2: #{vae_forward.14} parent=1 // pred_check
      _
    $region3: #{vae_forward.14} parent=1 // pred_check_branch
      %19 = sbr.rel (0) target = $region5
    $region4: #{vae_forward.14} parent=1 // pred_region
      _
    $region5: #{vae_forward.14} parent=1 // pred_fallthru
      _
    // Predicated region
    $region6: #{vae_forward.14} parent=1 // pred_check
      _
    $region7: #{vae_forward.14} parent=1 // pred_check_branch
      %21 = sbr.rel (0) target = $region9
    $region8: #{vae_forward.14} parent=1 // pred_region
      _
    $region9: #{vae_forward.14} parent=1 // pred_fallthru
      _
    // Predicated region
    $region10: #{vae_forward.14} parent=1 // pred_check
      _
    $region11: #{vae_forward.14} parent=1 // pred_check_branch
      %23 = sbr.rel (0) target = $region13
    $region12: #{vae_forward.14} parent=1 // pred_region
      _
    $region13: #{vae_forward.14} parent=1 // pred_fallthru
      _
    // Predicated region
    $region14: #{vae_forward.14} parent=1 // pred_check
      _
    $region15: #{vae_forward.14} parent=1 // pred_check_branch
      %25 = sbr.rel (0) target = $region17
    $region16: #{vae_forward.14} parent=1 // pred_region
      _
    $region17: #{vae_forward.14} parent=1 // pred_fallthru
      _
    // Predicated region
    $region18: #{vae_forward.14} parent=1 // pred_check
      _
    $region19: #{vae_forward.14} parent=1 // pred_check_branch
      %27 = sbr.rel (0) target = $region21
    $region20: #{vae_forward.14} parent=1 // pred_region
      _
    $region21: #{vae_forward.14} parent=1 // pred_fallthru
      _
    // Predicated region
    $region22: #{vae_forward.14} parent=1 // pred_check
      _
    $region23: #{vae_forward.14} parent=1 // pred_check_branch
      %29 = sbr.rel (0) target = $region25
    $region24: #{vae_forward.14} parent=1 // pred_region
      _
    $region25: #{vae_forward.14} parent=1 // pred_fallthru
      _
    // Predicated region
    $region26: #{vae_forward.14} parent=1 // pred_check
      _
    $region27: #{vae_forward.14} parent=1 // pred_check_branch
      %31 = sbr.rel (0) target = $region29
    $region28: #{vae_forward.14} parent=1 // pred_region
      _
    $region29: #{vae_forward.14} parent=1 // pred_fallthru
      _
    // Predicated region
    $region30: #{vae_forward.14} parent=1 // pred_check
      _
    $region31: #{vae_forward.14} parent=1 // pred_check_branch
      %33 = sbr.rel (0) target = $region33
    $region32: #{vae_forward.14} parent=1 // pred_region
      _
    $region33: #{vae_forward.14} parent=1 // pred_fallthru
      _
    %v35 = vld [vmem:[%s0] sm:$0x3]
    %v36 = vld [vmem:[%s1] sm:$0xf]
    %v37 = vld [vmem:[%s1 + $0x4] sm:$0xf]
    %v38 = vld [vmem:[%s1 + $0x8] sm:$0xf]
    %v39 = vld [vmem:[%s1 + $0xc] sm:$0xf]
    %v40 = vld [vmem:[%s1 + $0x10] sm:$0xf]
    %v41 = vld [vmem:[%s1 + $0x14] sm:$0xf]
    %v42 = vld [vmem:[%s1 + $0x18] sm:$0xf]
    %v43 = vld [vmem:[%s1 + $0x1c] sm:$0xf]
    %v44 = vld [vmem:[%s1 + $0x20] sm:$0xf]
    %v45 = vld [vmem:[%s1 + $0x24] sm:$0xf]
    %v46 = vld [vmem:[%s1 + $0x28] sm:$0xf]
    %v47 = vld [vmem:[%s1 + $0x2c] sm:$0xf]
    %v48 = vld [vmem:[%s1 + $0x30] sm:$0xf]
    %v49 = vld [vmem:[%s1 + $0x34] sm:$0xf]
    %v50 = vld [vmem:[%s1 + $0x38] sm:$0xf]
    %v51 = vld [vmem:[%s1 + $0x3c] sm:$0xf]
    %v52 = vld [vmem:[%s1 + $0x40] sm:$0xf]
    %v53 = vld [vmem:[%s1 + $0x44] sm:$0xf]
    %v54 = vld [vmem:[%s1 + $0x48] sm:$0xf]
    %v55 = vld [vmem:[%s1 + $0x4c] sm:$0xf]
    %v56 = vld [vmem:[%s1 + $0x50] sm:$0xf]
    %v57 = vld [vmem:[%s1 + $0x54] sm:$0xf]
    %v58 = vld [vmem:[%s1 + $0x58] sm:$0xf]
    %v59 = vld [vmem:[%s1 + $0x5c] sm:$0xf]
    %v60 = vld [vmem:[%s1 + $0x60] sm:$0xf]
    %v61 = vld [vmem:[%s1 + $0x64] sm:$0xf]
    %v62 = vld [vmem:[%s1 + $0x68] sm:$0xf]
    %v63 = vld [vmem:[%s1 + $0x6c] sm:$0xf]
    %v64 = vld [vmem:[%s1 + $0x70] sm:$0xf]
    %v65 = vld [vmem:[%s1 + $0x74] sm:$0xf]
    %v66 = vld [vmem:[%s1 + $0x78] sm:$0xf]
    %v67 = vld [vmem:[%s1 + $0x7c] sm:$0xf]
    %v68 = vld [vmem:[%s2] sm:$0x1]
    %v70 = vlaneseq
    %v71 = vshrl.u32 %v70, 7
    %v72 = vsub.s32 0, %v71
    %v73 = vrot.slane %v68, %v72
    %v77 = vunpack.c.l.s4 1966171168
    %v78 = vunpack.c.0.s8 %v77
    %v79 = vlaneseq
    %v80 = vshrl.u32 %v79, 7
    %v81 = vsub.s32 %v78, %v80
    %v82 = vrot.slane %v35, %v81
    %v83 = vcombine.high %v82, %v82
    %v85 = vunpack.c.l.s4 1966171168
    %v86 = vunpack.c.0.s8 %v85
    %v87 = vlaneseq
    %v88 = vshrl.u32 %v87, 7
    %v89 = vsub.s32 %v86, %v88
    %v90 = vrot.slane %v82, %v89
    %v92 = vunpack.c.l.s4 1966171168
    %v93 = vunpack.c.0.s8 %v92
    %v94 = vlaneseq
    %v95 = vshrl.u32 %v94, 7
    %v96 = vsub.s32 %v93, %v95
    %v97 = vrot.slane %v83, %v96
    %v132 = vunpack.c.l.b16 %v36
    %v133 = vunpack.c.l.b16 %v37
    %v134 = vunpack.c.l.b16 %v38
    %v135 = vunpack.c.l.b16 %v39
    %v136 = vunpack.c.l.b16 %v40
    %v137 = vunpack.c.l.b16 %v41
    %v138 = vunpack.c.l.b16 %v42
    %v139 = vunpack.c.l.b16 %v43
    %v140 = vunpack.c.l.b16 %v44
    %v141 = vunpack.c.l.b16 %v45
    %v142 = vunpack.c.l.b16 %v46
    %v143 = vunpack.c.l.b16 %v47
    %v144 = vunpack.c.l.b16 %v48
    %v145 = vunpack.c.l.b16 %v49
    %v146 = vunpack.c.l.b16 %v50
    %v147 = vunpack.c.l.b16 %v51
    %v148 = vunpack.c.l.b16 %v52
    %v149 = vunpack.c.l.b16 %v53
    %v150 = vunpack.c.l.b16 %v54
    %v151 = vunpack.c.l.b16 %v55
    %v152 = vunpack.c.l.b16 %v56
    %v153 = vunpack.c.l.b16 %v57
    %v154 = vunpack.c.l.b16 %v58
    %v155 = vunpack.c.l.b16 %v59
    %v156 = vunpack.c.l.b16 %v60
    %v157 = vunpack.c.l.b16 %v61
    %v158 = vunpack.c.l.b16 %v62
    %v159 = vunpack.c.l.b16 %v63
    %v160 = vunpack.c.l.b16 %v64
    %v161 = vunpack.c.l.b16 %v65
    %v162 = vunpack.c.l.b16 %v66
    %v163 = vunpack.c.l.b16 %v67
    %v164 = vpack.c.b16 %v133, %v132
    %v165 = vpack.c.b16 %v135, %v134
    %v166 = vpack.c.b16 %v137, %v136
    %v167 = vpack.c.b16 %v139, %v138
    %v168 = vpack.c.b16 %v141, %v140
    %v169 = vpack.c.b16 %v143, %v142
    %v170 = vpack.c.b16 %v145, %v144
    %v171 = vpack.c.b16 %v147, %v146
    %v172 = vpack.c.b16 %v149, %v148
    %v173 = vpack.c.b16 %v151, %v150
    %v174 = vpack.c.b16 %v153, %v152
    %v175 = vpack.c.b16 %v155, %v154
    %v176 = vpack.c.b16 %v157, %v156
    %v177 = vpack.c.b16 %v159, %v158
    %v178 = vpack.c.b16 %v161, %v160
    %v179 = vpack.c.b16 %v163, %v162
    %196 = vmatprep.subr.bf16.mxu0 0
    %197 = vmatpush1.bf16.msra.mxu0 %v171
    %198 = vmatprep.subr.bf16.mxu0 0
    %199 = vmatpush1.bf16.msra.mxu0 %v170
    %200 = vmatprep.subr.bf16.mxu0 0
    %201 = vmatpush1.bf16.msra.mxu0 %v169
    %202 = vmatprep.subr.bf16.mxu0 0
    %203 = vmatpush1.bf16.msra.mxu0 %v168
    %204 = vmatprep.subr.bf16.mxu0 0
    %205 = vmatpush1.bf16.msra.mxu0 %v167
    %206 = vmatprep.subr.bf16.mxu0 0
    %207 = vmatpush1.bf16.msra.mxu0 %v166
    %208 = vmatprep.subr.bf16.mxu0 0
    %209 = vmatpush1.bf16.msra.mxu0 %v165
    %210 = vmatprep.subr.bf16.mxu0 0
    %211 = vmatpush1.bf16.msra.mxu0 %v164
    %212 = vmatprep.subr.bf16.mxu0 0
    %213 = vmatpush2.bf16.msra.mxu0 %v179
    %214 = vmatprep.subr.bf16.mxu0 0
    %215 = vmatpush2.bf16.msra.mxu0 %v178
    %216 = vmatprep.subr.bf16.mxu0 0
    %217 = vmatpush2.bf16.msra.mxu0 %v177
    %218 = vmatprep.subr.bf16.mxu0 0
    %219 = vmatpush2.bf16.msra.mxu0 %v176
    %220 = vmatprep.subr.bf16.mxu0 0
    %221 = vmatpush2.bf16.msra.mxu0 %v175
    %222 = vmatprep.subr.bf16.mxu0 0
    %223 = vmatpush2.bf16.msra.mxu0 %v174
    %224 = vmatprep.subr.bf16.mxu0 0
    %225 = vmatpush2.bf16.msra.mxu0 %v173
    %226 = vmatprep.subr.bf16.mxu0 0
    %227 = vmatpush2.bf16.msra.mxu0 %v172
    %228 = vmatprep.mubr.bf16.mxu0 %v97
    %229 = vmatmul.mubr.bf16.gmra.mxu0 %v90
    %v230 = vpop.f32.mrf.mxu0
    %v231 = vadd.f32 %v73, %v230
    %v232 = vpop.f32.mrf.mxu0
    %v233 = vpop.f32.mrf.mxu0
    %v234 = vpop.f32.mrf.mxu0
    %235 = vdwg.mxu0
    %vm236 = vcmp.gt.f32.partialorder %v231, 0.0
    %v237 = vmul.f32 %v231, 0.2
    %v238 = vsel %vm236, %v231, %v237
    %v239 = vld [vmem:[%s3] sm:$0xff]
    %v240 = vld [vmem:[%s3 + $0x8] sm:$0xff]
    %v241 = vld [vmem:[%s3 + $0x10] sm:$0xff]
    %v242 = vld [vmem:[%s3 + $0x18] sm:$0xff]
    %v243 = vld [vmem:[%s4] sm:$0x1]
    %v245 = vlaneseq
    %v246 = vshrl.u32 %v245, 7
    %v247 = vsub.s32 0, %v246
    %v248 = vrot.slane %v243, %v247
    %vm250 = vcmask 261120
    %v252 = vsel %vm250, %v238, 0
    %254 = vmatprep.subr.mxu0 0.0
    %255 = vmatpush1.msra.mxu0 0.0
    %256 = vmatprep.subr.mxu0 0.0
    %257 = vmatpush1.msra.mxu0 0.0
    %258 = vmatprep.subr.mxu0 0.0
    %259 = vmatpush1.msra.mxu0 0.0
    %260 = vmatprep.subr.mxu0 0.0
    %261 = vmatpush1.msra.mxu0 0.0
    %262 = vmatprep.subr.mxu0 0.0
    %263 = vmatpush1.msra.mxu0 0.0
    %264 = vmatprep.subr.mxu0 0.0
    %265 = vmatpush1.msra.mxu0 0.0
    %266 = vmatprep.subr.mxu0 0.0
    %267 = vmatpush1.msra.mxu0 0.0
    %268 = vmatprep.subr.mxu0 0.0
    %269 = vmatpush1.msra.mxu0 0.0
    %270 = vmatprep.subr.mxu0 0.0
    %271 = vmatpush1.msra.mxu0 0.0
    %272 = vmatprep.subr.mxu0 0.0
    %273 = vmatpush1.msra.mxu0 0.0
    %274 = vmatprep.subr.mxu0 0.0
    %275 = vmatpush1.msra.mxu0 0.0
    %276 = vmatprep.subr.mxu0 0.0
    %277 = vmatpush1.msra.mxu0 0.0
    %278 = vmatprep.subr.mxu0 0.0
    %279 = vmatpush1.msra.mxu0 %v242
    %280 = vmatprep.subr.mxu0 0.0
    %281 = vmatpush1.msra.mxu0 %v241
    %282 = vmatprep.subr.mxu0 0.0
    %283 = vmatpush1.msra.mxu0 %v240
    %284 = vmatprep.subr.mxu0 0.0
    %285 = vmatpush1.msra.mxu0 %v239
    %286 = vmatprep.subr.mxu0 0.0
    %287 = vmatpush2.msra.mxu0 0.0
    %288 = vmatprep.subr.mxu0 0.0
    %289 = vmatpush2.msra.mxu0 0.0
    %290 = vmatprep.subr.mxu0 0.0
    %291 = vmatpush2.msra.mxu0 0.0
    %292 = vmatprep.subr.mxu0 0.0
    %293 = vmatpush2.msra.mxu0 0.0
    %294 = vmatprep.subr.mxu0 0.0
    %295 = vmatpush2.msra.mxu0 0.0
    %296 = vmatprep.subr.mxu0 0.0
    %297 = vmatpush2.msra.mxu0 0.0
    %298 = vmatprep.subr.mxu0 0.0
    %299 = vmatpush2.msra.mxu0 0.0
    %300 = vmatprep.subr.mxu0 0.0
    %301 = vmatpush2.msra.mxu0 0.0
    %302 = vmatprep.subr.mxu0 0.0
    %303 = vmatpush2.msra.mxu0 0.0
    %304 = vmatprep.subr.mxu0 0.0
    %305 = vmatpush2.msra.mxu0 0.0
    %306 = vmatprep.subr.mxu0 0.0
    %307 = vmatpush2.msra.mxu0 0.0
    %308 = vmatprep.subr.mxu0 0.0
    %309 = vmatpush2.msra.mxu0 0.0
    %310 = vmatprep.subr.mxu0 0.0
    %311 = vmatpush2.msra.mxu0 0.0
    %312 = vmatprep.subr.mxu0 0.0
    %313 = vmatpush2.msra.mxu0 0.0
    %314 = vmatprep.subr.mxu0 0.0
    %315 = vmatpush2.msra.mxu0 0.0
    %316 = vmatprep.subr.mxu0 0.0
    %317 = vmatpush2.msra.mxu0 0.0
    %318 = vmatprep.mubr.f32.mxu0 0.0
    %319 = vmatmul.mubr.f32.gmra.mxu0 %v252
    %v320 = vpop.f32.mrf.mxu0
    %v321 = vadd.f32 %v248, %v320
    %v322 = vpop.f32.mrf.mxu0
    %323 = vdwg.mxu0
    %v324 = vld [vmem:[%s5] sm:$0xff]
    %v325 = vld [vmem:[%s5 + $0x8] sm:$0xff]
    %v326 = vld [vmem:[%s5 + $0x10] sm:$0xff]
    %v327 = vld [vmem:[%s5 + $0x18] sm:$0xff]
    %v328 = vld [vmem:[%s6] sm:$0x1]
    %v330 = vlaneseq
    %v331 = vshrl.u32 %v330, 7
    %v332 = vsub.s32 0, %v331
    %v333 = vrot.slane %v328, %v332
    %335 = vmatprep.subr.mxu0 0.0
    %336 = vmatpush1.msra.mxu0 0.0
    %337 = vmatprep.subr.mxu0 0.0
    %338 = vmatpush1.msra.mxu0 0.0
    %339 = vmatprep.subr.mxu0 0.0
    %340 = vmatpush1.msra.mxu0 0.0
    %341 = vmatprep.subr.mxu0 0.0
    %342 = vmatpush1.msra.mxu0 0.0
    %343 = vmatprep.subr.mxu0 0.0
    %344 = vmatpush1.msra.mxu0 0.0
    %345 = vmatprep.subr.mxu0 0.0
    %346 = vmatpush1.msra.mxu0 0.0
    %347 = vmatprep.subr.mxu0 0.0
    %348 = vmatpush1.msra.mxu0 0.0
    %349 = vmatprep.subr.mxu0 0.0
    %350 = vmatpush1.msra.mxu0 0.0
    %351 = vmatprep.subr.mxu0 0.0
    %352 = vmatpush1.msra.mxu0 0.0
    %353 = vmatprep.subr.mxu0 0.0
    %354 = vmatpush1.msra.mxu0 0.0
    %355 = vmatprep.subr.mxu0 0.0
    %356 = vmatpush1.msra.mxu0 0.0
    %357 = vmatprep.subr.mxu0 0.0
    %358 = vmatpush1.msra.mxu0 0.0
    %359 = vmatprep.subr.mxu0 0.0
    %360 = vmatpush1.msra.mxu0 %v327
    %361 = vmatprep.subr.mxu0 0.0
    %362 = vmatpush1.msra.mxu0 %v326
    %363 = vmatprep.subr.mxu0 0.0
    %364 = vmatpush1.msra.mxu0 %v325
    %365 = vmatprep.subr.mxu0 0.0
    %366 = vmatpush1.msra.mxu0 %v324
    %367 = vmatprep.subr.mxu0 0.0
    %368 = vmatpush2.msra.mxu0 0.0
    %369 = vmatprep.subr.mxu0 0.0
    %370 = vmatpush2.msra.mxu0 0.0
    %371 = vmatprep.subr.mxu0 0.0
    %372 = vmatpush2.msra.mxu0 0.0
    %373 = vmatprep.subr.mxu0 0.0
    %374 = vmatpush2.msra.mxu0 0.0
    %375 = vmatprep.subr.mxu0 0.0
    %376 = vmatpush2.msra.mxu0 0.0
    %377 = vmatprep.subr.mxu0 0.0
    %378 = vmatpush2.msra.mxu0 0.0
    %379 = vmatprep.subr.mxu0 0.0
    %380 = vmatpush2.msra.mxu0 0.0
    %381 = vmatprep.subr.mxu0 0.0
    %382 = vmatpush2.msra.mxu0 0.0
    %383 = vmatprep.subr.mxu0 0.0
    %384 = vmatpush2.msra.mxu0 0.0
    %385 = vmatprep.subr.mxu0 0.0
    %386 = vmatpush2.msra.mxu0 0.0
    %387 = vmatprep.subr.mxu0 0.0
    %388 = vmatpush2.msra.mxu0 0.0
    %389 = vmatprep.subr.mxu0 0.0
    %390 = vmatpush2.msra.mxu0 0.0
    %391 = vmatprep.subr.mxu0 0.0
    %392 = vmatpush2.msra.mxu0 0.0
    %393 = vmatprep.subr.mxu0 0.0
    %394 = vmatpush2.msra.mxu0 0.0
    %395 = vmatprep.subr.mxu0 0.0
    %396 = vmatpush2.msra.mxu0 0.0
    %397 = vmatprep.subr.mxu0 0.0
    %398 = vmatpush2.msra.mxu0 0.0
    %399 = vmatprep.mubr.f32.mxu0 0.0
    %400 = vmatmul.mubr.f32.gmra.mxu0 %v252
    %v401 = vpop.f32.mrf.mxu0
    %v402 = vadd.f32 %v333, %v401
    %v403 = vpop.f32.mrf.mxu0
    %404 = vdwg.mxu0
    %vm405 = vcmask 58368
    %406 = vst.msk [vmem:[#allocation2] sm:$0x3] %vm405, %v321
    %407 = vst.msk [vmem:[#allocation4] sm:$0x3] %vm405, %v402
    %v408 = vld [vmem:[%s7] sm:$0x3]
    %v409 = vmul.f32 %v402, 0.5
    %v410 = vmul.f32 %v409, 1.442695
    %v411 = vpow.pop %v410
    %v412 = vmul.f32 %v408, %v411
    %v413 = vadd.f32 %v321, %v412
    %414 = vst.msk [vmem:[%s10] sm:$0x3] %vm405, %v413
    // Predicated region
    $region34: #{vae_forward.14} parent=1 // pred_check
      _
    $region35: #{vae_forward.14} parent=1 // pred_check_branch
      %416 = sbr.rel (0) target = $region37
    $region36: #{vae_forward.14} parent=1 // pred_region
      %s418 = ssub.s32 32, 32
      %419 = vsyncadd [#allocation3], %s418
      %s421 = sshll.u32 [#allocation2], 4
      %s422 = int_to_ptr.vmem [resolvable:$true] %s421
      %424 = dma.vmem_to_hbm [thread:$0]  %s422, 32, %s8, [#allocation3]
    $region37: #{vae_forward.14} parent=1 // pred_fallthru
      _
    // Predicated region
    $region38: #{vae_forward.14} parent=1 // pred_check
      _
    $region39: #{vae_forward.14} parent=1 // pred_check_branch
      %426 = sbr.rel (0) target = $region41
    $region40: #{vae_forward.14} parent=1 // pred_region
      %s428 = ssub.s32 32, 32
      %429 = vsyncadd [#allocation5], %s428
      %s431 = sshll.u32 [#allocation4], 4
      %s432 = int_to_ptr.vmem [resolvable:$true] %s431
      %434 = dma.vmem_to_hbm [thread:$0]  %s432, 32, %s9, [#allocation5]
    $region41: #{vae_forward.14} parent=1 // pred_fallthru
      _
    // Predicated region
    $region42: #{vae_forward.14} parent=1 // pred_check
      _
    $region43: #{vae_forward.14} parent=1 // pred_check_branch
      %436 = sbr.rel (0) target = $region45
    $region44: #{vae_forward.14} parent=1 // pred_region
      _
    $region45: #{vae_forward.14} parent=1 // pred_fallthru
      _
    // Predicated region
    $region46: #{vae_forward.14} parent=1 // pred_check
      _
    $region47: #{vae_forward.14} parent=1 // pred_check_branch
      %438 = sbr.rel (0) target = $region49
    $region48: #{vae_forward.14} parent=1 // pred_region
      %439 = dma.done [#allocation3], 32
    $region49: #{vae_forward.14} parent=1 // pred_fallthru
      _
    // Predicated region
    $region50: #{vae_forward.14} parent=1 // pred_check
      _
    $region51: #{vae_forward.14} parent=1 // pred_check_branch
      %441 = sbr.rel (0) target = $region53
    $region52: #{vae_forward.14} parent=1 // pred_region
      %442 = dma.done [#allocation5], 32
    $region53: #{vae_forward.14} parent=1 // pred_fallthru
      _
    // Predicated region
    $region54: #{vae_forward.14} parent=1 // pred_check
      _
    $region55: #{vae_forward.14} parent=1 // pred_check_branch
      %444 = sbr.rel (0) target = $region57
    $region56: #{vae_forward.14} parent=1 // pred_region
      _
    $region57: #{vae_forward.14} parent=1 // pred_fallthru
      _
    %445 = vsyncpa [#allocation3], 1
    %446 = vsyncpa [#allocation5], 1

// kernel: tile.53
$region0: #{tile.53}
  #allocation0 [shape = 's32[1]{0}', space=sflag, size = 0x4, scoped, tag = 'scoped memory for tile.53']
  %s0 = inlined_call_operand.vmem [shape: f32[32], index: 0, kind: input, shape index: {}]
  %s1 = inlined_call_operand.vmem [shape: f32[4,32], index: 1, kind: output, shape index: {}]
  // Predicated region
  $region2: #{tile.53} parent=0 // pred_check
    _
  $region3: #{tile.53} parent=0 // pred_check_branch
    %3 = sbr.rel (0) target = $region5
  $region4: #{tile.53} parent=0 // pred_region
    _
  $region5: #{tile.53} parent=0 // pred_fallthru
    _
  %v4 = vld [vmem:[%s0] ss:$0 sm:$0xff]
  %5 = vst [vmem:[%s1] sm:$0xf] %v4

// kernel: mul.75
$region0: #{mul.75}
  %s0 = inlined_call_operand.vmem [shape: f32[4,32], index: 0, kind: input, shape index: {}]
  %s1 = inlined_call_operand.vmem [shape: f32[128], index: 1, kind: output, shape index: {}]
  $region1: #{mul.75} parent=0
    #allocation0 [shape = 'u8[4096]{0}', space=vmem, size = 0x1000, scoped, tag = 'scoped mem for output reshape']
    #allocation1 [shape = 'u8[4096]{0}', space=vmem, size = 0x1000, scoped, tag = 'scoped mem for input reshape']
    %s3 = sshll.u32 1, 4
    %s4 = ssub.s32 %s3, 1
    %v5 = vld [vmem:[%s0] sm:%s4]
    %6 = vst [vmem:[#allocation1] sm:%s4] %v5
    %v7 = vld [vmem:[#allocation1] sm:$0x1]
    %vm8 = vcmask 261120
    %9 = vst.msk [vmem:[#allocation0] sm:$0x1] %vm8, %v7
    %s10 = scalar_lea.vmem [#allocation1], 3
    %v11 = vld [vmem:[%s10] sm:$0x1]
    %12 = vrot.lane.b32.xlu0 %v11, 96
    %v13 = vpop.permute.xlu0 %12
    %vm14 = vcmask 1048320
    %15 = vst.msk [vmem:[#allocation0] sm:$0x1] %vm14, %v13
    %s16 = scalar_lea.vmem [#allocation1], 2
    %v17 = vld [vmem:[%s16] sm:$0x1]
    %18 = vrot.lane.b32.xlu0 %v17, 64
    %v19 = vpop.permute.xlu0 %18
    %vm20 = vcmask 785920
    %21 = vst.msk [vmem:[#allocation0] sm:$0x1] %vm20, %v19
    %s22 = scalar_lea.vmem [#allocation1], 1
    %v23 = vld [vmem:[%s22] sm:$0x1]
    %24 = vrot.lane.b32.xlu0 %v23, 32
    %v25 = vpop.permute.xlu0 %24
    %vm26 = vcmask 523520
    %27 = vst.msk [vmem:[#allocation0] sm:$0x1] %vm26, %v25
    %s29 = sshll.u32 1, 1
    %s30 = ssub.s32 %s29, 1
    %v32 = vld [vmem:[#allocation0] sm:%s30]
    %s33 = sshll.u32 1, 1
    %s34 = ssub.s32 %s33, 1
    %35 = vst [vmem:[%s1] sm:%s34] %v32

// kernel: tile.59
$region0: #{tile.59}
  %s0 = inlined_call_operand.vmem [shape: f32[4,32], index: 0, kind: input, shape index: {}]
  %s1 = inlined_call_operand.vmem [shape: f32[1,128], index: 1, kind: output, shape index: {}]
  $region1: #{tile.59} parent=0
    #allocation0 [shape = 'u8[4096]{0}', space=vmem, size = 0x1000, scoped, tag = 'scoped mem for output reshape']
    #allocation1 [shape = 'u8[4096]{0}', space=vmem, size = 0x1000, scoped, tag = 'scoped mem for input reshape']
    %s3 = sshll.u32 1, 4
    %s4 = ssub.s32 %s3, 1
    %v5 = vld [vmem:[%s0] sm:%s4]
    %6 = vst [vmem:[#allocation1] sm:%s4] %v5
    %v7 = vld [vmem:[#allocation1] sm:$0x1]
    %vm8 = vcmask 261120
    %9 = vst.msk [vmem:[#allocation0] sm:$0x1] %vm8, %v7
    %s10 = scalar_lea.vmem [#allocation1], 3
    %v11 = vld [vmem:[%s10] sm:$0x1]
    %12 = vrot.lane.b32.xlu0 %v11, 96
    %v13 = vpop.permute.xlu0 %12
    %vm14 = vcmask 1048320
    %15 = vst.msk [vmem:[#allocation0] sm:$0x1] %vm14, %v13
    %s16 = scalar_lea.vmem [#allocation1], 2
    %v17 = vld [vmem:[%s16] sm:$0x1]
    %18 = vrot.lane.b32.xlu0 %v17, 64
    %v19 = vpop.permute.xlu0 %18
    %vm20 = vcmask 785920
    %21 = vst.msk [vmem:[#allocation0] sm:$0x1] %vm20, %v19
    %s22 = scalar_lea.vmem [#allocation1], 1
    %v23 = vld [vmem:[%s22] sm:$0x1]
    %24 = vrot.lane.b32.xlu0 %v23, 32
    %v25 = vpop.permute.xlu0 %24
    %vm26 = vcmask 523520
    %27 = vst.msk [vmem:[#allocation0] sm:$0x1] %vm26, %v25
    %s29 = sshll.u32 1, 1
    %s30 = ssub.s32 %s29, 1
    %v32 = vld [vmem:[#allocation0] sm:%s30]
    %s33 = sshll.u32 1, 1
    %s34 = ssub.s32 %s33, 1
    %35 = vst [vmem:[%s1] sm:%s34] %v32

// kernel: vae_forward.15
$region0: #{vae_forward.15}
  #allocation0 [shape = 'u32[]', space=smem, size = 0x4, offset = 0x4, fixed_abs, tag = 'smem constant byte address 0x4 - core index']
  #allocation1 [shape = 'u32[144,128]{1,0:T(1,128)}', space=vmem, size = 0x12000, scoped, tag = 'internal scratch']
  %s0 = inlined_call_operand.vmem [shape: bf16[2,72], index: 0, kind: input, shape index: {}]
  %s1 = inlined_call_operand.vmem [shape: bf16[72,128], index: 1, kind: input, shape index: {}]
  %s2 = inlined_call_operand.vmem [shape: f32[1,128], index: 2, kind: input, shape index: {}]
  %s3 = inlined_call_operand.vmem [shape: bf16[2,128], index: 3, kind: output, shape index: {}]
  %s4 = sld [smem:[#allocation0]]
  $region22: #{vae_forward.15} parent=0
    _
  %s6 = ssub.s32 1, %s4
  %s7 = scalar_select 0, %s6, %s4
  // Predicated region
  $region2: #{vae_forward.15} parent=0 // pred_check
    _
  $region3: #{vae_forward.15} parent=0 // pred_check_branch
    %9 = sbr.rel (0) target = $region5
  $region4: #{vae_forward.15} parent=0 // pred_region
    _
  $region5: #{vae_forward.15} parent=0 // pred_fallthru
    _
  // Predicated region
  $region6: #{vae_forward.15} parent=0 // pred_check
    _
  $region7: #{vae_forward.15} parent=0 // pred_check_branch
    %11 = sbr.rel (0) target = $region9
  $region8: #{vae_forward.15} parent=0 // pred_region
    _
  $region9: #{vae_forward.15} parent=0 // pred_fallthru
    _
  // Predicated region
  $region10: #{vae_forward.15} parent=0 // pred_check
    _
  $region11: #{vae_forward.15} parent=0 // pred_check_branch
    %13 = sbr.rel (0) target = $region13
  $region12: #{vae_forward.15} parent=0 // pred_region
    _
  $region13: #{vae_forward.15} parent=0 // pred_fallthru
    _
  %v15 = vld [vmem:[%s0] sm:$0x1]
  %v16 = vld [vmem:[%s1] sm:$0xf]
  %v17 = vld [vmem:[%s1 + $0x4] sm:$0xf]
  %v18 = vld [vmem:[%s1 + $0x8] sm:$0xf]
  %v19 = vld [vmem:[%s1 + $0xc] sm:$0xf]
  %v20 = vld [vmem:[%s1 + $0x10] sm:$0xf]
  %v21 = vld [vmem:[%s1 + $0x14] sm:$0xf]
  %v22 = vld [vmem:[%s1 + $0x18] sm:$0xf]
  %v23 = vld [vmem:[%s1 + $0x1c] sm:$0xf]
  %v24 = vld [vmem:[%s1 + $0x20] sm:$0xf]
  %v25 = vld [vmem:[%s2] sm:$0x1]
  %v27 = vlaneseq
  %v28 = vshrl.u32 %v27, 7
  %v29 = vsub.s32 0, %v28
  %v30 = vrot.slane %v25, %v29
  %v41 = vunpack.c.l.b16 %v16
  %v42 = vunpack.c.l.b16 %v17
  %v43 = vunpack.c.l.b16 %v18
  %v44 = vunpack.c.l.b16 %v19
  %v45 = vunpack.c.l.b16 %v20
  %v46 = vunpack.c.l.b16 %v21
  %v47 = vunpack.c.l.b16 %v22
  %v48 = vunpack.c.l.b16 %v23
  %v49 = vunpack.c.l.b16 %v24
  %v50 = vpack.c.b16 %v42, %v41
  %v51 = vpack.c.b16 %v44, %v43
  %v52 = vpack.c.b16 %v46, %v45
  %v53 = vpack.c.b16 %v48, %v47
  %v54 = vpack.c.b16 %v49, %v49
  %vm59 = vcmask 588800
  %v61 = vsel %vm59, %v15, 0
  %vm63 = vcmask 1043456
  %v65 = vsel %vm63, %v54, 0
  %67 = vmatprep.subr.bf16.mxu0 0
  %68 = vmatpush1.bf16.msra.mxu0 0
  %69 = vmatprep.subr.bf16.mxu0 0
  %70 = vmatpush1.bf16.msra.mxu0 0
  %71 = vmatprep.subr.bf16.mxu0 0
  %72 = vmatpush1.bf16.msra.mxu0 0
  %73 = vmatprep.subr.bf16.mxu0 0
  %74 = vmatpush1.bf16.msra.mxu0 %v65
  %75 = vmatprep.subr.bf16.mxu0 0
  %76 = vmatpush1.bf16.msra.mxu0 %v53
  %77 = vmatprep.subr.bf16.mxu0 0
  %78 = vmatpush1.bf16.msra.mxu0 %v52
  %79 = vmatprep.subr.bf16.mxu0 0
  %80 = vmatpush1.bf16.msra.mxu0 %v51
  %81 = vmatprep.subr.bf16.mxu0 0
  %82 = vmatpush1.bf16.msra.mxu0 %v50
  %83 = vmatprep.subr.bf16.mxu0 0
  %84 = vmatpush2.bf16.msra.mxu0 0
  %85 = vmatprep.subr.bf16.mxu0 0
  %86 = vmatpush2.bf16.msra.mxu0 0
  %87 = vmatprep.subr.bf16.mxu0 0
  %88 = vmatpush2.bf16.msra.mxu0 0
  %89 = vmatprep.subr.bf16.mxu0 0
  %90 = vmatpush2.bf16.msra.mxu0 0
  %91 = vmatprep.subr.bf16.mxu0 0
  %92 = vmatpush2.bf16.msra.mxu0 0
  %93 = vmatprep.subr.bf16.mxu0 0
  %94 = vmatpush2.bf16.msra.mxu0 0
  %95 = vmatprep.subr.bf16.mxu0 0
  %96 = vmatpush2.bf16.msra.mxu0 0
  %97 = vmatprep.subr.bf16.mxu0 0
  %98 = vmatpush2.bf16.msra.mxu0 0
  %99 = vmatprep.mubr.bf16.mxu0 0
  %100 = vmatmul.mubr.bf16.gmra.mxu0 %v61
  %v101 = vpop.f32.mrf.mxu0
  %v102 = vadd.f32 %v30, %v101
  %v103 = vpop.f32.mrf.mxu0
  %v104 = vpop.f32.mrf.mxu0
  %v105 = vpop.f32.mrf.mxu0
  %106 = vdwg.mxu0
  %v107 = vmax.f32 %v102, 0.0
  %v108 = vpack.c.bf16 %v107, %v107
  %109 = vst [vmem:[%s3] sm:$0x1] %v108
  // Predicated region
  $region14: #{vae_forward.15} parent=0 // pred_check
    _
  $region15: #{vae_forward.15} parent=0 // pred_check_branch
    %111 = sbr.rel (0) target = $region17
  $region16: #{vae_forward.15} parent=0 // pred_region
    _
  $region17: #{vae_forward.15} parent=0 // pred_fallthru
    _
  // Predicated region
  $region18: #{vae_forward.15} parent=0 // pred_check
    _
  $region19: #{vae_forward.15} parent=0 // pred_check_branch
    %113 = sbr.rel (0) target = $region21
  $region20: #{vae_forward.15} parent=0 // pred_region
    _
  $region21: #{vae_forward.15} parent=0 // pred_fallthru
    _

// kernel: tile.63
$region0: #{tile.63}
  #allocation0 [shape = 's32[1]{0}', space=sflag, size = 0x4, scoped, tag = 'scoped memory for tile.63']
  %s0 = inlined_call_operand.vmem [shape: f32[16], index: 0, kind: input, shape index: {}]
  %s1 = inlined_call_operand.vmem [shape: f32[4,16], index: 1, kind: output, shape index: {}]
  // Predicated region
  $region2: #{tile.63} parent=0 // pred_check
    _
  $region3: #{tile.63} parent=0 // pred_check_branch
    %3 = sbr.rel (0) target = $region5
  $region4: #{tile.63} parent=0 // pred_region
    _
  $region5: #{tile.63} parent=0 // pred_fallthru
    _
  %v4 = vld [vmem:[%s0] ss:$0 sm:$0xff]
  %5 = vst [vmem:[%s1] sm:$0xf] %v4

// kernel: mul.79
$region0: #{mul.79}
  %s0 = inlined_call_operand.vmem [shape: f32[4,16], index: 0, kind: input, shape index: {}]
  %s1 = inlined_call_operand.vmem [shape: f32[64], index: 1, kind: output, shape index: {}]
  $region1: #{mul.79} parent=0
    #allocation0 [shape = 'u8[4096]{0}', space=vmem, size = 0x1000, scoped, tag = 'scoped mem for output reshape']
    #allocation1 [shape = 'u8[4096]{0}', space=vmem, size = 0x1000, scoped, tag = 'scoped mem for input reshape']
    %s3 = sshll.u32 1, 4
    %s4 = ssub.s32 %s3, 1
    %v5 = vld [vmem:[%s0] sm:%s4]
    %6 = vst [vmem:[#allocation1] sm:%s4] %v5
    %v7 = vld [vmem:[#allocation1] sm:$0x1]
    %vm8 = vcmask 130048
    %9 = vst.msk [vmem:[#allocation0] sm:$0x1] %vm8, %v7
    %s10 = scalar_lea.vmem [#allocation1], 3
    %v11 = vld [vmem:[%s10] sm:$0x1]
    %12 = vrot.lane.b32.xlu0 %v11, 48
    %v13 = vpop.permute.xlu0 %12
    %vm14 = vcmask 523648
    %15 = vst.msk [vmem:[#allocation0] sm:$0x1] %vm14, %v13
    %s16 = scalar_lea.vmem [#allocation1], 2
    %v17 = vld [vmem:[%s16] sm:$0x1]
    %18 = vrot.lane.b32.xlu0 %v17, 32
    %v19 = vpop.permute.xlu0 %18
    %vm20 = vcmask 392448
    %21 = vst.msk [vmem:[#allocation0] sm:$0x1] %vm20, %v19
    %s22 = scalar_lea.vmem [#allocation1], 1
    %v23 = vld [vmem:[%s22] sm:$0x1]
    %24 = vrot.lane.b32.xlu0 %v23, 16
    %v25 = vpop.permute.xlu0 %24
    %vm26 = vcmask 261248
    %27 = vst.msk [vmem:[#allocation0] sm:$0x1] %vm26, %v25
    %s29 = sshll.u32 1, 1
    %s30 = ssub.s32 %s29, 1
    %v32 = vld [vmem:[#allocation0] sm:%s30]
    %s33 = sshll.u32 1, 1
    %s34 = ssub.s32 %s33, 1
    %35 = vst [vmem:[%s1] sm:%s34] %v32

// kernel: tile.69
$region0: #{tile.69}
  %s0 = inlined_call_operand.vmem [shape: f32[4,16], index: 0, kind: input, shape index: {}]
  %s1 = inlined_call_operand.vmem [shape: f32[1,64], index: 1, kind: output, shape index: {}]
  $region1: #{tile.69} parent=0
    #allocation0 [shape = 'u8[4096]{0}', space=vmem, size = 0x1000, scoped, tag = 'scoped mem for output reshape']
    #allocation1 [shape = 'u8[4096]{0}', space=vmem, size = 0x1000, scoped, tag = 'scoped mem for input reshape']
    %s3 = sshll.u32 1, 4
    %s4 = ssub.s32 %s3, 1
    %v5 = vld [vmem:[%s0] sm:%s4]
    %6 = vst [vmem:[#allocation1] sm:%s4] %v5
    %v7 = vld [vmem:[#allocation1] sm:$0x1]
    %vm8 = vcmask 130048
    %9 = vst.msk [vmem:[#allocation0] sm:$0x1] %vm8, %v7
    %s10 = scalar_lea.vmem [#allocation1], 3
    %v11 = vld [vmem:[%s10] sm:$0x1]
    %12 = vrot.lane.b32.xlu0 %v11, 48
    %v13 = vpop.permute.xlu0 %12
    %vm14 = vcmask 523648
    %15 = vst.msk [vmem:[#allocation0] sm:$0x1] %vm14, %v13
    %s16 = scalar_lea.vmem [#allocation1], 2
    %v17 = vld [vmem:[%s16] sm:$0x1]
    %18 = vrot.lane.b32.xlu0 %v17, 32
    %v19 = vpop.permute.xlu0 %18
    %vm20 = vcmask 392448
    %21 = vst.msk [vmem:[#allocation0] sm:$0x1] %vm20, %v19
    %s22 = scalar_lea.vmem [#allocation1], 1
    %v23 = vld [vmem:[%s22] sm:$0x1]
    %24 = vrot.lane.b32.xlu0 %v23, 16
    %v25 = vpop.permute.xlu0 %24
    %vm26 = vcmask 261248
    %27 = vst.msk [vmem:[#allocation0] sm:$0x1] %vm26, %v25
    %s29 = sshll.u32 1, 1
    %s30 = ssub.s32 %s29, 1
    %v32 = vld [vmem:[#allocation0] sm:%s30]
    %s33 = sshll.u32 1, 1
    %s34 = ssub.s32 %s33, 1
    %35 = vst [vmem:[%s1] sm:%s34] %v32

// kernel: vae_forward.16
$region0: #{vae_forward.16}
  #allocation0 [shape = 'u32[]', space=smem, size = 0x4, offset = 0x4, fixed_abs, tag = 'smem constant byte address 0x4 - core index']
  #allocation1 [shape = 'u32[144,128]{1,0:T(1,128)}', space=vmem, size = 0x12000, scoped, tag = 'internal scratch']
  %s0 = inlined_call_operand.vmem [shape: bf16[8,288], index: 0, kind: input, shape index: {}]
  %s1 = inlined_call_operand.vmem [shape: bf16[288,64], index: 1, kind: input, shape index: {}]
  %s2 = inlined_call_operand.vmem [shape: f32[1,64], index: 2, kind: input, shape index: {}]
  %s3 = inlined_call_operand.vmem [shape: bf16[8,64], index: 3, kind: output, shape index: {}]
  %s4 = sld [smem:[#allocation0]]
  $region22: #{vae_forward.16} parent=0
    _
  %s6 = ssub.s32 1, %s4
  %s7 = scalar_select 0, %s6, %s4
  // Predicated region
  $region2: #{vae_forward.16} parent=0 // pred_check
    _
  $region3: #{vae_forward.16} parent=0 // pred_check_branch
    %9 = sbr.rel (0) target = $region5
  $region4: #{vae_forward.16} parent=0 // pred_region
    _
  $region5: #{vae_forward.16} parent=0 // pred_fallthru
    _
  // Predicated region
  $region6: #{vae_forward.16} parent=0 // pred_check
    _
  $region7: #{vae_forward.16} parent=0 // pred_check_branch
    %11 = sbr.rel (0) target = $region9
  $region8: #{vae_forward.16} parent=0 // pred_region
    _
  $region9: #{vae_forward.16} parent=0 // pred_fallthru
    _
  // Predicated region
  $region10: #{vae_forward.16} parent=0 // pred_check
    _
  $region11: #{vae_forward.16} parent=0 // pred_check_branch
    %13 = sbr.rel (0) target = $region13
  $region12: #{vae_forward.16} parent=0 // pred_region
    _
  $region13: #{vae_forward.16} parent=0 // pred_fallthru
    _
  %v15 = vld [vmem:[%s0] sm:$0xff]
  %v16 = vld [vmem:[%s0 + $0x8] sm:$0xf]
  %v17 = vld [vmem:[%s1] sm:$0xf]
  %v18 = vld [vmem:[%s1 + $0x4] sm:$0xf]
  %v19 = vld [vmem:[%s1 + $0x8] sm:$0xf]
  %v20 = vld [vmem:[%s1 + $0xc] sm:$0xf]
  %v21 = vld [vmem:[%s1 + $0x10] sm:$0xf]
  %v22 = vld [vmem:[%s1 + $0x14] sm:$0xf]
  %v23 = vld [vmem:[%s1 + $0x18] sm:$0xf]
  %v24 = vld [vmem:[%s1 + $0x1c] sm:$0xf]
  %v25 = vld [vmem:[%s1 + $0x20] sm:$0xf]
  %v26 = vld [vmem:[%s1 + $0x24] sm:$0xf]
  %v27 = vld [vmem:[%s1 + $0x28] sm:$0xf]
  %v28 = vld [vmem:[%s1 + $0x2c] sm:$0xf]
  %v29 = vld [vmem:[%s1 + $0x30] sm:$0xf]
  %v30 = vld [vmem:[%s1 + $0x34] sm:$0xf]
  %v31 = vld [vmem:[%s1 + $0x38] sm:$0xf]
  %v32 = vld [vmem:[%s1 + $0x3c] sm:$0xf]
  %v33 = vld [vmem:[%s1 + $0x40] sm:$0xf]
  %v34 = vld [vmem:[%s1 + $0x44] sm:$0xf]
  %v35 = vld [vmem:[%s1 + $0x48] sm:$0xf]
  %v36 = vld [vmem:[%s1 + $0x4c] sm:$0xf]
  %v37 = vld [vmem:[%s1 + $0x50] sm:$0xf]
  %v38 = vld [vmem:[%s1 + $0x54] sm:$0xf]
  %v39 = vld [vmem:[%s1 + $0x58] sm:$0xf]
  %v40 = vld [vmem:[%s1 + $0x5c] sm:$0xf]
  %v41 = vld [vmem:[%s1 + $0x60] sm:$0xf]
  %v42 = vld [vmem:[%s1 + $0x64] sm:$0xf]
  %v43 = vld [vmem:[%s1 + $0x68] sm:$0xf]
  %v44 = vld [vmem:[%s1 + $0x6c] sm:$0xf]
  %v45 = vld [vmem:[%s1 + $0x70] sm:$0xf]
  %v46 = vld [vmem:[%s1 + $0x74] sm:$0xf]
  %v47 = vld [vmem:[%s1 + $0x78] sm:$0xf]
  %v48 = vld [vmem:[%s1 + $0x7c] sm:$0xf]
  %v49 = vld [vmem:[%s1 + $0x80] sm:$0xf]
  %v50 = vld [vmem:[%s1 + $0x84] sm:$0xf]
  %v51 = vld [vmem:[%s1 + $0x88] sm:$0xf]
  %v52 = vld [vmem:[%s1 + $0x8c] sm:$0xf]
  %v53 = vld [vmem:[%s2] sm:$0x1]
  %v55 = vlaneseq
  %v56 = vshrl.u32 %v55, 7
  %v57 = vsub.s32 0, %v56
  %v58 = vrot.slane %v53, %v57
  %v62 = vunpack.c.l.b16 %v15
  %v63 = vunpack.c.h.b16 %v15
  %v64 = vunpack.c.l.b16 %v16
  %v65 = vpack.c.b16 %v62, %v62
  %v66 = vpack.c.b16 %v63, %v63
  %v67 = vpack.c.b16 %v64, %v64
  %v106 = vunpack.c.l.b16 %v17
  %v107 = vunpack.c.l.b16 %v18
  %v108 = vunpack.c.l.b16 %v19
  %v109 = vunpack.c.l.b16 %v20
  %v110 = vunpack.c.l.b16 %v21
  %v111 = vunpack.c.l.b16 %v22
  %v112 = vunpack.c.l.b16 %v23
  %v113 = vunpack.c.l.b16 %v24
  %v114 = vunpack.c.l.b16 %v25
  %v115 = vunpack.c.l.b16 %v26
  %v116 = vunpack.c.l.b16 %v27
  %v117 = vunpack.c.l.b16 %v28
  %v118 = vunpack.c.l.b16 %v29
  %v119 = vunpack.c.l.b16 %v30
  %v120 = vunpack.c.l.b16 %v31
  %v121 = vunpack.c.l.b16 %v32
  %v122 = vunpack.c.l.b16 %v33
  %v123 = vunpack.c.l.b16 %v34
  %v124 = vunpack.c.l.b16 %v35
  %v125 = vunpack.c.l.b16 %v36
  %v126 = vunpack.c.l.b16 %v37
  %v127 = vunpack.c.l.b16 %v38
  %v128 = vunpack.c.l.b16 %v39
  %v129 = vunpack.c.l.b16 %v40
  %v130 = vunpack.c.l.b16 %v41
  %v131 = vunpack.c.l.b16 %v42
  %v132 = vunpack.c.l.b16 %v43
  %v133 = vunpack.c.l.b16 %v44
  %v134 = vunpack.c.l.b16 %v45
  %v135 = vunpack.c.l.b16 %v46
  %v136 = vunpack.c.l.b16 %v47
  %v137 = vunpack.c.l.b16 %v48
  %v138 = vunpack.c.l.b16 %v49
  %v139 = vunpack.c.l.b16 %v50
  %v140 = vunpack.c.l.b16 %v51
  %v141 = vunpack.c.l.b16 %v52
  %v142 = vpack.c.b16 %v107, %v106
  %v143 = vpack.c.b16 %v109, %v108
  %v144 = vpack.c.b16 %v111, %v110
  %v145 = vpack.c.b16 %v113, %v112
  %v146 = vpack.c.b16 %v115, %v114
  %v147 = vpack.c.b16 %v117, %v116
  %v148 = vpack.c.b16 %v119, %v118
  %v149 = vpack.c.b16 %v121, %v120
  %v150 = vpack.c.b16 %v123, %v122
  %v151 = vpack.c.b16 %v125, %v124
  %v152 = vpack.c.b16 %v127, %v126
  %v153 = vpack.c.b16 %v129, %v128
  %v154 = vpack.c.b16 %v131, %v130
  %v155 = vpack.c.b16 %v133, %v132
  %v156 = vpack.c.b16 %v135, %v134
  %v157 = vpack.c.b16 %v137, %v136
  %v158 = vpack.c.b16 %v139, %v138
  %v159 = vpack.c.b16 %v141, %v140
  %vm178 = vcmask 261120
  %v180 = vsel %vm178, %v67, 0
  %182 = vmatprep.subr.bf16.mxu0 0
  %183 = vmatpush1.bf16.msra.mxu0 %v149
  %184 = vmatprep.subr.bf16.mxu0 0
  %185 = vmatpush1.bf16.msra.mxu0 %v148
  %186 = vmatprep.subr.bf16.mxu0 0
  %187 = vmatpush1.bf16.msra.mxu0 %v147
  %188 = vmatprep.subr.bf16.mxu0 0
  %189 = vmatpush1.bf16.msra.mxu0 %v146
  %190 = vmatprep.subr.bf16.mxu0 0
  %191 = vmatpush1.bf16.msra.mxu0 %v145
  %192 = vmatprep.subr.bf16.mxu0 0
  %193 = vmatpush1.bf16.msra.mxu0 %v144
  %194 = vmatprep.subr.bf16.mxu0 0
  %195 = vmatpush1.bf16.msra.mxu0 %v143
  %196 = vmatprep.subr.bf16.mxu0 0
  %197 = vmatpush1.bf16.msra.mxu0 %v142
  %198 = vmatprep.subr.bf16.mxu0 0
  %199 = vmatpush2.bf16.msra.mxu0 %v157
  %200 = vmatprep.subr.bf16.mxu0 0
  %201 = vmatpush2.bf16.msra.mxu0 %v156
  %202 = vmatprep.subr.bf16.mxu0 0
  %203 = vmatpush2.bf16.msra.mxu0 %v155
  %204 = vmatprep.subr.bf16.mxu0 0
  %205 = vmatpush2.bf16.msra.mxu0 %v154
  %206 = vmatprep.subr.bf16.mxu0 0
  %207 = vmatpush2.bf16.msra.mxu0 %v153
  %208 = vmatprep.subr.bf16.mxu0 0
  %209 = vmatpush2.bf16.msra.mxu0 %v152
  %210 = vmatprep.subr.bf16.mxu0 0
  %211 = vmatpush2.bf16.msra.mxu0 %v151
  %212 = vmatprep.subr.bf16.mxu0 0
  %213 = vmatpush2.bf16.msra.mxu0 %v150
  %214 = vmatprep.mubr.bf16.mxu0 %v66
  %215 = vmatmul.mubr.bf16.gmra.mxu0 %v65
  %v216 = vpop.f32.mrf.mxu0
  %v217 = vadd.f32 %v58, %v216
  %v218 = vpop.f32.mrf.mxu0
  %v219 = vpop.f32.mrf.mxu0
  %v220 = vpop.f32.mrf.mxu0
  %221 = vdwg.mxu0
  %222 = vmatprep.subr.bf16.mxu0 0
  %223 = vmatpush1.bf16.msra.mxu0 0
  %224 = vmatprep.subr.bf16.mxu0 0
  %225 = vmatpush1.bf16.msra.mxu0 0
  %226 = vmatprep.subr.bf16.mxu0 0
  %227 = vmatpush1.bf16.msra.mxu0 0
  %228 = vmatprep.subr.bf16.mxu0 0
  %229 = vmatpush1.bf16.msra.mxu0 0
  %230 = vmatprep.subr.bf16.mxu0 0
  %231 = vmatpush1.bf16.msra.mxu0 0
  %232 = vmatprep.subr.bf16.mxu0 0
  %233 = vmatpush1.bf16.msra.mxu0 0
  %234 = vmatprep.subr.bf16.mxu0 0
  %235 = vmatpush1.bf16.msra.mxu0 %v159
  %236 = vmatprep.subr.bf16.mxu0 0
  %237 = vmatpush1.bf16.msra.mxu0 %v158
  %238 = vmatprep.subr.bf16.mxu0 0
  %239 = vmatpush2.bf16.msra.mxu0 0
  %240 = vmatprep.subr.bf16.mxu0 0
  %241 = vmatpush2.bf16.msra.mxu0 0
  %242 = vmatprep.subr.bf16.mxu0 0
  %243 = vmatpush2.bf16.msra.mxu0 0
  %244 = vmatprep.subr.bf16.mxu0 0
  %245 = vmatpush2.bf16.msra.mxu0 0
  %246 = vmatprep.subr.bf16.mxu0 0
  %247 = vmatpush2.bf16.msra.mxu0 0
  %248 = vmatprep.subr.bf16.mxu0 0
  %249 = vmatpush2.bf16.msra.mxu0 0
  %250 = vmatprep.subr.bf16.mxu0 0
  %251 = vmatpush2.bf16.msra.mxu0 0
  %252 = vmatprep.subr.bf16.mxu0 0
  %253 = vmatpush2.bf16.msra.mxu0 0
  %254 = vmatprep.mubr.bf16.mxu0 0
  %255 = vmatmul.mubr.bf16.gmra.mxu0 %v180
  %v256 = vpop.f32.mrf.mxu0
  %v257 = vadd.f32 %v217, %v256
  %v258 = vpop.f32.mrf.mxu0
  %v259 = vpop.f32.mrf.mxu0
  %v260 = vpop.f32.mrf.mxu0
  %261 = vdwg.mxu0
  %v262 = vmax.f32 %v257, 0.0
  %v263 = vpack.c.bf16 %v262, %v262
  %vm264 = vcmask 519168
  %265 = vst.msk [vmem:[%s3] sm:$0xf] %vm264, %v263
  // Predicated region
  $region14: #{vae_forward.16} parent=0 // pred_check
    _
  $region15: #{vae_forward.16} parent=0 // pred_check_branch
    %267 = sbr.rel (0) target = $region17
  $region16: #{vae_forward.16} parent=0 // pred_region
    _
  $region17: #{vae_forward.16} parent=0 // pred_fallthru
    _
  // Predicated region
  $region18: #{vae_forward.16} parent=0 // pred_check
    _
  $region19: #{vae_forward.16} parent=0 // pred_check_branch
    %269 = sbr.rel (0) target = $region21
  $region20: #{vae_forward.16} parent=0 // pred_region
    _
  $region21: #{vae_forward.16} parent=0 // pred_fallthru
    _

// kernel: tile.73
$region0: #{tile.73}
  #allocation0 [shape = 's32[1]{0}', space=sflag, size = 0x4, scoped, tag = 'scoped memory for tile.73']
  %s0 = inlined_call_operand.vmem [shape: f32[8], index: 0, kind: input, shape index: {}]
  %s1 = inlined_call_operand.vmem [shape: f32[4,8], index: 1, kind: output, shape index: {}]
  // Predicated region
  $region2: #{tile.73} parent=0 // pred_check
    _
  $region3: #{tile.73} parent=0 // pred_check_branch
    %3 = sbr.rel (0) target = $region5
  $region4: #{tile.73} parent=0 // pred_region
    _
  $region5: #{tile.73} parent=0 // pred_fallthru
    _
  %v4 = vld [vmem:[%s0] ss:$0 sm:$0xff]
  %5 = vst [vmem:[%s1] sm:$0xf] %v4

// kernel: mul.83
$region0: #{mul.83}
  %s0 = inlined_call_operand.vmem [shape: f32[4,8], index: 0, kind: input, shape index: {}]
  %s1 = inlined_call_operand.vmem [shape: f32[32], index: 1, kind: output, shape index: {}]
  $region1: #{mul.83} parent=0
    #allocation0 [shape = 'u8[4096]{0}', space=vmem, size = 0x1000, scoped, tag = 'scoped mem for output reshape']
    #allocation1 [shape = 'u8[4096]{0}', space=vmem, size = 0x1000, scoped, tag = 'scoped mem for input reshape']
    %s3 = sshll.u32 1, 4
    %s4 = ssub.s32 %s3, 1
    %v5 = vld [vmem:[%s0] sm:%s4]
    %6 = vst [vmem:[#allocation1] sm:%s4] %v5
    %v7 = vld [vmem:[#allocation1] sm:$0x1]
    %vm8 = vcmask 64512
    %9 = vst.msk [vmem:[#allocation0] sm:$0x1] %vm8, %v7
    %s10 = scalar_lea.vmem [#allocation1], 3
    %v11 = vld [vmem:[%s10] sm:$0x1]
    %12 = vrot.lane.b32.xlu0 %v11, 24
    %v13 = vpop.permute.xlu0 %12
    %vm14 = vcmask 261312
    %15 = vst.msk [vmem:[#allocation0] sm:$0x1] %vm14, %v13
    %s16 = scalar_lea.vmem [#allocation1], 2
    %v17 = vld [vmem:[%s16] sm:$0x1]
    %18 = vrot.lane.b32.xlu0 %v17, 16
    %v19 = vpop.permute.xlu0 %18
    %vm20 = vcmask 195712
    %21 = vst.msk [vmem:[#allocation0] sm:$0x1] %vm20, %v19
    %s22 = scalar_lea.vmem [#allocation1], 1
    %v23 = vld [vmem:[%s22] sm:$0x1]
    %24 = vrot.lane.b32.xlu0 %v23, 8
    %v25 = vpop.permute.xlu0 %24
    %vm26 = vcmask 130112
    %27 = vst.msk [vmem:[#allocation0] sm:$0x1] %vm26, %v25
    %s29 = sshll.u32 1, 1
    %s30 = ssub.s32 %s29, 1
    %v32 = vld [vmem:[#allocation0] sm:%s30]
    %s33 = sshll.u32 1, 1
    %s34 = ssub.s32 %s33, 1
    %35 = vst [vmem:[%s1] sm:%s34] %v32

// kernel: tile.79
$region0: #{tile.79}
  %s0 = inlined_call_operand.vmem [shape: f32[4,8], index: 0, kind: input, shape index: {}]
  %s1 = inlined_call_operand.vmem [shape: f32[1,32], index: 1, kind: output, shape index: {}]
  $region1: #{tile.79} parent=0
    #allocation0 [shape = 'u8[4096]{0}', space=vmem, size = 0x1000, scoped, tag = 'scoped mem for output reshape']
    #allocation1 [shape = 'u8[4096]{0}', space=vmem, size = 0x1000, scoped, tag = 'scoped mem for input reshape']
    %s3 = sshll.u32 1, 4
    %s4 = ssub.s32 %s3, 1
    %v5 = vld [vmem:[%s0] sm:%s4]
    %6 = vst [vmem:[#allocation1] sm:%s4] %v5
    %v7 = vld [vmem:[#allocation1] sm:$0x1]
    %vm8 = vcmask 64512
    %9 = vst.msk [vmem:[#allocation0] sm:$0x1] %vm8, %v7
    %s10 = scalar_lea.vmem [#allocation1], 3
    %v11 = vld [vmem:[%s10] sm:$0x1]
    %12 = vrot.lane.b32.xlu0 %v11, 24
    %v13 = vpop.permute.xlu0 %12
    %vm14 = vcmask 261312
    %15 = vst.msk [vmem:[#allocation0] sm:$0x1] %vm14, %v13
    %s16 = scalar_lea.vmem [#allocation1], 2
    %v17 = vld [vmem:[%s16] sm:$0x1]
    %18 = vrot.lane.b32.xlu0 %v17, 16
    %v19 = vpop.permute.xlu0 %18
    %vm20 = vcmask 195712
    %21 = vst.msk [vmem:[#allocation0] sm:$0x1] %vm20, %v19
    %s22 = scalar_lea.vmem [#allocation1], 1
    %v23 = vld [vmem:[%s22] sm:$0x1]
    %24 = vrot.lane.b32.xlu0 %v23, 8
    %v25 = vpop.permute.xlu0 %24
    %vm26 = vcmask 130112
    %27 = vst.msk [vmem:[#allocation0] sm:$0x1] %vm26, %v25
    %s29 = sshll.u32 1, 1
    %s30 = ssub.s32 %s29, 1
    %v32 = vld [vmem:[#allocation0] sm:%s30]
    %s33 = sshll.u32 1, 1
    %s34 = ssub.s32 %s33, 1
    %35 = vst [vmem:[%s1] sm:%s34] %v32

// kernel: vae_forward.17
$region0: #{vae_forward.17}
  #allocation0 [shape = 'u32[]', space=smem, size = 0x4, offset = 0x4, fixed_abs, tag = 'smem constant byte address 0x4 - core index']
  #allocation1 [shape = 'u32[144,128]{1,0:T(1,128)}', space=vmem, size = 0x12000, scoped, tag = 'internal scratch']
  %s0 = inlined_call_operand.vmem [shape: bf16[32,144], index: 0, kind: input, shape index: {}]
  %s1 = inlined_call_operand.vmem [shape: bf16[144,32], index: 1, kind: input, shape index: {}]
  %s2 = inlined_call_operand.vmem [shape: f32[1,32], index: 2, kind: input, shape index: {}]
  %s3 = inlined_call_operand.vmem [shape: bf16[32,32], index: 3, kind: output, shape index: {}]
  %s4 = sld [smem:[#allocation0]]
  $region22: #{vae_forward.17} parent=0
    _
  %s6 = ssub.s32 1, %s4
  %s7 = scalar_select 0, %s6, %s4
  // Predicated region
  $region2: #{vae_forward.17} parent=0 // pred_check
    _
  $region3: #{vae_forward.17} parent=0 // pred_check_branch
    %9 = sbr.rel (0) target = $region5
  $region4: #{vae_forward.17} parent=0 // pred_region
    _
  $region5: #{vae_forward.17} parent=0 // pred_fallthru
    _
  // Predicated region
  $region6: #{vae_forward.17} parent=0 // pred_check
    _
  $region7: #{vae_forward.17} parent=0 // pred_check_branch
    %11 = sbr.rel (0) target = $region9
  $region8: #{vae_forward.17} parent=0 // pred_region
    _
  $region9: #{vae_forward.17} parent=0 // pred_fallthru
    _
  // Predicated region
  $region10: #{vae_forward.17} parent=0 // pred_check
    _
  $region11: #{vae_forward.17} parent=0 // pred_check_branch
    %13 = sbr.rel (0) target = $region13
  $region12: #{vae_forward.17} parent=0 // pred_region
    _
  $region13: #{vae_forward.17} parent=0 // pred_fallthru
    _
  %v15 = vld [vmem:[%s0] sm:$0xff]
  %v16 = vld [vmem:[%s0 + $0x8] sm:$0xff]
  %v17 = vld [vmem:[%s0 + $0x10] sm:$0xff]
  %v18 = vld [vmem:[%s0 + $0x18] sm:$0xff]
  %v19 = vld [vmem:[%s1] sm:$0xf]
  %v20 = vld [vmem:[%s1 + $0x4] sm:$0xf]
  %v21 = vld [vmem:[%s1 + $0x8] sm:$0xf]
  %v22 = vld [vmem:[%s1 + $0xc] sm:$0xf]
  %v23 = vld [vmem:[%s1 + $0x10] sm:$0xf]
  %v24 = vld [vmem:[%s1 + $0x14] sm:$0xf]
  %v25 = vld [vmem:[%s1 + $0x18] sm:$0xf]
  %v26 = vld [vmem:[%s1 + $0x1c] sm:$0xf]
  %v27 = vld [vmem:[%s1 + $0x20] sm:$0xf]
  %v28 = vld [vmem:[%s1 + $0x24] sm:$0xf]
  %v29 = vld [vmem:[%s1 + $0x28] sm:$0xf]
  %v30 = vld [vmem:[%s1 + $0x2c] sm:$0xf]
  %v31 = vld [vmem:[%s1 + $0x30] sm:$0xf]
  %v32 = vld [vmem:[%s1 + $0x34] sm:$0xf]
  %v33 = vld [vmem:[%s1 + $0x38] sm:$0xf]
  %v34 = vld [vmem:[%s1 + $0x3c] sm:$0xf]
  %v35 = vld [vmem:[%s1 + $0x40] sm:$0xf]
  %v36 = vld [vmem:[%s1 + $0x44] sm:$0xf]
  %v37 = vld [vmem:[%s2] sm:$0x1]
  %v39 = vlaneseq
  %v40 = vshrl.u32 %v39, 7
  %v41 = vsub.s32 0, %v40
  %v42 = vrot.slane %v37, %v41
  %v48 = vunpack.c.l.b16 %v15
  %v49 = vunpack.c.h.b16 %v15
  %v50 = vunpack.c.l.b16 %v16
  %v51 = vunpack.c.h.b16 %v16
  %v52 = vunpack.c.l.b16 %v17
  %v53 = vunpack.c.h.b16 %v17
  %v54 = vunpack.c.l.b16 %v18
  %v55 = vunpack.c.h.b16 %v18
  %v56 = vpack.c.b16 %v50, %v48
  %v57 = vpack.c.b16 %v51, %v49
  %v58 = vpack.c.b16 %v54, %v52
  %v59 = vpack.c.b16 %v55, %v53
  %v80 = vunpack.c.l.b16 %v19
  %v81 = vunpack.c.l.b16 %v20
  %v82 = vunpack.c.l.b16 %v21
  %v83 = vunpack.c.l.b16 %v22
  %v84 = vunpack.c.l.b16 %v23
  %v85 = vunpack.c.l.b16 %v24
  %v86 = vunpack.c.l.b16 %v25
  %v87 = vunpack.c.l.b16 %v26
  %v88 = vunpack.c.l.b16 %v27
  %v89 = vunpack.c.l.b16 %v28
  %v90 = vunpack.c.l.b16 %v29
  %v91 = vunpack.c.l.b16 %v30
  %v92 = vunpack.c.l.b16 %v31
  %v93 = vunpack.c.l.b16 %v32
  %v94 = vunpack.c.l.b16 %v33
  %v95 = vunpack.c.l.b16 %v34
  %v96 = vunpack.c.l.b16 %v35
  %v97 = vunpack.c.l.b16 %v36
  %v98 = vpack.c.b16 %v81, %v80
  %v99 = vpack.c.b16 %v83, %v82
  %v100 = vpack.c.b16 %v85, %v84
  %v101 = vpack.c.b16 %v87, %v86
  %v102 = vpack.c.b16 %v89, %v88
  %v103 = vpack.c.b16 %v91, %v90
  %v104 = vpack.c.b16 %v93, %v92
  %v105 = vpack.c.b16 %v95, %v94
  %v106 = vpack.c.b16 %v97, %v96
  %vm116 = vcmask 130048
  %v118 = vsel %vm116, %v57, 0
  %v121 = vsel %vm116, %v59, 0
  %123 = vmatprep.subr.bf16.mxu0 0
  %124 = vmatpush1.bf16.msra.mxu0 %v105
  %125 = vmatprep.subr.bf16.mxu0 0
  %126 = vmatpush1.bf16.msra.mxu0 %v104
  %127 = vmatprep.subr.bf16.mxu0 0
  %128 = vmatpush1.bf16.msra.mxu0 %v103
  %129 = vmatprep.subr.bf16.mxu0 0
  %130 = vmatpush1.bf16.msra.mxu0 %v102
  %131 = vmatprep.subr.bf16.mxu0 0
  %132 = vmatpush1.bf16.msra.mxu0 %v101
  %133 = vmatprep.subr.bf16.mxu0 0
  %134 = vmatpush1.bf16.msra.mxu0 %v100
  %135 = vmatprep.subr.bf16.mxu0 0
  %136 = vmatpush1.bf16.msra.mxu0 %v99
  %137 = vmatprep.subr.bf16.mxu0 0
  %138 = vmatpush1.bf16.msra.mxu0 %v98
  %139 = vmatprep.subr.bf16.mxu0 0
  %140 = vmatpush2.bf16.msra.mxu0 0
  %141 = vmatprep.subr.bf16.mxu0 0
  %142 = vmatpush2.bf16.msra.mxu0 0
  %143 = vmatprep.subr.bf16.mxu0 0
  %144 = vmatpush2.bf16.msra.mxu0 0
  %145 = vmatprep.subr.bf16.mxu0 0
  %146 = vmatpush2.bf16.msra.mxu0 0
  %147 = vmatprep.subr.bf16.mxu0 0
  %148 = vmatpush2.bf16.msra.mxu0 0
  %149 = vmatprep.subr.bf16.mxu0 0
  %150 = vmatpush2.bf16.msra.mxu0 0
  %151 = vmatprep.subr.bf16.mxu0 0
  %152 = vmatpush2.bf16.msra.mxu0 0
  %153 = vmatprep.subr.bf16.mxu0 0
  %154 = vmatpush2.bf16.msra.mxu0 %v106
  %155 = vmatprep.mubr.bf16.mxu0 %v118
  %156 = vmatmul.mubr.bf16.gmra.mxu0 %v56
  %v157 = vpop.f32.mrf.mxu0
  %v158 = vadd.f32 %v42, %v157
  %v159 = vpop.f32.mrf.mxu0
  %v160 = vpop.f32.mrf.mxu0
  %v161 = vadd.f32 %v42, %v160
  %v162 = vpop.f32.mrf.mxu0
  %163 = vmatprep.mubr.bf16.mxu0 %v121
  %164 = vmatmul.mubr.bf16.gmra.mxu0 %v58
  %v165 = vpop.f32.mrf.mxu0
  %v166 = vadd.f32 %v42, %v165
  %v167 = vpop.f32.mrf.mxu0
  %v168 = vpop.f32.mrf.mxu0
  %v169 = vadd.f32 %v42, %v168
  %v170 = vpop.f32.mrf.mxu0
  %171 = vdwg.mxu0
  %v172 = vmax.f32 %v158, 0.0
  %v173 = vmax.f32 %v161, 0.0
  %v174 = vmax.f32 %v166, 0.0
  %v175 = vmax.f32 %v169, 0.0
  %v176 = vpack.c.bf16 %v173, %v172
  %v177 = vpack.c.bf16 %v175, %v174
  %v180 = vunpack.c.l.b16 %v176
  %v181 = vunpack.c.h.b16 %v176
  %v182 = vunpack.c.l.b16 %v177
  %v183 = vunpack.c.h.b16 %v177
  %v184 = vpack.c.b16 %v180, %v180
  %v185 = vpack.c.b16 %v181, %v181
  %v186 = vpack.c.b16 %v182, %v182
  %v187 = vpack.c.b16 %v183, %v183
  %vm192 = vcmask 257024
  %193 = vst.msk [vmem:[%s3] sm:$0xf] %vm192, %v184
  %194 = vst.msk [vmem:[%s3 + $0x4] sm:$0xf] %vm192, %v185
  %195 = vst.msk [vmem:[%s3 + $0x8] sm:$0xf] %vm192, %v186
  %196 = vst.msk [vmem:[%s3 + $0xc] sm:$0xf] %vm192, %v187
  // Predicated region
  $region14: #{vae_forward.17} parent=0 // pred_check
    _
  $region15: #{vae_forward.17} parent=0 // pred_check_branch
    %198 = sbr.rel (0) target = $region17
  $region16: #{vae_forward.17} parent=0 // pred_region
    _
  $region17: #{vae_forward.17} parent=0 // pred_fallthru
    _
  // Predicated region
  $region18: #{vae_forward.17} parent=0 // pred_check
    _
  $region19: #{vae_forward.17} parent=0 // pred_check_branch
    %200 = sbr.rel (0) target = $region21
  $region20: #{vae_forward.17} parent=0 // pred_region
    _
  $region21: #{vae_forward.17} parent=0 // pred_fallthru
    _

// kernel: tile.83
$region0: #{tile.83}
  #allocation0 [shape = 's32[1]{0}', space=sflag, size = 0x4, scoped, tag = 'scoped memory for tile.83']
  %s0 = inlined_call_operand.vmem [shape: f32[4], index: 0, kind: input, shape index: {}]
  %s1 = inlined_call_operand.vmem [shape: f32[4,4], index: 1, kind: output, shape index: {}]
  // Predicated region
  $region2: #{tile.83} parent=0 // pred_check
    _
  $region3: #{tile.83} parent=0 // pred_check_branch
    %3 = sbr.rel (0) target = $region5
  $region4: #{tile.83} parent=0 // pred_region
    _
  $region5: #{tile.83} parent=0 // pred_fallthru
    _
  %v4 = vld [vmem:[%s0] ss:$0 sm:$0xff]
  %5 = vst [vmem:[%s1] sm:$0xf] %v4

// kernel: mul.87
$region0: #{mul.87}
  %s0 = inlined_call_operand.vmem [shape: f32[4,4], index: 0, kind: input, shape index: {}]
  %s1 = inlined_call_operand.vmem [shape: f32[16], index: 1, kind: output, shape index: {}]
  $region1: #{mul.87} parent=0
    #allocation0 [shape = 'u8[4096]{0}', space=vmem, size = 0x1000, scoped, tag = 'scoped mem for output reshape']
    #allocation1 [shape = 'u8[4096]{0}', space=vmem, size = 0x1000, scoped, tag = 'scoped mem for input reshape']
    %s3 = sshll.u32 1, 4
    %s4 = ssub.s32 %s3, 1
    %v5 = vld [vmem:[%s0] sm:%s4]
    %6 = vst [vmem:[#allocation1] sm:%s4] %v5
    %v7 = vld [vmem:[#allocation1] sm:$0x1]
    %vm8 = vcmask 31744
    %9 = vst.msk [vmem:[#allocation0] sm:$0x1] %vm8, %v7
    %s10 = scalar_lea.vmem [#allocation1], 3
    %v11 = vld [vmem:[%s10] sm:$0x1]
    %12 = vrot.lane.b32.xlu0 %v11, 12
    %v13 = vpop.permute.xlu0 %12
    %vm14 = vcmask 130144
    %15 = vst.msk [vmem:[#allocation0] sm:$0x1] %vm14, %v13
    %s16 = scalar_lea.vmem [#allocation1], 2
    %v17 = vld [vmem:[%s16] sm:$0x1]
    %18 = vrot.lane.b32.xlu0 %v17, 8
    %v19 = vpop.permute.xlu0 %18
    %vm20 = vcmask 97344
    %21 = vst.msk [vmem:[#allocation0] sm:$0x1] %vm20, %v19
    %s22 = scalar_lea.vmem [#allocation1], 1
    %v23 = vld [vmem:[%s22] sm:$0x1]
    %24 = vrot.lane.b32.xlu0 %v23, 4
    %v25 = vpop.permute.xlu0 %24
    %vm26 = vcmask 64544
    %27 = vst.msk [vmem:[#allocation0] sm:$0x1] %vm26, %v25
    %s29 = sshll.u32 1, 1
    %s30 = ssub.s32 %s29, 1
    %v32 = vld [vmem:[#allocation0] sm:%s30]
    %s33 = sshll.u32 1, 1
    %s34 = ssub.s32 %s33, 1
    %35 = vst [vmem:[%s1] sm:%s34] %v32

// kernel: tile.89
$region0: #{tile.89}
  %s0 = inlined_call_operand.vmem [shape: f32[4,4], index: 0, kind: input, shape index: {}]
  %s1 = inlined_call_operand.vmem [shape: f32[1,16], index: 1, kind: output, shape index: {}]
  $region1: #{tile.89} parent=0
    #allocation0 [shape = 'u8[4096]{0}', space=vmem, size = 0x1000, scoped, tag = 'scoped mem for output reshape']
    #allocation1 [shape = 'u8[4096]{0}', space=vmem, size = 0x1000, scoped, tag = 'scoped mem for input reshape']
    %s3 = sshll.u32 1, 4
    %s4 = ssub.s32 %s3, 1
    %v5 = vld [vmem:[%s0] sm:%s4]
    %6 = vst [vmem:[#allocation1] sm:%s4] %v5
    %v7 = vld [vmem:[#allocation1] sm:$0x1]
    %vm8 = vcmask 31744
    %9 = vst.msk [vmem:[#allocation0] sm:$0x1] %vm8, %v7
    %s10 = scalar_lea.vmem [#allocation1], 3
    %v11 = vld [vmem:[%s10] sm:$0x1]
    %12 = vrot.lane.b32.xlu0 %v11, 12
    %v13 = vpop.permute.xlu0 %12
    %vm14 = vcmask 130144
    %15 = vst.msk [vmem:[#allocation0] sm:$0x1] %vm14, %v13
    %s16 = scalar_lea.vmem [#allocation1], 2
    %v17 = vld [vmem:[%s16] sm:$0x1]
    %18 = vrot.lane.b32.xlu0 %v17, 8
    %v19 = vpop.permute.xlu0 %18
    %vm20 = vcmask 97344
    %21 = vst.msk [vmem:[#allocation0] sm:$0x1] %vm20, %v19
    %s22 = scalar_lea.vmem [#allocation1], 1
    %v23 = vld [vmem:[%s22] sm:$0x1]
    %24 = vrot.lane.b32.xlu0 %v23, 4
    %v25 = vpop.permute.xlu0 %24
    %vm26 = vcmask 64544
    %27 = vst.msk [vmem:[#allocation0] sm:$0x1] %vm26, %v25
    %s29 = sshll.u32 1, 1
    %s30 = ssub.s32 %s29, 1
    %v32 = vld [vmem:[#allocation0] sm:%s30]
    %s33 = sshll.u32 1, 1
    %s34 = ssub.s32 %s33, 1
    %35 = vst [vmem:[%s1] sm:%s34] %v32

// kernel: vae_forward.18
$region0: #{vae_forward.18}
  #allocation0 [shape = 'u32[]', space=smem, size = 0x4, offset = 0x4, fixed_abs, tag = 'smem constant byte address 0x4 - core index']
  #allocation1 [shape = 'u32[144,128]{1,0:T(1,128)}', space=vmem, size = 0x12000, scoped, tag = 'internal scratch']
  %s0 = inlined_call_operand.vmem [shape: bf16[128,72], index: 0, kind: input, shape index: {}]
  %s1 = inlined_call_operand.vmem [shape: bf16[72,16], index: 1, kind: input, shape index: {}]
  %s2 = inlined_call_operand.vmem [shape: f32[1,16], index: 2, kind: input, shape index: {}]
  %s3 = inlined_call_operand.vmem [shape: bf16[128,16], index: 3, kind: output, shape index: {}]
  %s4 = sld [smem:[#allocation0]]
  $region22: #{vae_forward.18} parent=0
    _
  %s6 = ssub.s32 1, %s4
  %s7 = scalar_select 0, %s6, %s4
  // Predicated region
  $region2: #{vae_forward.18} parent=0 // pred_check
    _
  $region3: #{vae_forward.18} parent=0 // pred_check_branch
    %9 = sbr.rel (0) target = $region5
  $region4: #{vae_forward.18} parent=0 // pred_region
    _
  $region5: #{vae_forward.18} parent=0 // pred_fallthru
    _
  // Predicated region
  $region6: #{vae_forward.18} parent=0 // pred_check
    _
  $region7: #{vae_forward.18} parent=0 // pred_check_branch
    %11 = sbr.rel (0) target = $region9
  $region8: #{vae_forward.18} parent=0 // pred_region
    _
  $region9: #{vae_forward.18} parent=0 // pred_fallthru
    _
  // Predicated region
  $region10: #{vae_forward.18} parent=0 // pred_check
    _
  $region11: #{vae_forward.18} parent=0 // pred_check_branch
    %13 = sbr.rel (0) target = $region13
  $region12: #{vae_forward.18} parent=0 // pred_region
    _
  $region13: #{vae_forward.18} parent=0 // pred_fallthru
    _
  %v15 = vld [vmem:[%s0] sm:$0xf]
  %v16 = vld [vmem:[%s0 + $0x4] sm:$0xf]
  %v17 = vld [vmem:[%s0 + $0x8] sm:$0xf]
  %v18 = vld [vmem:[%s0 + $0xc] sm:$0xf]
  %v19 = vld [vmem:[%s0 + $0x10] sm:$0xf]
  %v20 = vld [vmem:[%s0 + $0x14] sm:$0xf]
  %v21 = vld [vmem:[%s0 + $0x18] sm:$0xf]
  %v22 = vld [vmem:[%s0 + $0x1c] sm:$0xf]
  %v23 = vld [vmem:[%s0 + $0x20] sm:$0xf]
  %v24 = vld [vmem:[%s0 + $0x24] sm:$0xf]
  %v25 = vld [vmem:[%s0 + $0x28] sm:$0xf]
  %v26 = vld [vmem:[%s0 + $0x2c] sm:$0xf]
  %v27 = vld [vmem:[%s0 + $0x30] sm:$0xf]
  %v28 = vld [vmem:[%s0 + $0x34] sm:$0xf]
  %v29 = vld [vmem:[%s0 + $0x38] sm:$0xf]
  %v30 = vld [vmem:[%s0 + $0x3c] sm:$0xf]
  %v31 = vld [vmem:[%s1] sm:$0xf]
  %v32 = vld [vmem:[%s1 + $0x4] sm:$0xf]
  %v33 = vld [vmem:[%s1 + $0x8] sm:$0xf]
  %v34 = vld [vmem:[%s1 + $0xc] sm:$0xf]
  %v35 = vld [vmem:[%s1 + $0x10] sm:$0xf]
  %v36 = vld [vmem:[%s1 + $0x14] sm:$0xf]
  %v37 = vld [vmem:[%s1 + $0x18] sm:$0xf]
  %v38 = vld [vmem:[%s1 + $0x1c] sm:$0xf]
  %v39 = vld [vmem:[%s1 + $0x20] sm:$0xf]
  %v40 = vld [vmem:[%s2] sm:$0x1]
  %v42 = vlaneseq
  %v43 = vshrl.u32 %v42, 7
  %v44 = vsub.s32 0, %v43
  %v45 = vrot.slane %v40, %v44
  %v63 = vunpack.c.l.b16 %v15
  %v64 = vunpack.c.l.b16 %v16
  %v65 = vunpack.c.l.b16 %v17
  %v66 = vunpack.c.l.b16 %v18
  %v67 = vunpack.c.l.b16 %v19
  %v68 = vunpack.c.l.b16 %v20
  %v69 = vunpack.c.l.b16 %v21
  %v70 = vunpack.c.l.b16 %v22
  %v71 = vunpack.c.l.b16 %v23
  %v72 = vunpack.c.l.b16 %v24
  %v73 = vunpack.c.l.b16 %v25
  %v74 = vunpack.c.l.b16 %v26
  %v75 = vunpack.c.l.b16 %v27
  %v76 = vunpack.c.l.b16 %v28
  %v77 = vunpack.c.l.b16 %v29
  %v78 = vunpack.c.l.b16 %v30
  %v79 = vpack.c.b16 %v64, %v63
  %v80 = vpack.c.b16 %v66, %v65
  %v81 = vpack.c.b16 %v68, %v67
  %v82 = vpack.c.b16 %v70, %v69
  %v83 = vpack.c.b16 %v72, %v71
  %v84 = vpack.c.b16 %v74, %v73
  %v85 = vpack.c.b16 %v76, %v75
  %v86 = vpack.c.b16 %v78, %v77
  %v96 = vunpack.c.l.b16 %v31
  %v97 = vunpack.c.l.b16 %v32
  %v98 = vunpack.c.l.b16 %v33
  %v99 = vunpack.c.l.b16 %v34
  %v100 = vunpack.c.l.b16 %v35
  %v101 = vunpack.c.l.b16 %v36
  %v102 = vunpack.c.l.b16 %v37
  %v103 = vunpack.c.l.b16 %v38
  %v104 = vunpack.c.l.b16 %v39
  %v105 = vpack.c.b16 %v97, %v96
  %v106 = vpack.c.b16 %v99, %v98
  %v107 = vpack.c.b16 %v101, %v100
  %v108 = vpack.c.b16 %v103, %v102
  %v109 = vpack.c.b16 %v104, %v104
  %vm114 = vcmask 588800
  %v116 = vsel %vm114, %v79, 0
  %v119 = vsel %vm114, %v80, 0
  %v122 = vsel %vm114, %v81, 0
  %v125 = vsel %vm114, %v82, 0
  %v128 = vsel %vm114, %v83, 0
  %v131 = vsel %vm114, %v84, 0
  %v134 = vsel %vm114, %v85, 0
  %v137 = vsel %vm114, %v86, 0
  %vm139 = vcmask 1043456
  %v141 = vsel %vm139, %v109, 0
  %143 = vmatprep.subr.bf16.mxu0 0
  %144 = vmatpush1.bf16.msra.mxu0 0
  %145 = vmatprep.subr.bf16.mxu0 0
  %146 = vmatpush1.bf16.msra.mxu0 0
  %147 = vmatprep.subr.bf16.mxu0 0
  %148 = vmatpush1.bf16.msra.mxu0 0
  %149 = vmatprep.subr.bf16.mxu0 0
  %150 = vmatpush1.bf16.msra.mxu0 %v141
  %151 = vmatprep.subr.bf16.mxu0 0
  %152 = vmatpush1.bf16.msra.mxu0 %v108
  %153 = vmatprep.subr.bf16.mxu0 0
  %154 = vmatpush1.bf16.msra.mxu0 %v107
  %155 = vmatprep.subr.bf16.mxu0 0
  %156 = vmatpush1.bf16.msra.mxu0 %v106
  %157 = vmatprep.subr.bf16.mxu0 0
  %158 = vmatpush1.bf16.msra.mxu0 %v105
  %159 = vmatprep.subr.bf16.mxu0 0
  %160 = vmatpush2.bf16.msra.mxu0 0
  %161 = vmatprep.subr.bf16.mxu0 0
  %162 = vmatpush2.bf16.msra.mxu0 0
  %163 = vmatprep.subr.bf16.mxu0 0
  %164 = vmatpush2.bf16.msra.mxu0 0
  %165 = vmatprep.subr.bf16.mxu0 0
  %166 = vmatpush2.bf16.msra.mxu0 0
  %167 = vmatprep.subr.bf16.mxu0 0
  %168 = vmatpush2.bf16.msra.mxu0 0
  %169 = vmatprep.subr.bf16.mxu0 0
  %170 = vmatpush2.bf16.msra.mxu0 0
  %171 = vmatprep.subr.bf16.mxu0 0
  %172 = vmatpush2.bf16.msra.mxu0 0
  %173 = vmatprep.subr.bf16.mxu0 0
  %174 = vmatpush2.bf16.msra.mxu0 0
  %175 = vmatprep.mubr.bf16.mxu0 0
  %176 = vmatmul.mubr.bf16.gmra.mxu0 %v116
  %v177 = vpop.f32.mrf.mxu0
  %v178 = vadd.f32 %v45, %v177
  %v179 = vpop.f32.mrf.mxu0
  %v180 = vpop.f32.mrf.mxu0
  %v181 = vadd.f32 %v45, %v180
  %v182 = vpop.f32.mrf.mxu0
  %183 = vmatprep.mubr.bf16.mxu0 0
  %184 = vmatmul.mubr.bf16.gmra.mxu0 %v119
  %v185 = vpop.f32.mrf.mxu0
  %v186 = vadd.f32 %v45, %v185
  %v187 = vpop.f32.mrf.mxu0
  %v188 = vpop.f32.mrf.mxu0
  %v189 = vadd.f32 %v45, %v188
  %v190 = vpop.f32.mrf.mxu0
  %191 = vmatprep.mubr.bf16.mxu0 0
  %192 = vmatmul.mubr.bf16.gmra.mxu0 %v122
  %v193 = vpop.f32.mrf.mxu0
  %v194 = vadd.f32 %v45, %v193
  %v195 = vpop.f32.mrf.mxu0
  %v196 = vpop.f32.mrf.mxu0
  %v197 = vadd.f32 %v45, %v196
  %v198 = vpop.f32.mrf.mxu0
  %199 = vmatprep.mubr.bf16.mxu0 0
  %200 = vmatmul.mubr.bf16.gmra.mxu0 %v125
  %v201 = vpop.f32.mrf.mxu0
  %v202 = vadd.f32 %v45, %v201
  %v203 = vpop.f32.mrf.mxu0
  %v204 = vpop.f32.mrf.mxu0
  %v205 = vadd.f32 %v45, %v204
  %v206 = vpop.f32.mrf.mxu0
  %207 = vmatprep.mubr.bf16.mxu0 0
  %208 = vmatmul.mubr.bf16.gmra.mxu0 %v128
  %v209 = vpop.f32.mrf.mxu0
  %v210 = vadd.f32 %v45, %v209
  %v211 = vpop.f32.mrf.mxu0
  %v212 = vpop.f32.mrf.mxu0
  %v213 = vadd.f32 %v45, %v212
  %v214 = vpop.f32.mrf.mxu0
  %215 = vmatprep.mubr.bf16.mxu0 0
  %216 = vmatmul.mubr.bf16.gmra.mxu0 %v131
  %v217 = vpop.f32.mrf.mxu0
  %v218 = vadd.f32 %v45, %v217
  %v219 = vpop.f32.mrf.mxu0
  %v220 = vpop.f32.mrf.mxu0
  %v221 = vadd.f32 %v45, %v220
  %v222 = vpop.f32.mrf.mxu0
  %223 = vmatprep.mubr.bf16.mxu0 0
  %224 = vmatmul.mubr.bf16.gmra.mxu0 %v134
  %v225 = vpop.f32.mrf.mxu0
  %v226 = vadd.f32 %v45, %v225
  %v227 = vpop.f32.mrf.mxu0
  %v228 = vpop.f32.mrf.mxu0
  %v229 = vadd.f32 %v45, %v228
  %v230 = vpop.f32.mrf.mxu0
  %231 = vmatprep.mubr.bf16.mxu0 0
  %232 = vmatmul.mubr.bf16.gmra.mxu0 %v137
  %v233 = vpop.f32.mrf.mxu0
  %v234 = vadd.f32 %v45, %v233
  %v235 = vpop.f32.mrf.mxu0
  %v236 = vpop.f32.mrf.mxu0
  %v237 = vadd.f32 %v45, %v236
  %v238 = vpop.f32.mrf.mxu0
  %239 = vdwg.mxu0
  %v240 = vmax.f32 %v178, 0.0
  %v241 = vmax.f32 %v181, 0.0
  %v242 = vmax.f32 %v186, 0.0
  %v243 = vmax.f32 %v189, 0.0
  %v244 = vmax.f32 %v194, 0.0
  %v245 = vmax.f32 %v197, 0.0
  %v246 = vmax.f32 %v202, 0.0
  %v247 = vmax.f32 %v205, 0.0
  %v248 = vmax.f32 %v210, 0.0
  %v249 = vmax.f32 %v213, 0.0
  %v250 = vmax.f32 %v218, 0.0
  %v251 = vmax.f32 %v221, 0.0
  %v252 = vmax.f32 %v226, 0.0
  %v253 = vmax.f32 %v229, 0.0
  %v254 = vmax.f32 %v234, 0.0
  %v255 = vmax.f32 %v237, 0.0
  %v256 = vpack.c.bf16 %v241, %v240
  %v257 = vpack.c.bf16 %v243, %v242
  %v258 = vpack.c.bf16 %v245, %v244
  %v259 = vpack.c.bf16 %v247, %v246
  %v260 = vpack.c.bf16 %v249, %v248
  %v261 = vpack.c.bf16 %v251, %v250
  %v262 = vpack.c.bf16 %v253, %v252
  %v263 = vpack.c.bf16 %v255, %v254
  %v272 = vunpack.c.l.b16 %v256
  %v273 = vunpack.c.h.b16 %v256
  %v274 = vunpack.c.l.b16 %v257
  %v275 = vunpack.c.h.b16 %v257
  %v276 = vunpack.c.l.b16 %v258
  %v277 = vunpack.c.h.b16 %v258
  %v278 = vunpack.c.l.b16 %v259
  %v279 = vunpack.c.h.b16 %v259
  %v280 = vunpack.c.l.b16 %v260
  %v281 = vunpack.c.h.b16 %v260
  %v282 = vunpack.c.l.b16 %v261
  %v283 = vunpack.c.h.b16 %v261
  %v284 = vunpack.c.l.b16 %v262
  %v285 = vunpack.c.h.b16 %v262
  %v286 = vunpack.c.l.b16 %v263
  %v287 = vunpack.c.h.b16 %v263
  %v288 = vpack.c.b16 %v272, %v272
  %v289 = vpack.c.b16 %v273, %v273
  %v290 = vpack.c.b16 %v274, %v274
  %v291 = vpack.c.b16 %v275, %v275
  %v292 = vpack.c.b16 %v276, %v276
  %v293 = vpack.c.b16 %v277, %v277
  %v294 = vpack.c.b16 %v278, %v278
  %v295 = vpack.c.b16 %v279, %v279
  %v296 = vpack.c.b16 %v280, %v280
  %v297 = vpack.c.b16 %v281, %v281
  %v298 = vpack.c.b16 %v282, %v282
  %v299 = vpack.c.b16 %v283, %v283
  %v300 = vpack.c.b16 %v284, %v284
  %v301 = vpack.c.b16 %v285, %v285
  %v302 = vpack.c.b16 %v286, %v286
  %v303 = vpack.c.b16 %v287, %v287
  %vm320 = vcmask 125952
  %321 = vst.msk [vmem:[%s3] sm:$0xf] %vm320, %v288
  %322 = vst.msk [vmem:[%s3 + $0x4] sm:$0xf] %vm320, %v289
  %323 = vst.msk [vmem:[%s3 + $0x8] sm:$0xf] %vm320, %v290
  %324 = vst.msk [vmem:[%s3 + $0xc] sm:$0xf] %vm320, %v291
  %325 = vst.msk [vmem:[%s3 + $0x10] sm:$0xf] %vm320, %v292
  %326 = vst.msk [vmem:[%s3 + $0x14] sm:$0xf] %vm320, %v293
  %327 = vst.msk [vmem:[%s3 + $0x18] sm:$0xf] %vm320, %v294
  %328 = vst.msk [vmem:[%s3 + $0x1c] sm:$0xf] %vm320, %v295
  %329 = vst.msk [vmem:[%s3 + $0x20] sm:$0xf] %vm320, %v296
  %330 = vst.msk [vmem:[%s3 + $0x24] sm:$0xf] %vm320, %v297
  %331 = vst.msk [vmem:[%s3 + $0x28] sm:$0xf] %vm320, %v298
  %332 = vst.msk [vmem:[%s3 + $0x2c] sm:$0xf] %vm320, %v299
  %333 = vst.msk [vmem:[%s3 + $0x30] sm:$0xf] %vm320, %v300
  %334 = vst.msk [vmem:[%s3 + $0x34] sm:$0xf] %vm320, %v301
  %335 = vst.msk [vmem:[%s3 + $0x38] sm:$0xf] %vm320, %v302
  %336 = vst.msk [vmem:[%s3 + $0x3c] sm:$0xf] %vm320, %v303
  // Predicated region
  $region14: #{vae_forward.18} parent=0 // pred_check
    _
  $region15: #{vae_forward.18} parent=0 // pred_check_branch
    %338 = sbr.rel (0) target = $region17
  $region16: #{vae_forward.18} parent=0 // pred_region
    _
  $region17: #{vae_forward.18} parent=0 // pred_fallthru
    _
  // Predicated region
  $region18: #{vae_forward.18} parent=0 // pred_check
    _
  $region19: #{vae_forward.18} parent=0 // pred_check_branch
    %340 = sbr.rel (0) target = $region21
  $region20: #{vae_forward.18} parent=0 // pred_region
    _
  $region21: #{vae_forward.18} parent=0 // pred_fallthru
    _

// kernel: tile.93
$region0: #{tile.93}
  #allocation0 [shape = 's32[1]{0}', space=sflag, size = 0x4, scoped, tag = 'scoped memory for tile.93']
  %s0 = inlined_call_operand.vmem [shape: f32[2], index: 0, kind: input, shape index: {}]
  %s1 = inlined_call_operand.vmem [shape: f32[4,2], index: 1, kind: output, shape index: {}]
  // Predicated region
  $region2: #{tile.93} parent=0 // pred_check
    _
  $region3: #{tile.93} parent=0 // pred_check_branch
    %3 = sbr.rel (0) target = $region5
  $region4: #{tile.93} parent=0 // pred_region
    _
  $region5: #{tile.93} parent=0 // pred_fallthru
    _
  %v4 = vld [vmem:[%s0] ss:$0 sm:$0xff]
  %5 = vst [vmem:[%s1] sm:$0xf] %v4

// kernel: mul.91
$region0: #{mul.91}
  %s0 = inlined_call_operand.vmem [shape: f32[4,2], index: 0, kind: input, shape index: {}]
  %s1 = inlined_call_operand.vmem [shape: f32[8], index: 1, kind: output, shape index: {}]
  $region1: #{mul.91} parent=0
    #allocation0 [shape = 'u8[4096]{0}', space=vmem, size = 0x1000, scoped, tag = 'scoped mem for output reshape']
    #allocation1 [shape = 'u8[4096]{0}', space=vmem, size = 0x1000, scoped, tag = 'scoped mem for input reshape']
    %s3 = sshll.u32 1, 4
    %s4 = ssub.s32 %s3, 1
    %v5 = vld [vmem:[%s0] sm:%s4]
    %6 = vst [vmem:[#allocation1] sm:%s4] %v5
    %v7 = vld [vmem:[#allocation1] sm:$0x1]
    %vm8 = vcmask 15360
    %9 = vst.msk [vmem:[#allocation0] sm:$0x1] %vm8, %v7
    %s10 = scalar_lea.vmem [#allocation1], 3
    %v11 = vld [vmem:[%s10] sm:$0x1]
    %12 = vrot.lane.b32.xlu0 %v11, 6
    %v13 = vpop.permute.xlu0 %12
    %vm14 = vcmask 64560
    %15 = vst.msk [vmem:[#allocation0] sm:$0x1] %vm14, %v13
    %s16 = scalar_lea.vmem [#allocation1], 2
    %v17 = vld [vmem:[%s16] sm:$0x1]
    %18 = vrot.lane.b32.xlu0 %v17, 4
    %v19 = vpop.permute.xlu0 %18
    %vm20 = vcmask 48160
    %21 = vst.msk [vmem:[#allocation0] sm:$0x1] %vm20, %v19
    %s22 = scalar_lea.vmem [#allocation1], 1
    %v23 = vld [vmem:[%s22] sm:$0x1]
    %24 = vrot.lane.b32.xlu0 %v23, 2
    %v25 = vpop.permute.xlu0 %24
    %vm26 = vcmask 31760
    %27 = vst.msk [vmem:[#allocation0] sm:$0x1] %vm26, %v25
    %s29 = sshll.u32 1, 1
    %s30 = ssub.s32 %s29, 1
    %v32 = vld [vmem:[#allocation0] sm:%s30]
    %s33 = sshll.u32 1, 1
    %s34 = ssub.s32 %s33, 1
    %35 = vst [vmem:[%s1] sm:%s34] %v32

// kernel: tile.99
$region0: #{tile.99}
  %s0 = inlined_call_operand.vmem [shape: f32[4,2], index: 0, kind: input, shape index: {}]
  %s1 = inlined_call_operand.vmem [shape: f32[1,8], index: 1, kind: output, shape index: {}]
  $region1: #{tile.99} parent=0
    #allocation0 [shape = 'u8[4096]{0}', space=vmem, size = 0x1000, scoped, tag = 'scoped mem for output reshape']
    #allocation1 [shape = 'u8[4096]{0}', space=vmem, size = 0x1000, scoped, tag = 'scoped mem for input reshape']
    %s3 = sshll.u32 1, 4
    %s4 = ssub.s32 %s3, 1
    %v5 = vld [vmem:[%s0] sm:%s4]
    %6 = vst [vmem:[#allocation1] sm:%s4] %v5
    %v7 = vld [vmem:[#allocation1] sm:$0x1]
    %vm8 = vcmask 15360
    %9 = vst.msk [vmem:[#allocation0] sm:$0x1] %vm8, %v7
    %s10 = scalar_lea.vmem [#allocation1], 3
    %v11 = vld [vmem:[%s10] sm:$0x1]
    %12 = vrot.lane.b32.xlu0 %v11, 6
    %v13 = vpop.permute.xlu0 %12
    %vm14 = vcmask 64560
    %15 = vst.msk [vmem:[#allocation0] sm:$0x1] %vm14, %v13
    %s16 = scalar_lea.vmem [#allocation1], 2
    %v17 = vld [vmem:[%s16] sm:$0x1]
    %18 = vrot.lane.b32.xlu0 %v17, 4
    %v19 = vpop.permute.xlu0 %18
    %vm20 = vcmask 48160
    %21 = vst.msk [vmem:[#allocation0] sm:$0x1] %vm20, %v19
    %s22 = scalar_lea.vmem [#allocation1], 1
    %v23 = vld [vmem:[%s22] sm:$0x1]
    %24 = vrot.lane.b32.xlu0 %v23, 2
    %v25 = vpop.permute.xlu0 %24
    %vm26 = vcmask 31760
    %27 = vst.msk [vmem:[#allocation0] sm:$0x1] %vm26, %v25
    %s29 = sshll.u32 1, 1
    %s30 = ssub.s32 %s29, 1
    %v32 = vld [vmem:[#allocation0] sm:%s30]
    %s33 = sshll.u32 1, 1
    %s34 = ssub.s32 %s33, 1
    %35 = vst [vmem:[%s1] sm:%s34] %v32

// kernel: vae_forward.19
$region0: #{vae_forward.19}
  #allocation0 [shape = 'u32[]', space=smem, size = 0x4, offset = 0x4, fixed_abs, tag = 'smem constant byte address 0x4 - core index']
  #allocation1 [shape = 'u32[144,128]{1,0:T(1,128)}', space=vmem, size = 0x12000, scoped, tag = 'internal scratch']
  %s0 = inlined_call_operand.vmem [shape: bf16[512,36], index: 0, kind: input, shape index: {}]
  %s1 = inlined_call_operand.vmem [shape: bf16[36,8], index: 1, kind: input, shape index: {}]
  %s2 = inlined_call_operand.vmem [shape: f32[1,8], index: 2, kind: input, shape index: {}]
  %s3 = inlined_call_operand.vmem [shape: f32[8,16], index: 3, kind: input, shape index: {}]
  %s4 = inlined_call_operand.vmem [shape: f32[512,16], index: 4, kind: output, shape index: {}]
  %s5 = sld [smem:[#allocation0]]
  $region49: #{vae_forward.19} parent=0
    _
  %s7 = ssub.s32 1, %s5
  %s8 = scalar_select 0, %s7, %s5
  loop: start=0, step=1, limit=4
  $region2: #{vae_forward.19} parent=0 // loop_pre_header
    _
  $region3: #{vae_forward.19} parent=0 // loop_header
    %s10 = sphi 0, %s14
    %p11 = scmp.ge.s32.totalorder %s10, 4
    %s20 = sphi 0, %s22
    %s23 = sphi 0, %s20
    %s24 = sphi 0, %s23
    %s40 = sphi 0, %s24
    %s44 = sphi 0, %s44
    %s46 = sphi 0, %s44
    %s47 = sphi 0, %s46
    %s61 = sphi 0, %s47
    %s65 = sphi 0, %s65
    %s67 = sphi 0, %s65
    %s68 = sphi 0, %s67
    %s82 = sphi 0, %s68
    %s86 = sphi 0, %s86
    %s88 = sphi 0, %s86
    %s89 = sphi 0, %s88
    %s103 = sphi 0, %s89
    %s109 = sphi 0, %s111
    %s112 = sphi 0, %s109
    %s113 = sphi 0, %s112
    %s129 = sphi 0, %s113
  $region4: #{vae_forward.19} parent=0 // loop_header_branch
    %13 = sbr.rel (%p11) target = $region8
  $region5: #{vae_forward.19} parent=0 // loop_body
    %s15 = ssub.s32 %s10, 1
    %s16 = ssub.s32 %s10, 2
    %s17 = sadd.s32 %s10, 1
    %s18 = ssub.s32 %s10, %s17
    %p19 = scmp.eq.s32.totalorder %s18, 0
    %s21 = sadd.s32 %s20, 1
    %s22 = scalar_select %p19, %s20, %s21
    %p25 = pneg %p19
    %p26 = scmp.eq.s32.totalorder %s10, 1
    %p27 = por %p25, %p26
    %p28 = scmp.ne.s32.totalorder %s20, %s23
    %p29 = scmp.eq.s32.totalorder %s10, 0
    %p30 = por %p28, %p29
    %p31 = scmp.ne.s32.totalorder %s20, %s23
    %p32 = scmp.eq.s32.totalorder %s15, 1
    %p33 = por %p31, %p32
    %p34 = scmp.ne.s32.totalorder %s23, %s24
    %p35 = scmp.eq.s32.totalorder %s15, 0
    %p36 = por %p34, %p35
    %p37 = scmp.ne.s32.totalorder %s23, %s24
    %p38 = scmp.eq.s32.totalorder %s16, 1
    %p39 = por %p37, %p38
    %p41 = scmp.ne.s32.totalorder %s24, %s40
    %p42 = scmp.eq.s32.totalorder %s16, 0
    %p43 = por %p41, %p42
    %s45 = sadd.s32 %s44, 1
    %p48 = scmp.eq.s32.totalorder %s10, 1
    %p49 = scmp.ne.s32.totalorder %s44, %s46
    %p50 = scmp.eq.s32.totalorder %s10, 0
    %p51 = por %p49, %p50
    %p52 = scmp.ne.s32.totalorder %s44, %s46
    %p53 = scmp.eq.s32.totalorder %s15, 1
    %p54 = por %p52, %p53
    %p55 = scmp.ne.s32.totalorder %s46, %s47
    %p56 = scmp.eq.s32.totalorder %s15, 0
    %p57 = por %p55, %p56
    %p58 = scmp.ne.s32.totalorder %s46, %s47
    %p59 = scmp.eq.s32.totalorder %s16, 1
    %p60 = por %p58, %p59
    %p62 = scmp.ne.s32.totalorder %s47, %s61
    %p63 = scmp.eq.s32.totalorder %s16, 0
    %p64 = por %p62, %p63
    %s66 = sadd.s32 %s65, 1
    %p69 = scmp.eq.s32.totalorder %s10, 1
    %p70 = scmp.ne.s32.totalorder %s65, %s67
    %p71 = scmp.eq.s32.totalorder %s10, 0
    %p72 = por %p70, %p71
    %p73 = scmp.ne.s32.totalorder %s65, %s67
    %p74 = scmp.eq.s32.totalorder %s15, 1
    %p75 = por %p73, %p74
    %p76 = scmp.ne.s32.totalorder %s67, %s68
    %p77 = scmp.eq.s32.totalorder %s15, 0
    %p78 = por %p76, %p77
    %p79 = scmp.ne.s32.totalorder %s67, %s68
    %p80 = scmp.eq.s32.totalorder %s16, 1
    %p81 = por %p79, %p80
    %p83 = scmp.ne.s32.totalorder %s68, %s82
    %p84 = scmp.eq.s32.totalorder %s16, 0
    %p85 = por %p83, %p84
    %s87 = sadd.s32 %s86, 1
    %p90 = scmp.eq.s32.totalorder %s10, 1
    %p91 = scmp.ne.s32.totalorder %s86, %s88
    %p92 = scmp.eq.s32.totalorder %s10, 0
    %p93 = por %p91, %p92
    %p94 = scmp.ne.s32.totalorder %s86, %s88
    %p95 = scmp.eq.s32.totalorder %s15, 1
    %p96 = por %p94, %p95
    %p97 = scmp.ne.s32.totalorder %s88, %s89
    %p98 = scmp.eq.s32.totalorder %s15, 0
    %p99 = por %p97, %p98
    %p100 = scmp.ne.s32.totalorder %s88, %s89
    %p101 = scmp.eq.s32.totalorder %s16, 1
    %p102 = por %p100, %p101
    %p104 = scmp.ne.s32.totalorder %s89, %s103
    %p105 = scmp.eq.s32.totalorder %s16, 0
    %p106 = por %p104, %p105
    %s107 = ssub.s32 %s10, %s17
    %p108 = scmp.eq.s32.totalorder %s107, 0
    %s110 = sadd.s32 %s109, 1
    %s111 = scalar_select %p108, %s109, %s110
    %p114 = pneg %p108
    %p115 = scmp.eq.s32.totalorder %s10, 1
    %p116 = por %p114, %p115
    %p117 = scmp.ne.s32.totalorder %s109, %s112
    %p118 = scmp.eq.s32.totalorder %s10, 0
    %p119 = por %p117, %p118
    %p120 = scmp.ne.s32.totalorder %s109, %s112
    %p121 = scmp.eq.s32.totalorder %s15, 1
    %p122 = por %p120, %p121
    %p123 = scmp.ne.s32.totalorder %s112, %s113
    %p124 = scmp.eq.s32.totalorder %s15, 0
    %p125 = por %p123, %p124
    %p126 = scmp.ne.s32.totalorder %s112, %s113
    %p127 = scmp.eq.s32.totalorder %s16, 1
    %p128 = por %p126, %p127
    %p130 = scmp.ne.s32.totalorder %s113, %s129
    %p131 = scmp.eq.s32.totalorder %s16, 0
    %p132 = por %p130, %p131
    %p133 = scmp.le.s32.totalorder 1, %s10
    %p134 = scmp.lt.s32.totalorder %s10, 3
    %p135 = pnand %p133, %p134
    %p136 = pneg %p135
    // Predicated region
    $region9: #{vae_forward.19} parent=5 // pred_check
      _
    $region10: #{vae_forward.19} parent=5 // pred_check_branch
      %138 = sbr.rel (%p135) target = $region12
    $region11: #{vae_forward.19} parent=5 // pred_region
      %s139 = ssub.s32 %s10, 1
      // Predicated region
      $region13: #{vae_forward.19} parent=11 // pred_check
        %p140 = pneg %p57
      $region14: #{vae_forward.19} parent=11 // pred_check_branch
        %142 = sbr.rel (%p140) target = $region16
      $region15: #{vae_forward.19} parent=11 // pred_region
        _
      $region16: #{vae_forward.19} parent=11 // pred_fallthru
        _
      // Predicated region
      $region17: #{vae_forward.19} parent=11 // pred_check
        %p143 = pneg %p78
      $region18: #{vae_forward.19} parent=11 // pred_check_branch
        %145 = sbr.rel (%p143) target = $region20
      $region19: #{vae_forward.19} parent=11 // pred_region
        _
      $region20: #{vae_forward.19} parent=11 // pred_fallthru
        _
      // Predicated region
      $region21: #{vae_forward.19} parent=11 // pred_check
        %p146 = pneg %p99
      $region22: #{vae_forward.19} parent=11 // pred_check_branch
        %148 = sbr.rel (%p146) target = $region24
      $region23: #{vae_forward.19} parent=11 // pred_region
        _
      $region24: #{vae_forward.19} parent=11 // pred_fallthru
        _
    $region12: #{vae_forward.19} parent=5 // pred_fallthru
      _
    %p149 = scmp.lt.s32.totalorder %s10, 2
    // Predicated region
    $region25: #{vae_forward.19} parent=5 // pred_check
      %p150 = pneg %p149
    $region26: #{vae_forward.19} parent=5 // pred_check_branch
      %152 = sbr.rel (%p150) target = $region28
    $region27: #{vae_forward.19} parent=5 // pred_region
      // Predicated region
      $region29: #{vae_forward.19} parent=27 // pred_check
        %p153 = pneg %p30
      $region30: #{vae_forward.19} parent=27 // pred_check_branch
        %155 = sbr.rel (%p153) target = $region32
      $region31: #{vae_forward.19} parent=27 // pred_region
        %s156 = smul.u32 32, %s10
        %p157 = scmp.lt.s32.totalorder %s156, 63
        %s158 = scalar_select %p157, %s156, 63
        %s159 = smul.addr %s158, 4
        %s160 = scalar_lea.vmem %s0, %s159
        %s161 = smul.u32 32, %s10
      $region32: #{vae_forward.19} parent=27 // pred_fallthru
        _
    $region28: #{vae_forward.19} parent=5 // pred_fallthru
      _
    %p162 = scmp.le.s32.totalorder 1, %s10
    %p163 = scmp.lt.s32.totalorder %s10, 3
    %p164 = pnand %p162, %p163
    %p165 = pneg %p164
    // Predicated region
    $region33: #{vae_forward.19} parent=5 // pred_check
      _
    $region34: #{vae_forward.19} parent=5 // pred_check_branch
      %167 = sbr.rel (%p164) target = $region36
    $region35: #{vae_forward.19} parent=5 // pred_region
      %s168 = ssub.s32 %s10, 1
      %s169 = smul.u32 32, %s15
      %p170 = scmp.lt.s32.totalorder %s169, 63
      %s171 = scalar_select %p170, %s169, 63
      %s172 = smul.addr %s171, 4
      %s173 = scalar_lea.vmem %s0, %s172
      %p174 = pneg %p36
      %p175 = pneg %p33
      %p176 = pneg %p57
      %p177 = pneg %p54
      %p178 = pneg %p78
      %p179 = pneg %p75
      %p180 = pneg %p99
      %p181 = pneg %p96
      %p182 = pneg %p125
      %p183 = pneg %p122
      %s184 = smul.u32 32, %s15
      %p185 = scmp.lt.s32.totalorder %s184, 63
      %s186 = scalar_select %p185, %s184, 63
      %s187 = smul.addr %s186, 8
      %s188 = scalar_lea.vmem %s4, %s187
      %s189 = smul.u32 32, %s15
      %p190 = scmp.lt.s32.totalorder %s189, 63
      %s191 = scalar_select %p190, %s189, 63
      %s192 = smul.addr %s191, 4
      %s193 = scalar_lea.vmem %s0, %s192
      %s194 = smul.u32 32, %s15
      %s195 = smul.u32 32, %s15
      %p196 = scmp.lt.s32.totalorder %s195, 63
      %s197 = scalar_select %p196, %s195, 63
      %s198 = smul.addr %s197, 8
      %s199 = scalar_lea.vmem %s4, %s198
      %s200 = smul.u32 32, %s15
      %v202 = vld [vmem:[%s193] sm:$0xf]
      %v203 = vld [vmem:[%s193 + $0x4] sm:$0xf]
      %v204 = vld [vmem:[%s193 + $0x8] sm:$0xf]
      %v205 = vld [vmem:[%s193 + $0xc] sm:$0xf]
      %v206 = vld [vmem:[%s193 + $0x10] sm:$0xf]
      %v207 = vld [vmem:[%s193 + $0x14] sm:$0xf]
      %v208 = vld [vmem:[%s193 + $0x18] sm:$0xf]
      %v209 = vld [vmem:[%s193 + $0x1c] sm:$0xf]
      %v210 = vld [vmem:[%s193 + $0x20] sm:$0xf]
      %v211 = vld [vmem:[%s193 + $0x24] sm:$0xf]
      %v212 = vld [vmem:[%s193 + $0x28] sm:$0xf]
      %v213 = vld [vmem:[%s193 + $0x2c] sm:$0xf]
      %v214 = vld [vmem:[%s193 + $0x30] sm:$0xf]
      %v215 = vld [vmem:[%s193 + $0x34] sm:$0xf]
      %v216 = vld [vmem:[%s193 + $0x38] sm:$0xf]
      %v217 = vld [vmem:[%s193 + $0x3c] sm:$0xf]
      %v218 = vld [vmem:[%s193 + $0x40] sm:$0xf]
      %v219 = vld [vmem:[%s193 + $0x44] sm:$0xf]
      %v220 = vld [vmem:[%s193 + $0x48] sm:$0xf]
      %v221 = vld [vmem:[%s193 + $0x4c] sm:$0xf]
      %v222 = vld [vmem:[%s193 + $0x50] sm:$0xf]
      %v223 = vld [vmem:[%s193 + $0x54] sm:$0xf]
      %v224 = vld [vmem:[%s193 + $0x58] sm:$0xf]
      %v225 = vld [vmem:[%s193 + $0x5c] sm:$0xf]
      %v226 = vld [vmem:[%s193 + $0x60] sm:$0xf]
      %v227 = vld [vmem:[%s193 + $0x64] sm:$0xf]
      %v228 = vld [vmem:[%s193 + $0x68] sm:$0xf]
      %v229 = vld [vmem:[%s193 + $0x6c] sm:$0xf]
      %v230 = vld [vmem:[%s193 + $0x70] sm:$0xf]
      %v231 = vld [vmem:[%s193 + $0x74] sm:$0xf]
      %v232 = vld [vmem:[%s193 + $0x78] sm:$0xf]
      %v233 = vld [vmem:[%s193 + $0x7c] sm:$0xf]
      %v234 = vld [vmem:[%s1] sm:$0xf]
      %v235 = vld [vmem:[%s1 + $0x4] sm:$0xf]
      %v236 = vld [vmem:[%s1 + $0x8] sm:$0xf]
      %v237 = vld [vmem:[%s1 + $0xc] sm:$0xf]
      %v238 = vld [vmem:[%s1 + $0x10] sm:$0x3]
      %v239 = vld [vmem:[%s2] sm:$0x1]
      %v241 = vlaneseq
      %v242 = vshrl.u32 %v241, 7
      %v243 = vsub.s32 0, %v242
      %v244 = vrot.slane %v239, %v243
      %v278 = vunpack.c.l.b16 %v202
      %v279 = vunpack.c.l.b16 %v203
      %v280 = vunpack.c.l.b16 %v204
      %v281 = vunpack.c.l.b16 %v205
      %v282 = vunpack.c.l.b16 %v206
      %v283 = vunpack.c.l.b16 %v207
      %v284 = vunpack.c.l.b16 %v208
      %v285 = vunpack.c.l.b16 %v209
      %v286 = vunpack.c.l.b16 %v210
      %v287 = vunpack.c.l.b16 %v211
      %v288 = vunpack.c.l.b16 %v212
      %v289 = vunpack.c.l.b16 %v213
      %v290 = vunpack.c.l.b16 %v214
      %v291 = vunpack.c.l.b16 %v215
      %v292 = vunpack.c.l.b16 %v216
      %v293 = vunpack.c.l.b16 %v217
      %v294 = vunpack.c.l.b16 %v218
      %v295 = vunpack.c.l.b16 %v219
      %v296 = vunpack.c.l.b16 %v220
      %v297 = vunpack.c.l.b16 %v221
      %v298 = vunpack.c.l.b16 %v222
      %v299 = vunpack.c.l.b16 %v223
      %v300 = vunpack.c.l.b16 %v224
      %v301 = vunpack.c.l.b16 %v225
      %v302 = vunpack.c.l.b16 %v226
      %v303 = vunpack.c.l.b16 %v227
      %v304 = vunpack.c.l.b16 %v228
      %v305 = vunpack.c.l.b16 %v229
      %v306 = vunpack.c.l.b16 %v230
      %v307 = vunpack.c.l.b16 %v231
      %v308 = vunpack.c.l.b16 %v232
      %v309 = vunpack.c.l.b16 %v233
      %v310 = vpack.c.b16 %v279, %v278
      %v311 = vpack.c.b16 %v281, %v280
      %v312 = vpack.c.b16 %v283, %v282
      %v313 = vpack.c.b16 %v285, %v284
      %v314 = vpack.c.b16 %v287, %v286
      %v315 = vpack.c.b16 %v289, %v288
      %v316 = vpack.c.b16 %v291, %v290
      %v317 = vpack.c.b16 %v293, %v292
      %v318 = vpack.c.b16 %v295, %v294
      %v319 = vpack.c.b16 %v297, %v296
      %v320 = vpack.c.b16 %v299, %v298
      %v321 = vpack.c.b16 %v301, %v300
      %v322 = vpack.c.b16 %v303, %v302
      %v323 = vpack.c.b16 %v305, %v304
      %v324 = vpack.c.b16 %v307, %v306
      %v325 = vpack.c.b16 %v309, %v308
      %v331 = vunpack.c.l.b16 %v234
      %v332 = vunpack.c.l.b16 %v235
      %v333 = vunpack.c.l.b16 %v236
      %v334 = vunpack.c.l.b16 %v237
      %v335 = vunpack.c.l.b16 %v238
      %v336 = vpack.c.b16 %v332, %v331
      %v337 = vpack.c.b16 %v334, %v333
      %v338 = vpack.c.b16 %v335, %v335
      %vm341 = vcmask 293888
      %v343 = vsel %vm341, %v310, 0
      %v346 = vsel %vm341, %v311, 0
      %v349 = vsel %vm341, %v312, 0
      %v352 = vsel %vm341, %v313, 0
      %v355 = vsel %vm341, %v314, 0
      %v358 = vsel %vm341, %v315, 0
      %v361 = vsel %vm341, %v316, 0
      %v364 = vsel %vm341, %v317, 0
      %v367 = vsel %vm341, %v318, 0
      %v370 = vsel %vm341, %v319, 0
      %v373 = vsel %vm341, %v320, 0
      %v376 = vsel %vm341, %v321, 0
      %v379 = vsel %vm341, %v322, 0
      %v382 = vsel %vm341, %v323, 0
      %v385 = vsel %vm341, %v324, 0
      %v388 = vsel %vm341, %v325, 0
      %vm390 = vcmask 1041408
      %v392 = vsel %vm390, %v338, 0
      %394 = vmatprep.subr.bf16.mxu0 0
      %395 = vmatpush1.bf16.msra.mxu0 0
      %396 = vmatprep.subr.bf16.mxu0 0
      %397 = vmatpush1.bf16.msra.mxu0 0
      %398 = vmatprep.subr.bf16.mxu0 0
      %399 = vmatpush1.bf16.msra.mxu0 0
      %400 = vmatprep.subr.bf16.mxu0 0
      %401 = vmatpush1.bf16.msra.mxu0 0
      %402 = vmatprep.subr.bf16.mxu0 0
      %403 = vmatpush1.bf16.msra.mxu0 0
      %404 = vmatprep.subr.bf16.mxu0 0
      %405 = vmatpush1.bf16.msra.mxu0 %v392
      %406 = vmatprep.subr.bf16.mxu0 0
      %407 = vmatpush1.bf16.msra.mxu0 %v337
      %408 = vmatprep.subr.bf16.mxu0 0
      %409 = vmatpush1.bf16.msra.mxu0 %v336
      %410 = vmatprep.subr.bf16.mxu0 0
      %411 = vmatpush2.bf16.msra.mxu0 0
      %412 = vmatprep.subr.bf16.mxu0 0
      %413 = vmatpush2.bf16.msra.mxu0 0
      %414 = vmatprep.subr.bf16.mxu0 0
      %415 = vmatpush2.bf16.msra.mxu0 0
      %416 = vmatprep.subr.bf16.mxu0 0
      %417 = vmatpush2.bf16.msra.mxu0 0
      %418 = vmatprep.subr.bf16.mxu0 0
      %419 = vmatpush2.bf16.msra.mxu0 0
      %420 = vmatprep.subr.bf16.mxu0 0
      %421 = vmatpush2.bf16.msra.mxu0 0
      %422 = vmatprep.subr.bf16.mxu0 0
      %423 = vmatpush2.bf16.msra.mxu0 0
      %424 = vmatprep.subr.bf16.mxu0 0
      %425 = vmatpush2.bf16.msra.mxu0 0
      %426 = vmatprep.mubr.bf16.mxu0 0
      %427 = vmatmul.mubr.bf16.gmra.mxu0 %v343
      %v428 = vpop.f32.mrf.mxu0
      %v429 = vadd.f32 %v244, %v428
      %v430 = vpop.f32.mrf.mxu0
      %v431 = vpop.f32.mrf.mxu0
      %v432 = vadd.f32 %v244, %v431
      %v433 = vpop.f32.mrf.mxu0
      %434 = vmatprep.mubr.bf16.mxu0 0
      %435 = vmatmul.mubr.bf16.gmra.mxu0 %v346
      %v436 = vpop.f32.mrf.mxu0
      %v437 = vadd.f32 %v244, %v436
      %v438 = vpop.f32.mrf.mxu0
      %v439 = vpop.f32.mrf.mxu0
      %v440 = vadd.f32 %v244, %v439
      %v441 = vpop.f32.mrf.mxu0
      %442 = vmatprep.mubr.bf16.mxu0 0
      %443 = vmatmul.mubr.bf16.gmra.mxu0 %v349
      %v444 = vpop.f32.mrf.mxu0
      %v445 = vadd.f32 %v244, %v444
      %v446 = vpop.f32.mrf.mxu0
      %v447 = vpop.f32.mrf.mxu0
      %v448 = vadd.f32 %v244, %v447
      %v449 = vpop.f32.mrf.mxu0
      %450 = vmatprep.mubr.bf16.mxu0 0
      %451 = vmatmul.mubr.bf16.gmra.mxu0 %v352
      %v452 = vpop.f32.mrf.mxu0
      %v453 = vadd.f32 %v244, %v452
      %v454 = vpop.f32.mrf.mxu0
      %v455 = vpop.f32.mrf.mxu0
      %v456 = vadd.f32 %v244, %v455
      %v457 = vpop.f32.mrf.mxu0
      %458 = vmatprep.mubr.bf16.mxu0 0
      %459 = vmatmul.mubr.bf16.gmra.mxu0 %v355
      %v460 = vpop.f32.mrf.mxu0
      %v461 = vadd.f32 %v244, %v460
      %v462 = vpop.f32.mrf.mxu0
      %v463 = vpop.f32.mrf.mxu0
      %v464 = vadd.f32 %v244, %v463
      %v465 = vpop.f32.mrf.mxu0
      %466 = vmatprep.mubr.bf16.mxu0 0
      %467 = vmatmul.mubr.bf16.gmra.mxu0 %v358
      %v468 = vpop.f32.mrf.mxu0
      %v469 = vadd.f32 %v244, %v468
      %v470 = vpop.f32.mrf.mxu0
      %v471 = vpop.f32.mrf.mxu0
      %v472 = vadd.f32 %v244, %v471
      %v473 = vpop.f32.mrf.mxu0
      %474 = vmatprep.mubr.bf16.mxu0 0
      %475 = vmatmul.mubr.bf16.gmra.mxu0 %v361
      %v476 = vpop.f32.mrf.mxu0
      %v477 = vadd.f32 %v244, %v476
      %v478 = vpop.f32.mrf.mxu0
      %v479 = vpop.f32.mrf.mxu0
      %v480 = vadd.f32 %v244, %v479
      %v481 = vpop.f32.mrf.mxu0
      %482 = vmatprep.mubr.bf16.mxu0 0
      %483 = vmatmul.mubr.bf16.gmra.mxu0 %v364
      %v484 = vpop.f32.mrf.mxu0
      %v485 = vadd.f32 %v244, %v484
      %v486 = vpop.f32.mrf.mxu0
      %v487 = vpop.f32.mrf.mxu0
      %v488 = vadd.f32 %v244, %v487
      %v489 = vpop.f32.mrf.mxu0
      %490 = vmatprep.mubr.bf16.mxu0 0
      %491 = vmatmul.mubr.bf16.gmra.mxu0 %v367
      %v492 = vpop.f32.mrf.mxu0
      %v493 = vadd.f32 %v244, %v492
      %v494 = vpop.f32.mrf.mxu0
      %v495 = vpop.f32.mrf.mxu0
      %v496 = vadd.f32 %v244, %v495
      %v497 = vpop.f32.mrf.mxu0
      %498 = vmatprep.mubr.bf16.mxu0 0
      %499 = vmatmul.mubr.bf16.gmra.mxu0 %v370
      %v500 = vpop.f32.mrf.mxu0
      %v501 = vadd.f32 %v244, %v500
      %v502 = vpop.f32.mrf.mxu0
      %v503 = vpop.f32.mrf.mxu0
      %v504 = vadd.f32 %v244, %v503
      %v505 = vpop.f32.mrf.mxu0
      %506 = vmatprep.mubr.bf16.mxu0 0
      %507 = vmatmul.mubr.bf16.gmra.mxu0 %v373
      %v508 = vpop.f32.mrf.mxu0
      %v509 = vadd.f32 %v244, %v508
      %v510 = vpop.f32.mrf.mxu0
      %v511 = vpop.f32.mrf.mxu0
      %v512 = vadd.f32 %v244, %v511
      %v513 = vpop.f32.mrf.mxu0
      %514 = vmatprep.mubr.bf16.mxu0 0
      %515 = vmatmul.mubr.bf16.gmra.mxu0 %v376
      %v516 = vpop.f32.mrf.mxu0
      %v517 = vadd.f32 %v244, %v516
      %v518 = vpop.f32.mrf.mxu0
      %v519 = vpop.f32.mrf.mxu0
      %v520 = vadd.f32 %v244, %v519
      %v521 = vpop.f32.mrf.mxu0
      %522 = vmatprep.mubr.bf16.mxu0 0
      %523 = vmatmul.mubr.bf16.gmra.mxu0 %v379
      %v524 = vpop.f32.mrf.mxu0
      %v525 = vadd.f32 %v244, %v524
      %v526 = vpop.f32.mrf.mxu0
      %v527 = vpop.f32.mrf.mxu0
      %v528 = vadd.f32 %v244, %v527
      %v529 = vpop.f32.mrf.mxu0
      %530 = vmatprep.mubr.bf16.mxu0 0
      %531 = vmatmul.mubr.bf16.gmra.mxu0 %v382
      %v532 = vpop.f32.mrf.mxu0
      %v533 = vadd.f32 %v244, %v532
      %v534 = vpop.f32.mrf.mxu0
      %v535 = vpop.f32.mrf.mxu0
      %v536 = vadd.f32 %v244, %v535
      %v537 = vpop.f32.mrf.mxu0
      %538 = vmatprep.mubr.bf16.mxu0 0
      %539 = vmatmul.mubr.bf16.gmra.mxu0 %v385
      %v540 = vpop.f32.mrf.mxu0
      %v541 = vadd.f32 %v244, %v540
      %v542 = vpop.f32.mrf.mxu0
      %v543 = vpop.f32.mrf.mxu0
      %v544 = vadd.f32 %v244, %v543
      %v545 = vpop.f32.mrf.mxu0
      %546 = vmatprep.mubr.bf16.mxu0 0
      %547 = vmatmul.mubr.bf16.gmra.mxu0 %v388
      %v548 = vpop.f32.mrf.mxu0
      %v549 = vadd.f32 %v244, %v548
      %v550 = vpop.f32.mrf.mxu0
      %v551 = vpop.f32.mrf.mxu0
      %v552 = vadd.f32 %v244, %v551
      %v553 = vpop.f32.mrf.mxu0
      %554 = vdwg.mxu0
      %v555 = vmax.f32 %v429, 0.0
      %v556 = vmax.f32 %v432, 0.0
      %v557 = vmax.f32 %v437, 0.0
      %v558 = vmax.f32 %v440, 0.0
      %v559 = vmax.f32 %v445, 0.0
      %v560 = vmax.f32 %v448, 0.0
      %v561 = vmax.f32 %v453, 0.0
      %v562 = vmax.f32 %v456, 0.0
      %v563 = vmax.f32 %v461, 0.0
      %v564 = vmax.f32 %v464, 0.0
      %v565 = vmax.f32 %v469, 0.0
      %v566 = vmax.f32 %v472, 0.0
      %v567 = vmax.f32 %v477, 0.0
      %v568 = vmax.f32 %v480, 0.0
      %v569 = vmax.f32 %v485, 0.0
      %v570 = vmax.f32 %v488, 0.0
      %v571 = vmax.f32 %v493, 0.0
      %v572 = vmax.f32 %v496, 0.0
      %v573 = vmax.f32 %v501, 0.0
      %v574 = vmax.f32 %v504, 0.0
      %v575 = vmax.f32 %v509, 0.0
      %v576 = vmax.f32 %v512, 0.0
      %v577 = vmax.f32 %v517, 0.0
      %v578 = vmax.f32 %v520, 0.0
      %v579 = vmax.f32 %v525, 0.0
      %v580 = vmax.f32 %v528, 0.0
      %v581 = vmax.f32 %v533, 0.0
      %v582 = vmax.f32 %v536, 0.0
      %v583 = vmax.f32 %v541, 0.0
      %v584 = vmax.f32 %v544, 0.0
      %v585 = vmax.f32 %v549, 0.0
      %v586 = vmax.f32 %v552, 0.0
      %v587 = vld [vmem:[%s3] sm:$0xff]
      %vm588 = vcmask 64512
      %v590 = vsel %vm588, %v555, 0
      %v593 = vsel %vm588, %v556, 0
      %v596 = vsel %vm588, %v557, 0
      %v599 = vsel %vm588, %v558, 0
      %v602 = vsel %vm588, %v559, 0
      %v605 = vsel %vm588, %v560, 0
      %v608 = vsel %vm588, %v561, 0
      %v611 = vsel %vm588, %v562, 0
      %v614 = vsel %vm588, %v563, 0
      %v617 = vsel %vm588, %v564, 0
      %v620 = vsel %vm588, %v565, 0
      %v623 = vsel %vm588, %v566, 0
      %v626 = vsel %vm588, %v567, 0
      %v629 = vsel %vm588, %v568, 0
      %v632 = vsel %vm588, %v569, 0
      %v635 = vsel %vm588, %v570, 0
      %v638 = vsel %vm588, %v571, 0
      %v641 = vsel %vm588, %v572, 0
      %v644 = vsel %vm588, %v573, 0
      %v647 = vsel %vm588, %v574, 0
      %v650 = vsel %vm588, %v575, 0
      %v653 = vsel %vm588, %v576, 0
      %v656 = vsel %vm588, %v577, 0
      %v659 = vsel %vm588, %v578, 0
      %v662 = vsel %vm588, %v579, 0
      %v665 = vsel %vm588, %v580, 0
      %v668 = vsel %vm588, %v581, 0
      %v671 = vsel %vm588, %v582, 0
      %v674 = vsel %vm588, %v583, 0
      %v677 = vsel %vm588, %v584, 0
      %v680 = vsel %vm588, %v585, 0
      %v683 = vsel %vm588, %v586, 0
      %685 = vmatprep.subr.mxu0 0.0
      %686 = vmatpush1.msra.mxu0 0.0
      %687 = vmatprep.subr.mxu0 0.0
      %688 = vmatpush1.msra.mxu0 0.0
      %689 = vmatprep.subr.mxu0 0.0
      %690 = vmatpush1.msra.mxu0 0.0
      %691 = vmatprep.subr.mxu0 0.0
      %692 = vmatpush1.msra.mxu0 0.0
      %693 = vmatprep.subr.mxu0 0.0
      %694 = vmatpush1.msra.mxu0 0.0
      %695 = vmatprep.subr.mxu0 0.0
      %696 = vmatpush1.msra.mxu0 0.0
      %697 = vmatprep.subr.mxu0 0.0
      %698 = vmatpush1.msra.mxu0 0.0
      %699 = vmatprep.subr.mxu0 0.0
      %700 = vmatpush1.msra.mxu0 0.0
      %701 = vmatprep.subr.mxu0 0.0
      %702 = vmatpush1.msra.mxu0 0.0
      %703 = vmatprep.subr.mxu0 0.0
      %704 = vmatpush1.msra.mxu0 0.0
      %705 = vmatprep.subr.mxu0 0.0
      %706 = vmatpush1.msra.mxu0 0.0
      %707 = vmatprep.subr.mxu0 0.0
      %708 = vmatpush1.msra.mxu0 0.0
      %709 = vmatprep.subr.mxu0 0.0
      %710 = vmatpush1.msra.mxu0 0.0
      %711 = vmatprep.subr.mxu0 0.0
      %712 = vmatpush1.msra.mxu0 0.0
      %713 = vmatprep.subr.mxu0 0.0
      %714 = vmatpush1.msra.mxu0 0.0
      %715 = vmatprep.subr.mxu0 0.0
      %716 = vmatpush1.msra.mxu0 %v587
      %717 = vmatprep.subr.mxu0 0.0
      %718 = vmatpush2.msra.mxu0 0.0
      %719 = vmatprep.subr.mxu0 0.0
      %720 = vmatpush2.msra.mxu0 0.0
      %721 = vmatprep.subr.mxu0 0.0
      %722 = vmatpush2.msra.mxu0 0.0
      %723 = vmatprep.subr.mxu0 0.0
      %724 = vmatpush2.msra.mxu0 0.0
      %725 = vmatprep.subr.mxu0 0.0
      %726 = vmatpush2.msra.mxu0 0.0
      %727 = vmatprep.subr.mxu0 0.0
      %728 = vmatpush2.msra.mxu0 0.0
      %729 = vmatprep.subr.mxu0 0.0
      %730 = vmatpush2.msra.mxu0 0.0
      %731 = vmatprep.subr.mxu0 0.0
      %732 = vmatpush2.msra.mxu0 0.0
      %733 = vmatprep.subr.mxu0 0.0
      %734 = vmatpush2.msra.mxu0 0.0
      %735 = vmatprep.subr.mxu0 0.0
      %736 = vmatpush2.msra.mxu0 0.0
      %737 = vmatprep.subr.mxu0 0.0
      %738 = vmatpush2.msra.mxu0 0.0
      %739 = vmatprep.subr.mxu0 0.0
      %740 = vmatpush2.msra.mxu0 0.0
      %741 = vmatprep.subr.mxu0 0.0
      %742 = vmatpush2.msra.mxu0 0.0
      %743 = vmatprep.subr.mxu0 0.0
      %744 = vmatpush2.msra.mxu0 0.0
      %745 = vmatprep.subr.mxu0 0.0
      %746 = vmatpush2.msra.mxu0 0.0
      %747 = vmatprep.subr.mxu0 0.0
      %748 = vmatpush2.msra.mxu0 0.0
      %749 = vmatprep.mubr.f32.mxu0 0.0
      %750 = vmatmul.mubr.f32.gmra.mxu0 %v590
      %v751 = vpop.f32.mrf.mxu0
      %v752 = vadd.f32 0.0, %v751
      %v753 = vpop.f32.mrf.mxu0
      %754 = vmatprep.mubr.f32.mxu0 0.0
      %755 = vmatmul.mubr.f32.gmra.mxu0 %v593
      %v756 = vpop.f32.mrf.mxu0
      %v757 = vadd.f32 0.0, %v756
      %v758 = vpop.f32.mrf.mxu0
      %759 = vmatprep.mubr.f32.mxu0 0.0
      %760 = vmatmul.mubr.f32.gmra.mxu0 %v596
      %v761 = vpop.f32.mrf.mxu0
      %v762 = vadd.f32 0.0, %v761
      %v763 = vpop.f32.mrf.mxu0
      %764 = vmatprep.mubr.f32.mxu0 0.0
      %765 = vmatmul.mubr.f32.gmra.mxu0 %v599
      %v766 = vpop.f32.mrf.mxu0
      %v767 = vadd.f32 0.0, %v766
      %v768 = vpop.f32.mrf.mxu0
      %769 = vmatprep.mubr.f32.mxu0 0.0
      %770 = vmatmul.mubr.f32.gmra.mxu0 %v602
      %v771 = vpop.f32.mrf.mxu0
      %v772 = vadd.f32 0.0, %v771
      %v773 = vpop.f32.mrf.mxu0
      %774 = vmatprep.mubr.f32.mxu0 0.0
      %775 = vmatmul.mubr.f32.gmra.mxu0 %v605
      %v776 = vpop.f32.mrf.mxu0
      %v777 = vadd.f32 0.0, %v776
      %v778 = vpop.f32.mrf.mxu0
      %779 = vmatprep.mubr.f32.mxu0 0.0
      %780 = vmatmul.mubr.f32.gmra.mxu0 %v608
      %v781 = vpop.f32.mrf.mxu0
      %v782 = vadd.f32 0.0, %v781
      %v783 = vpop.f32.mrf.mxu0
      %784 = vmatprep.mubr.f32.mxu0 0.0
      %785 = vmatmul.mubr.f32.gmra.mxu0 %v611
      %v786 = vpop.f32.mrf.mxu0
      %v787 = vadd.f32 0.0, %v786
      %v788 = vpop.f32.mrf.mxu0
      %789 = vmatprep.mubr.f32.mxu0 0.0
      %790 = vmatmul.mubr.f32.gmra.mxu0 %v614
      %v791 = vpop.f32.mrf.mxu0
      %v792 = vadd.f32 0.0, %v791
      %v793 = vpop.f32.mrf.mxu0
      %794 = vmatprep.mubr.f32.mxu0 0.0
      %795 = vmatmul.mubr.f32.gmra.mxu0 %v617
      %v796 = vpop.f32.mrf.mxu0
      %v797 = vadd.f32 0.0, %v796
      %v798 = vpop.f32.mrf.mxu0
      %799 = vmatprep.mubr.f32.mxu0 0.0
      %800 = vmatmul.mubr.f32.gmra.mxu0 %v620
      %v801 = vpop.f32.mrf.mxu0
      %v802 = vadd.f32 0.0, %v801
      %v803 = vpop.f32.mrf.mxu0
      %804 = vmatprep.mubr.f32.mxu0 0.0
      %805 = vmatmul.mubr.f32.gmra.mxu0 %v623
      %v806 = vpop.f32.mrf.mxu0
      %v807 = vadd.f32 0.0, %v806
      %v808 = vpop.f32.mrf.mxu0
      %809 = vmatprep.mubr.f32.mxu0 0.0
      %810 = vmatmul.mubr.f32.gmra.mxu0 %v626
      %v811 = vpop.f32.mrf.mxu0
      %v812 = vadd.f32 0.0, %v811
      %v813 = vpop.f32.mrf.mxu0
      %814 = vmatprep.mubr.f32.mxu0 0.0
      %815 = vmatmul.mubr.f32.gmra.mxu0 %v629
      %v816 = vpop.f32.mrf.mxu0
      %v817 = vadd.f32 0.0, %v816
      %v818 = vpop.f32.mrf.mxu0
      %819 = vmatprep.mubr.f32.mxu0 0.0
      %820 = vmatmul.mubr.f32.gmra.mxu0 %v632
      %v821 = vpop.f32.mrf.mxu0
      %v822 = vadd.f32 0.0, %v821
      %v823 = vpop.f32.mrf.mxu0
      %824 = vmatprep.mubr.f32.mxu0 0.0
      %825 = vmatmul.mubr.f32.gmra.mxu0 %v635
      %v826 = vpop.f32.mrf.mxu0
      %v827 = vadd.f32 0.0, %v826
      %v828 = vpop.f32.mrf.mxu0
      %829 = vmatprep.mubr.f32.mxu0 0.0
      %830 = vmatmul.mubr.f32.gmra.mxu0 %v638
      %v831 = vpop.f32.mrf.mxu0
      %v832 = vadd.f32 0.0, %v831
      %v833 = vpop.f32.mrf.mxu0
      %834 = vmatprep.mubr.f32.mxu0 0.0
      %835 = vmatmul.mubr.f32.gmra.mxu0 %v641
      %v836 = vpop.f32.mrf.mxu0
      %v837 = vadd.f32 0.0, %v836
      %v838 = vpop.f32.mrf.mxu0
      %839 = vmatprep.mubr.f32.mxu0 0.0
      %840 = vmatmul.mubr.f32.gmra.mxu0 %v644
      %v841 = vpop.f32.mrf.mxu0
      %v842 = vadd.f32 0.0, %v841
      %v843 = vpop.f32.mrf.mxu0
      %844 = vmatprep.mubr.f32.mxu0 0.0
      %845 = vmatmul.mubr.f32.gmra.mxu0 %v647
      %v846 = vpop.f32.mrf.mxu0
      %v847 = vadd.f32 0.0, %v846
      %v848 = vpop.f32.mrf.mxu0
      %849 = vmatprep.mubr.f32.mxu0 0.0
      %850 = vmatmul.mubr.f32.gmra.mxu0 %v650
      %v851 = vpop.f32.mrf.mxu0
      %v852 = vadd.f32 0.0, %v851
      %v853 = vpop.f32.mrf.mxu0
      %854 = vmatprep.mubr.f32.mxu0 0.0
      %855 = vmatmul.mubr.f32.gmra.mxu0 %v653
      %v856 = vpop.f32.mrf.mxu0
      %v857 = vadd.f32 0.0, %v856
      %v858 = vpop.f32.mrf.mxu0
      %859 = vmatprep.mubr.f32.mxu0 0.0
      %860 = vmatmul.mubr.f32.gmra.mxu0 %v656
      %v861 = vpop.f32.mrf.mxu0
      %v862 = vadd.f32 0.0, %v861
      %v863 = vpop.f32.mrf.mxu0
      %864 = vmatprep.mubr.f32.mxu0 0.0
      %865 = vmatmul.mubr.f32.gmra.mxu0 %v659
      %v866 = vpop.f32.mrf.mxu0
      %v867 = vadd.f32 0.0, %v866
      %v868 = vpop.f32.mrf.mxu0
      %869 = vmatprep.mubr.f32.mxu0 0.0
      %870 = vmatmul.mubr.f32.gmra.mxu0 %v662
      %v871 = vpop.f32.mrf.mxu0
      %v872 = vadd.f32 0.0, %v871
      %v873 = vpop.f32.mrf.mxu0
      %874 = vmatprep.mubr.f32.mxu0 0.0
      %875 = vmatmul.mubr.f32.gmra.mxu0 %v665
      %v876 = vpop.f32.mrf.mxu0
      %v877 = vadd.f32 0.0, %v876
      %v878 = vpop.f32.mrf.mxu0
      %879 = vmatprep.mubr.f32.mxu0 0.0
      %880 = vmatmul.mubr.f32.gmra.mxu0 %v668
      %v881 = vpop.f32.mrf.mxu0
      %v882 = vadd.f32 0.0, %v881
      %v883 = vpop.f32.mrf.mxu0
      %884 = vmatprep.mubr.f32.mxu0 0.0
      %885 = vmatmul.mubr.f32.gmra.mxu0 %v671
      %v886 = vpop.f32.mrf.mxu0
      %v887 = vadd.f32 0.0, %v886
      %v888 = vpop.f32.mrf.mxu0
      %889 = vmatprep.mubr.f32.mxu0 0.0
      %890 = vmatmul.mubr.f32.gmra.mxu0 %v674
      %v891 = vpop.f32.mrf.mxu0
      %v892 = vadd.f32 0.0, %v891
      %v893 = vpop.f32.mrf.mxu0
      %894 = vmatprep.mubr.f32.mxu0 0.0
      %895 = vmatmul.mubr.f32.gmra.mxu0 %v677
      %v896 = vpop.f32.mrf.mxu0
      %v897 = vadd.f32 0.0, %v896
      %v898 = vpop.f32.mrf.mxu0
      %899 = vmatprep.mubr.f32.mxu0 0.0
      %900 = vmatmul.mubr.f32.gmra.mxu0 %v680
      %v901 = vpop.f32.mrf.mxu0
      %v902 = vadd.f32 0.0, %v901
      %v903 = vpop.f32.mrf.mxu0
      %904 = vmatprep.mubr.f32.mxu0 0.0
      %905 = vmatmul.mubr.f32.gmra.mxu0 %v683
      %v906 = vpop.f32.mrf.mxu0
      %v907 = vadd.f32 0.0, %v906
      %v908 = vpop.f32.mrf.mxu0
      %909 = vdwg.mxu0
      %v910 = vtanh.pop %v752
      %v911 = vtanh.pop %v757
      %v912 = vtanh.pop %v762
      %v913 = vtanh.pop %v767
      %v914 = vtanh.pop %v772
      %v915 = vtanh.pop %v777
      %v916 = vtanh.pop %v782
      %v917 = vtanh.pop %v787
      %v918 = vtanh.pop %v792
      %v919 = vtanh.pop %v797
      %v920 = vtanh.pop %v802
      %v921 = vtanh.pop %v807
      %v922 = vtanh.pop %v812
      %v923 = vtanh.pop %v817
      %v924 = vtanh.pop %v822
      %v925 = vtanh.pop %v827
      %v926 = vtanh.pop %v832
      %v927 = vtanh.pop %v837
      %v928 = vtanh.pop %v842
      %v929 = vtanh.pop %v847
      %v930 = vtanh.pop %v852
      %v931 = vtanh.pop %v857
      %v932 = vtanh.pop %v862
      %v933 = vtanh.pop %v867
      %v934 = vtanh.pop %v872
      %v935 = vtanh.pop %v877
      %v936 = vtanh.pop %v882
      %v937 = vtanh.pop %v887
      %v938 = vtanh.pop %v892
      %v939 = vtanh.pop %v897
      %v940 = vtanh.pop %v902
      %v941 = vtanh.pop %v907
      %vm942 = vcmask 130048
      %943 = vst.msk [vmem:[%s199] sm:$0xff] %vm942, %v910
      %944 = vst.msk [vmem:[%s199 + $0x8] sm:$0xff] %vm942, %v911
      %945 = vst.msk [vmem:[%s199 + $0x10] sm:$0xff] %vm942, %v912
      %946 = vst.msk [vmem:[%s199 + $0x18] sm:$0xff] %vm942, %v913
      %947 = vst.msk [vmem:[%s199 + $0x20] sm:$0xff] %vm942, %v914
      %948 = vst.msk [vmem:[%s199 + $0x28] sm:$0xff] %vm942, %v915
      %949 = vst.msk [vmem:[%s199 + $0x30] sm:$0xff] %vm942, %v916
      %950 = vst.msk [vmem:[%s199 + $0x38] sm:$0xff] %vm942, %v917
      %951 = vst.msk [vmem:[%s199 + $0x40] sm:$0xff] %vm942, %v918
      %952 = vst.msk [vmem:[%s199 + $0x48] sm:$0xff] %vm942, %v919
      %953 = vst.msk [vmem:[%s199 + $0x50] sm:$0xff] %vm942, %v920
      %954 = vst.msk [vmem:[%s199 + $0x58] sm:$0xff] %vm942, %v921
      %955 = vst.msk [vmem:[%s199 + $0x60] sm:$0xff] %vm942, %v922
      %956 = vst.msk [vmem:[%s199 + $0x68] sm:$0xff] %vm942, %v923
      %957 = vst.msk [vmem:[%s199 + $0x70] sm:$0xff] %vm942, %v924
      %958 = vst.msk [vmem:[%s199 + $0x78] sm:$0xff] %vm942, %v925
      %959 = vst.msk [vmem:[%s199 + $0x80] sm:$0xff] %vm942, %v926
      %960 = vst.msk [vmem:[%s199 + $0x88] sm:$0xff] %vm942, %v927
      %961 = vst.msk [vmem:[%s199 + $0x90] sm:$0xff] %vm942, %v928
      %962 = vst.msk [vmem:[%s199 + $0x98] sm:$0xff] %vm942, %v929
      %963 = vst.msk [vmem:[%s199 + $0xa0] sm:$0xff] %vm942, %v930
      %964 = vst.msk [vmem:[%s199 + $0xa8] sm:$0xff] %vm942, %v931
      %965 = vst.msk [vmem:[%s199 + $0xb0] sm:$0xff] %vm942, %v932
      %966 = vst.msk [vmem:[%s199 + $0xb8] sm:$0xff] %vm942, %v933
      %967 = vst.msk [vmem:[%s199 + $0xc0] sm:$0xff] %vm942, %v934
      %968 = vst.msk [vmem:[%s199 + $0xc8] sm:$0xff] %vm942, %v935
      %969 = vst.msk [vmem:[%s199 + $0xd0] sm:$0xff] %vm942, %v936
      %970 = vst.msk [vmem:[%s199 + $0xd8] sm:$0xff] %vm942, %v937
      %971 = vst.msk [vmem:[%s199 + $0xe0] sm:$0xff] %vm942, %v938
      %972 = vst.msk [vmem:[%s199 + $0xe8] sm:$0xff] %vm942, %v939
      %973 = vst.msk [vmem:[%s199 + $0xf0] sm:$0xff] %vm942, %v940
      %974 = vst.msk [vmem:[%s199 + $0xf8] sm:$0xff] %vm942, %v941
      %s975 = smul.u32 32, %s15
      %p976 = scmp.lt.s32.totalorder %s975, 63
      %s977 = scalar_select %p976, %s975, 63
      %s978 = smul.addr %s977, 8
      %s979 = scalar_lea.vmem %s4, %s978
      // Predicated region
      $region37: #{vae_forward.19} parent=35 // pred_check
        %p980 = pneg %p122
      $region38: #{vae_forward.19} parent=35 // pred_check_branch
        %982 = sbr.rel (%p980) target = $region40
      $region39: #{vae_forward.19} parent=35 // pred_region
        %s983 = smul.u32 32, %s15
      $region40: #{vae_forward.19} parent=35 // pred_fallthru
        _
    $region36: #{vae_forward.19} parent=5 // pred_fallthru
      _
    %p984 = scmp.le.s32.totalorder 2, %s10
    // Predicated region
    $region41: #{vae_forward.19} parent=5 // pred_check
      %p985 = pneg %p984
    $region42: #{vae_forward.19} parent=5 // pred_check_branch
      %987 = sbr.rel (%p985) target = $region44
    $region43: #{vae_forward.19} parent=5 // pred_region
      %s988 = ssub.s32 %s10, 2
      // Predicated region
      $region45: #{vae_forward.19} parent=43 // pred_check
        %p989 = pneg %p128
      $region46: #{vae_forward.19} parent=43 // pred_check_branch
        %991 = sbr.rel (%p989) target = $region48
      $region47: #{vae_forward.19} parent=43 // pred_region
        %s992 = smul.u32 32, %s16
        %p993 = scmp.lt.s32.totalorder %s992, 63
        %s994 = scalar_select %p993, %s992, 63
        %s995 = smul.addr %s994, 8
        %s996 = scalar_lea.vmem %s4, %s995
      $region48: #{vae_forward.19} parent=43 // pred_fallthru
        _
    $region44: #{vae_forward.19} parent=5 // pred_fallthru
      _
  $region6: #{vae_forward.19} parent=0 // loop_footer
    %s14 = sadd.s32 1, %s10
  $region7: #{vae_forward.19} parent=0 // loop_footer_branch
    %9 = sbr.rel target = $region3
  $region8: #{vae_forward.19} parent=0 // loop_exit
    _

</llo_original>
